<compile_context>
chip_gen: v5e
topology: v5e:2x2
jax: 0.10.0
libtpu: 0.0.40
codegen_flags: <defaults>
</compile_context>

<pallas_src>
import jax
import jax.numpy as jnp
from jax.experimental import pallas as pl
from jax.experimental.pallas import tpu as pltpu

N_GRAPH_NODES = 8        # graph nodes (BatchNorm1d batch dim, per graph)
FEATURE_DIM = 128        # feature_dim
IN_NODES = 1             # len(states) passed to Cell_Last.forward
CELL_NODES = 2           # intermediate nodes in the cell
NUM_MIXED = 3            # len(LAST_OPS)
NUM_EDGES = sum(i + IN_NODES for i in range(CELL_NODES))   # = 3
BN_EPS = 1e-5

NUM_GRAPHS = 32          # batched independent graphs
GRAPHS_PER_BLOCK = 16    # graphs per grid step -> 128 MXU rows per pass


# ---------------------------------------------------------------------------
# Fused Pallas kernel: the entire Cell_Last forward for one block of graphs
# ---------------------------------------------------------------------------
def cell_last_kernel(g_ref,       # VMEM (1, M, M)  bf16  block-diag adjacency
                     hin_ref,     # VMEM (M, F)     bf16  cell input rows
                     w_hin_ref,   # VMEM (F, 7F)    bf16  packed h_in-LHS weights
                     w_s0_ref,    # VMEM (F, 2F)    bf16  packed s0-LHS weights
                     gamma_ref,   # VMEM (1, 9F)    f32   alpha-folded BN scale
                     beta_ref,    # VMEM (1, 9F)    f32   alpha-folded BN shift
                     out_ref):    # VMEM (CELL_NODES, M, F) f32  new states
    f = hin_ref.shape[-1]
    n = N_GRAPH_NODES
    g = g_ref[0]                  # (M, M) bf16
    h_in = hin_ref[...]           # (M, F) bf16

    def bn_relu(x, c0, c1):
        # BatchNorm1d training-mode stats PER GRAPH (groups of n contiguous
        # rows) + alpha-folded affine + ReLU, on a lane-dense f32 slab.
        m, c = x.shape
        xg = x.reshape(m // n, n, c)
        mu = jnp.mean(xg, axis=1, keepdims=True)
        d = xg - mu
        var = jnp.mean(d * d, axis=1, keepdims=True)
        y = (d * jax.lax.rsqrt(var + BN_EPS)).reshape(m, c)
        y = y * gamma_ref[:, c0:c1] + beta_ref[:, c0:c1]
        return jnp.maximum(y, 0.0)

    # MM1: every projection whose LHS is the cell input, one wide matmul.
    # columns: [inner0_e0 | inner0_e1 | x1_e0 | x2_e0 | x1_e1 | x2_e1 | x2_e2]
    p_hin = jnp.dot(h_in, w_hin_ref[...],
                    preferred_element_type=jnp.float32)                 # (M, 7F)
    # MM2: fused GCN aggregate for edges 0 & 1: g @ [inner0_e0 | inner0_e1].
    agg01 = jnp.dot(g, p_hin[:, :2 * f].astype(jnp.bfloat16),
                    preferred_element_type=jnp.float32)                 # (M, 2F)

    y_agg = bn_relu(agg01, 0, 2 * f)                 # [y0_e0 | y0_e1]
    y_hin = bn_relu(p_hin[:, 2 * f:], 2 * f, 7 * f)  # [y1_e0|y2_e0|y1_e1|y2_e1|y2_e2]

    # ---- node 0:  s0 = mixed_op(edge 0, h_in) ----
    s0 = y_agg[:, :f] + y_hin[:, :f] + y_hin[:, f:2 * f]
    out_ref[0] = s0

    # MM3: edge-2 projections with LHS s0: [inner0_e2 | x1_e2].
    p_s0 = jnp.dot(s0.astype(jnp.bfloat16), w_s0_ref[...],
                   preferred_element_type=jnp.float32)                  # (M, 2F)
    # MM4: GCN aggregate for edge 2.
    agg2 = jnp.dot(g, p_s0[:, :f].astype(jnp.bfloat16),
                   preferred_element_type=jnp.float32)                  # (M, F)

    y_e2_0 = bn_relu(agg2, 7 * f, 8 * f)
    y_e2_1 = bn_relu(p_s0[:, f:], 8 * f, 9 * f)

    # ---- node 1:  s1 = mixed_op(edge 1, h_in) + mixed_op(edge 2, s0) ----
    s1 = (y_agg[:, f:] + y_hin[:, 2 * f:3 * f] + y_hin[:, 3 * f:4 * f]
          + y_e2_0 + y_e2_1 + y_hin[:, 4 * f:5 * f])
    out_ref[1] = s1


# ---------------------------------------------------------------------------
# Wrapper: packs lane-dense weight slabs, folds alpha into BN, launches the
# grid over graph blocks
# ---------------------------------------------------------------------------
def cell_last_pallas(g, states, h_in, weights, params, *,
                     graphs_per_block=GRAPHS_PER_BLOCK):
    """Cell_Last.forward for B independent graphs; returns the states list."""
    # TODO(synk): kernel assumes states == [h_in] (the usual Cell_Last call
    # pattern with in_nodes == 1).
    assert len(states) == IN_NODES
    assert len(params) == NUM_EDGES and weights.shape == (NUM_EDGES, NUM_MIXED)
    B, n, f = h_in.shape
    assert n == N_GRAPH_NODES and f == FEATURE_DIM

    gpb = min(graphs_per_block, B)
    assert B % gpb == 0
    nb = B // gpb
    m_blk = gpb * n

    # Block-diagonal adjacency per grid block (keeps aggregation per graph).
    eye = jnp.eye(gpb, dtype=g.dtype)
    g_bd = jnp.einsum('cgij,gh->cgihj', g.reshape(nb, gpb, n, n), eye)
    g_bd = g_bd.reshape(nb, m_blk, m_blk).astype(jnp.bfloat16)

    h_flat = h_in.reshape(B * n, f).astype(jnp.bfloat16)

    # Pack every h_in-LHS projection into one wide (F, 7F) RHS slab; the two
    # edge-2 (s0-LHS) projections into a (F, 2F) slab.
    W = [p["W"] for p in params]
    w_hin = jnp.concatenate(
        [W[0][0], W[1][0],           # inner slabs for the fused g-aggregate
         W[0][1], W[0][2],           # edge 0: op1, op2
         W[1][1], W[1][2],           # edge 1: op1, op2
         W[2][2]],                   # edge 2: op2 (skip from h_in)
        axis=1).astype(jnp.bfloat16)                                   # (F, 7F)
    w_s0 = jnp.concatenate([W[2][0], W[2][1]], axis=1).astype(jnp.bfloat16)  # (F, 2F)

    # Fold architecture weights into the BN affine.  Valid because the DARTS
    # mixing weights come from a softmax (non-negative): a*ReLU(z) = ReLU(a*z).
    def fg(e, k):
        return (weights[e, k] * params[e]["gamma"][k]).astype(jnp.float32)

    def fb(e, k):
        return (weights[e, k] * params[e]["beta"][k]).astype(jnp.float32)

    order = [(0, 0), (1, 0),                    # agg slab:  e0.op0 | e1.op0
             (0, 1), (0, 2), (1, 1), (1, 2), (2, 2),   # h_in slab (5F)
             (2, 0), (2, 1)]                    # edge-2 tail: agg2 | x1_e2
    gamma_pack = jnp.concatenate([fg(e, k) for e, k in order], axis=-1)  # (1, 9F)
    beta_pack = jnp.concatenate([fb(e, k) for e, k in order], axis=-1)   # (1, 9F)

    new_states = pl.pallas_call(
        cell_last_kernel,
        out_shape=jax.ShapeDtypeStruct((CELL_NODES, B * n, f), jnp.float32),
        grid=(nb,),
        in_specs=[
            pl.BlockSpec((1, m_blk, m_blk), lambda b: (b, 0, 0)),   # g (block-diag)
            pl.BlockSpec((m_blk, f), lambda b: (b, 0)),             # h_in rows
            pl.BlockSpec((f, 7 * f), lambda b: (0, 0)),             # packed W (h_in)
            pl.BlockSpec((f, 2 * f), lambda b: (0, 0)),             # packed W (s0)
            pl.BlockSpec((1, 9 * f), lambda b: (0, 0)),             # folded gamma
            pl.BlockSpec((1, 9 * f), lambda b: (0, 0)),             # folded beta
        ],
        out_specs=pl.BlockSpec((CELL_NODES, m_blk, f), lambda b: (0, b, 0)),
        compiler_params=pltpu.CompilerParams(
            dimension_semantics=("parallel",)),
    )(g_bd, h_flat, w_hin, w_s0, gamma_pack, beta_pack)

    s_new = [new_states[i].reshape(B, n, f) for i in range(CELL_NODES)]
    return list(states) + s_new


# ---------------------------------------------------------------------------
# Pure-JAX reference: original per-graph Cell_Last math (alpha NOT folded),
# vmapped over graphs; mirrors the kernel's bf16-matmul / f32-BN numerics.
# ---------------------------------------------------------------------------
def cell_last_ref(g, h_in, weights, params):
    Ws = jnp.stack([p["W"] for p in params]).astype(jnp.bfloat16)    # (E,3,F,F)
    gammas = jnp.stack([p["gamma"] for p in params])                 # (E,3,1,F)
    betas = jnp.stack([p["beta"] for p in params])                   # (E,3,1,F)

    def mixed(alpha, gb, h, hib, We, ge, be):
        inner = jnp.dot(h, We[0], preferred_element_type=jnp.float32)
        xs = (jnp.dot(gb, inner.astype(jnp.bfloat16),
                      preferred_element_type=jnp.float32),
              jnp.dot(h, We[1], preferred_element_type=jnp.float32),
              jnp.dot(hib, We[2], preferred_element_type=jnp.float32))
        out = jnp.zeros((h.shape[0], We.shape[-1]), jnp.float32)
        for k, x in enumerate(xs):
            mu = x.mean(axis=0, keepdims=True)
            var = ((x - mu) ** 2).mean(axis=0, keepdims=True)
            y = (x - mu) * jax.lax.rsqrt(var + BN_EPS)
            y = y * ge[k] + be[k]
            out = out + alpha[k] * jnp.maximum(y, 0.0)
        return out

    def one_graph(g1, h1):
        gb = g1.astype(jnp.bfloat16)
        hib = h1.astype(jnp.bfloat16)
        states = [hib]
        outs = []
        offset = 0
        for _ in range(CELL_NODES):
            s = None
            for j, h in enumerate(states):
                e = offset + j
                o = mixed(weights[e], gb, h, hib, Ws[e], gammas[e], betas[e])
                s = o if s is None else s + o
            offset += len(states)
            outs.append(s)
            states.append(s.astype(jnp.bfloat16))
        return jnp.stack(outs)                    # (CELL_NODES, N, F)

    return jax.vmap(one_graph)(g, h_in)           # (B, CELL_NODES, N, F)


# ---------------------------------------------------------------------------
# Deterministic inputs + self-check
# ---------------------------------------------------------------------------
if __name__ == "__main__":
    key = jax.random.PRNGKey(0)
    B, n, f = NUM_GRAPHS, N_GRAPH_NODES, FEATURE_DIM
    keys = jax.random.split(key, 3 + NUM_EDGES)

    # per-graph symmetric row-normalized adjacency
    adj = jax.random.uniform(keys[0], (B, n, n), dtype=jnp.float32)
    adj = (adj + jnp.swapaxes(adj, -1, -2)) * 0.5 + jnp.eye(n, dtype=jnp.float32)
    g = adj / jnp.sum(adj, axis=-1, keepdims=True)

    h_in = jax.random.normal(keys[1], (B, n, f), dtype=jnp.float32)
    states0 = [h_in]

    # DARTS architecture weights: softmax over the mixed ops, per edge (>= 0)
    logits = jax.random.normal(keys[2], (NUM_EDGES, NUM_MIXED), dtype=jnp.float32)
    weights = jax.nn.softmax(logits, axis=-1)

    params = []
    for e in range(NUM_EDGES):
        wk = jax.random.split(keys[3 + e], 3)
        params.append({
            "W": jax.random.normal(wk[0], (NUM_MIXED, f, f),
                                   dtype=jnp.float32) * 0.05,
            "gamma": 1.0 + 0.1 * jax.random.normal(wk[1], (NUM_MIXED, 1, f),
                                                   dtype=jnp.float32),
            "beta": 0.1 * jax.random.normal(wk[2], (NUM_MIXED, 1, f),
                                            dtype=jnp.float32),
        })

    out_states = cell_last_pallas(g, states0, h_in, weights, params,
                                  graphs_per_block=GRAPHS_PER_BLOCK)
    out_states = jax.block_until_ready(out_states)
    assert len(out_states) == IN_NODES + CELL_NODES

    ref = cell_last_ref(g, h_in, weights, params)      # (B, CELL_NODES, n, f)
    for i in range(CELL_NODES):
        got = out_states[IN_NODES + i]
        want = ref[:, i]
        assert got.shape == (B, n, f)
        if not jnp.allclose(got, want, rtol=1e-2, atol=1e-2):
            err = float(jnp.max(jnp.abs(got - want)))
            raise AssertionError(
                f"node {i}: Pallas output mismatch vs reference (max abs err {err})")

    print("KERNEL_OK")
</pallas_src>

<mosaic_0001>
module attributes {stable_mosaic.version = 11 : i64} {
  func.func @cell_last_kernel(%arg0: i32, %arg1: memref<1x128x128xbf16, #tpu.memory_space<vmem>>, %arg2: memref<128x128xbf16, #tpu.memory_space<vmem>>, %arg3: memref<128x896xbf16, #tpu.memory_space<vmem>>, %arg4: memref<128x256xbf16, #tpu.memory_space<vmem>>, %arg5: memref<1x1152xf32, #tpu.memory_space<vmem>>, %arg6: memref<1x1152xf32, #tpu.memory_space<vmem>>, %arg7: memref<2x128x128xf32, #tpu.memory_space<vmem>>) attributes {dimension_semantics = [#tpu.dimension_semantics<parallel>], iteration_bounds = array<i64: 2>, scalar_prefetch = 0 : i64, scratch_operands = 0 : i64, tpu.core_type = #tpu.core_type<tc>, window_params = [{transform_indices = @transform_0, window_bounds = array<i64: 1, 128, 128>}, {transform_indices = @transform_1, window_bounds = array<i64: 128, 128>}, {pipeline_mode = #tpu.pipeline_mode<synchronous>, transform_indices = @transform_2, window_bounds = array<i64: 128, 896>}, {pipeline_mode = #tpu.pipeline_mode<synchronous>, transform_indices = @transform_3, window_bounds = array<i64: 128, 256>}, {pipeline_mode = #tpu.pipeline_mode<synchronous>, transform_indices = @transform_4, window_bounds = array<i64: 1, 1152>}, {pipeline_mode = #tpu.pipeline_mode<synchronous>, transform_indices = @transform_5, window_bounds = array<i64: 1, 1152>}, {transform_indices = @transform_6, window_bounds = array<i64: 2, 128, 128>}]} {
    %c0 = arith.constant 0 : index
    %c0_0 = arith.constant 0 : index
    %c0_1 = arith.constant 0 : index
    %0 = vector.load %arg1[%c0, %c0_0, %c0_1] : memref<1x128x128xbf16, #tpu.memory_space<vmem>>, vector<1x128x128xbf16>
    %1 = vector.shape_cast %0 : vector<1x128x128xbf16> to vector<128x128xbf16>
    %c0_2 = arith.constant 0 : index
    %c0_3 = arith.constant 0 : index
    %2 = vector.load %arg2[%c0_2, %c0_3] : memref<128x128xbf16, #tpu.memory_space<vmem>>, vector<128x128xbf16>
    %c0_4 = arith.constant 0 : index
    %c0_5 = arith.constant 0 : index
    %3 = vector.load %arg3[%c0_4, %c0_5] : memref<128x896xbf16, #tpu.memory_space<vmem>>, vector<128x896xbf16>
    %cst = arith.constant dense<0.000000e+00> : vector<128x896xf32>
    %4 = tpu.matmul %2, %3, %cst {dimension_numbers = #tpu.dot_dimension_numbers<[1], [0], [0], [1], [0, 0, 1, 1], [], []>} : vector<128x128xbf16>, vector<128x896xbf16>, vector<128x896xf32> -> vector<128x896xf32>
    %5 = vector.extract_strided_slice %4 {offsets = [0, 0], sizes = [128, 256], strides = [1, 1]} : vector<128x896xf32> to vector<128x256xf32>
    %6 = arith.truncf %5 : vector<128x256xf32> to vector<128x256xbf16>
    %cst_6 = arith.constant dense<0.000000e+00> : vector<128x256xf32>
    %7 = tpu.matmul %1, %6, %cst_6 {dimension_numbers = #tpu.dot_dimension_numbers<[1], [0], [0], [1], [0, 0, 1, 1], [], []>} : vector<128x128xbf16>, vector<128x256xbf16>, vector<128x256xf32> -> vector<128x256xf32>
    %8 = vector.shape_cast %7 : vector<128x256xf32> to vector<16x8x256xf32>
    %cst_7 = arith.constant dense<0.000000e+00> : vector<16x256xf32>
    %9 = vector.multi_reduction <add>, %8, %cst_7 [1] : vector<16x8x256xf32> to vector<16x256xf32>
    %10 = vector.shape_cast %9 : vector<16x256xf32> to vector<16x1x256xf32>
    %cst_8 = arith.constant 8.000000e+00 : f32
    %11 = vector.broadcast %cst_8 : f32 to vector<16x1x256xf32>
    %12 = arith.divf %10, %11 : vector<16x1x256xf32>
    %13 = vector.broadcast %12 : vector<16x1x256xf32> to vector<16x8x256xf32>
    %14 = arith.subf %8, %13 : vector<16x8x256xf32>
    %15 = arith.mulf %14, %14 : vector<16x8x256xf32>
    %cst_9 = arith.constant dense<0.000000e+00> : vector<16x256xf32>
    %16 = vector.multi_reduction <add>, %15, %cst_9 [1] : vector<16x8x256xf32> to vector<16x256xf32>
    %17 = vector.shape_cast %16 : vector<16x256xf32> to vector<16x1x256xf32>
    %cst_10 = arith.constant 8.000000e+00 : f32
    %18 = vector.broadcast %cst_10 : f32 to vector<16x1x256xf32>
    %19 = arith.divf %17, %18 : vector<16x1x256xf32>
    %cst_11 = arith.constant 9.99999974E-6 : f32
    %20 = vector.broadcast %cst_11 : f32 to vector<16x1x256xf32>
    %21 = arith.addf %19, %20 : vector<16x1x256xf32>
    %22 = math.rsqrt %21 : vector<16x1x256xf32>
    %23 = vector.broadcast %22 : vector<16x1x256xf32> to vector<16x8x256xf32>
    %24 = arith.mulf %14, %23 : vector<16x8x256xf32>
    %25 = vector.shape_cast %24 : vector<16x8x256xf32> to vector<128x256xf32>
    %c0_12 = arith.constant 0 : index
    %c0_13 = arith.constant 0 : index
    %26 = vector.load %arg5[%c0_12, %c0_13] : memref<1x1152xf32, #tpu.memory_space<vmem>>, vector<1x256xf32>
    %27 = vector.broadcast %26 : vector<1x256xf32> to vector<128x256xf32>
    %28 = arith.mulf %25, %27 : vector<128x256xf32>
    %c0_14 = arith.constant 0 : index
    %c0_15 = arith.constant 0 : index
    %29 = vector.load %arg6[%c0_14, %c0_15] : memref<1x1152xf32, #tpu.memory_space<vmem>>, vector<1x256xf32>
    %30 = vector.broadcast %29 : vector<1x256xf32> to vector<128x256xf32>
    %31 = arith.addf %28, %30 : vector<128x256xf32>
    %cst_16 = arith.constant 0.000000e+00 : f32
    %32 = vector.broadcast %cst_16 : f32 to vector<128x256xf32>
    %33 = arith.maximumf %31, %32 : vector<128x256xf32>
    %34 = vector.extract_strided_slice %4 {offsets = [0, 256], sizes = [128, 640], strides = [1, 1]} : vector<128x896xf32> to vector<128x640xf32>
    %35 = vector.shape_cast %34 : vector<128x640xf32> to vector<16x8x640xf32>
    %cst_17 = arith.constant dense<0.000000e+00> : vector<16x640xf32>
    %36 = vector.multi_reduction <add>, %35, %cst_17 [1] : vector<16x8x640xf32> to vector<16x640xf32>
    %37 = vector.shape_cast %36 : vector<16x640xf32> to vector<16x1x640xf32>
    %cst_18 = arith.constant 8.000000e+00 : f32
    %38 = vector.broadcast %cst_18 : f32 to vector<16x1x640xf32>
    %39 = arith.divf %37, %38 : vector<16x1x640xf32>
    %40 = vector.broadcast %39 : vector<16x1x640xf32> to vector<16x8x640xf32>
    %41 = arith.subf %35, %40 : vector<16x8x640xf32>
    %42 = arith.mulf %41, %41 : vector<16x8x640xf32>
    %cst_19 = arith.constant dense<0.000000e+00> : vector<16x640xf32>
    %43 = vector.multi_reduction <add>, %42, %cst_19 [1] : vector<16x8x640xf32> to vector<16x640xf32>
    %44 = vector.shape_cast %43 : vector<16x640xf32> to vector<16x1x640xf32>
    %cst_20 = arith.constant 8.000000e+00 : f32
    %45 = vector.broadcast %cst_20 : f32 to vector<16x1x640xf32>
    %46 = arith.divf %44, %45 : vector<16x1x640xf32>
    %cst_21 = arith.constant 9.99999974E-6 : f32
    %47 = vector.broadcast %cst_21 : f32 to vector<16x1x640xf32>
    %48 = arith.addf %46, %47 : vector<16x1x640xf32>
    %49 = math.rsqrt %48 : vector<16x1x640xf32>
    %50 = vector.broadcast %49 : vector<16x1x640xf32> to vector<16x8x640xf32>
    %51 = arith.mulf %41, %50 : vector<16x8x640xf32>
    %52 = vector.shape_cast %51 : vector<16x8x640xf32> to vector<128x640xf32>
    %c0_22 = arith.constant 0 : index
    %c256 = arith.constant 256 : index
    %53 = vector.load %arg5[%c0_22, %c256] : memref<1x1152xf32, #tpu.memory_space<vmem>>, vector<1x640xf32>
    %54 = vector.broadcast %53 : vector<1x640xf32> to vector<128x640xf32>
    %55 = arith.mulf %52, %54 : vector<128x640xf32>
    %c0_23 = arith.constant 0 : index
    %c256_24 = arith.constant 256 : index
    %56 = vector.load %arg6[%c0_23, %c256_24] : memref<1x1152xf32, #tpu.memory_space<vmem>>, vector<1x640xf32>
    %57 = vector.broadcast %56 : vector<1x640xf32> to vector<128x640xf32>
    %58 = arith.addf %55, %57 : vector<128x640xf32>
    %cst_25 = arith.constant 0.000000e+00 : f32
    %59 = vector.broadcast %cst_25 : f32 to vector<128x640xf32>
    %60 = arith.maximumf %58, %59 : vector<128x640xf32>
    %61 = vector.extract_strided_slice %33 {offsets = [0, 0], sizes = [128, 128], strides = [1, 1]} : vector<128x256xf32> to vector<128x128xf32>
    %62 = vector.extract_strided_slice %60 {offsets = [0, 0], sizes = [128, 128], strides = [1, 1]} : vector<128x640xf32> to vector<128x128xf32>
    %63 = arith.addf %61, %62 : vector<128x128xf32>
    %64 = vector.extract_strided_slice %60 {offsets = [0, 128], sizes = [128, 128], strides = [1, 1]} : vector<128x640xf32> to vector<128x128xf32>
    %65 = arith.addf %63, %64 : vector<128x128xf32>
    %c0_26 = arith.constant 0 : index
    %c0_27 = arith.constant 0 : index
    %c0_28 = arith.constant 0 : index
    %66 = vector.load %arg7[%c0_26, %c0_27, %c0_28] : memref<2x128x128xf32, #tpu.memory_space<vmem>>, vector<1x128x128xf32>
    %67 = vector.shape_cast %66 : vector<1x128x128xf32> to vector<128x128xf32>
    %68 = vector.shape_cast %65 : vector<128x128xf32> to vector<1x128x128xf32>
    tpu.vector_store %arg7[%c0_26, %c0_27, %c0_28], %68 {strides = array<i32>} : memref<2x128x128xf32, #tpu.memory_space<vmem>>, vector<1x128x128xf32>,
    %69 = arith.truncf %65 : vector<128x128xf32> to vector<128x128xbf16>
    %c0_29 = arith.constant 0 : index
    %c0_30 = arith.constant 0 : index
    %70 = vector.load %arg4[%c0_29, %c0_30] : memref<128x256xbf16, #tpu.memory_space<vmem>>, vector<128x256xbf16>
    %cst_31 = arith.constant dense<0.000000e+00> : vector<128x256xf32>
    %71 = tpu.matmul %69, %70, %cst_31 {dimension_numbers = #tpu.dot_dimension_numbers<[1], [0], [0], [1], [0, 0, 1, 1], [], []>} : vector<128x128xbf16>, vector<128x256xbf16>, vector<128x256xf32> -> vector<128x256xf32>
    %72 = vector.extract_strided_slice %71 {offsets = [0, 0], sizes = [128, 128], strides = [1, 1]} : vector<128x256xf32> to vector<128x128xf32>
    %73 = arith.truncf %72 : vector<128x128xf32> to vector<128x128xbf16>
    %cst_32 = arith.constant dense<0.000000e+00> : vector<128x128xf32>
    %74 = tpu.matmul %1, %73, %cst_32 {dimension_numbers = #tpu.dot_dimension_numbers<[1], [0], [0], [1], [0, 0, 1, 1], [], []>} : vector<128x128xbf16>, vector<128x128xbf16>, vector<128x128xf32> -> vector<128x128xf32>
    %75 = vector.shape_cast %74 : vector<128x128xf32> to vector<16x8x128xf32>
    %cst_33 = arith.constant dense<0.000000e+00> : vector<16x128xf32>
    %76 = vector.multi_reduction <add>, %75, %cst_33 [1] : vector<16x8x128xf32> to vector<16x128xf32>
    %77 = vector.shape_cast %76 : vector<16x128xf32> to vector<16x1x128xf32>
    %cst_34 = arith.constant 8.000000e+00 : f32
    %78 = vector.broadcast %cst_34 : f32 to vector<16x1x128xf32>
    %79 = arith.divf %77, %78 : vector<16x1x128xf32>
    %80 = vector.broadcast %79 : vector<16x1x128xf32> to vector<16x8x128xf32>
    %81 = arith.subf %75, %80 : vector<16x8x128xf32>
    %82 = arith.mulf %81, %81 : vector<16x8x128xf32>
    %cst_35 = arith.constant dense<0.000000e+00> : vector<16x128xf32>
    %83 = vector.multi_reduction <add>, %82, %cst_35 [1] : vector<16x8x128xf32> to vector<16x128xf32>
    %84 = vector.shape_cast %83 : vector<16x128xf32> to vector<16x1x128xf32>
    %cst_36 = arith.constant 8.000000e+00 : f32
    %85 = vector.broadcast %cst_36 : f32 to vector<16x1x128xf32>
    %86 = arith.divf %84, %85 : vector<16x1x128xf32>
    %cst_37 = arith.constant 9.99999974E-6 : f32
    %87 = vector.broadcast %cst_37 : f32 to vector<16x1x128xf32>
    %88 = arith.addf %86, %87 : vector<16x1x128xf32>
    %89 = math.rsqrt %88 : vector<16x1x128xf32>
    %90 = vector.broadcast %89 : vector<16x1x128xf32> to vector<16x8x128xf32>
    %91 = arith.mulf %81, %90 : vector<16x8x128xf32>
    %92 = vector.shape_cast %91 : vector<16x8x128xf32> to vector<128x128xf32>
    %c0_38 = arith.constant 0 : index
    %c896 = arith.constant 896 : index
    %93 = vector.load %arg5[%c0_38, %c896] : memref<1x1152xf32, #tpu.memory_space<vmem>>, vector<1x128xf32>
    %94 = vector.broadcast %93 : vector<1x128xf32> to vector<128x128xf32>
    %95 = arith.mulf %92, %94 : vector<128x128xf32>
    %c0_39 = arith.constant 0 : index
    %c896_40 = arith.constant 896 : index
    %96 = vector.load %arg6[%c0_39, %c896_40] : memref<1x1152xf32, #tpu.memory_space<vmem>>, vector<1x128xf32>
    %97 = vector.broadcast %96 : vector<1x128xf32> to vector<128x128xf32>
    %98 = arith.addf %95, %97 : vector<128x128xf32>
    %cst_41 = arith.constant 0.000000e+00 : f32
    %99 = vector.broadcast %cst_41 : f32 to vector<128x128xf32>
    %100 = arith.maximumf %98, %99 : vector<128x128xf32>
    %101 = vector.extract_strided_slice %71 {offsets = [0, 128], sizes = [128, 128], strides = [1, 1]} : vector<128x256xf32> to vector<128x128xf32>
    %102 = vector.shape_cast %101 : vector<128x128xf32> to vector<16x8x128xf32>
    %cst_42 = arith.constant dense<0.000000e+00> : vector<16x128xf32>
    %103 = vector.multi_reduction <add>, %102, %cst_42 [1] : vector<16x8x128xf32> to vector<16x128xf32>
    %104 = vector.shape_cast %103 : vector<16x128xf32> to vector<16x1x128xf32>
    %cst_43 = arith.constant 8.000000e+00 : f32
    %105 = vector.broadcast %cst_43 : f32 to vector<16x1x128xf32>
    %106 = arith.divf %104, %105 : vector<16x1x128xf32>
    %107 = vector.broadcast %106 : vector<16x1x128xf32> to vector<16x8x128xf32>
    %108 = arith.subf %102, %107 : vector<16x8x128xf32>
    %109 = arith.mulf %108, %108 : vector<16x8x128xf32>
    %cst_44 = arith.constant dense<0.000000e+00> : vector<16x128xf32>
    %110 = vector.multi_reduction <add>, %109, %cst_44 [1] : vector<16x8x128xf32> to vector<16x128xf32>
    %111 = vector.shape_cast %110 : vector<16x128xf32> to vector<16x1x128xf32>
    %cst_45 = arith.constant 8.000000e+00 : f32
    %112 = vector.broadcast %cst_45 : f32 to vector<16x1x128xf32>
    %113 = arith.divf %111, %112 : vector<16x1x128xf32>
    %cst_46 = arith.constant 9.99999974E-6 : f32
    %114 = vector.broadcast %cst_46 : f32 to vector<16x1x128xf32>
    %115 = arith.addf %113, %114 : vector<16x1x128xf32>
    %116 = math.rsqrt %115 : vector<16x1x128xf32>
    %117 = vector.broadcast %116 : vector<16x1x128xf32> to vector<16x8x128xf32>
    %118 = arith.mulf %108, %117 : vector<16x8x128xf32>
    %119 = vector.shape_cast %118 : vector<16x8x128xf32> to vector<128x128xf32>
    %c0_47 = arith.constant 0 : index
    %c1024 = arith.constant 1024 : index
    %120 = vector.load %arg5[%c0_47, %c1024] : memref<1x1152xf32, #tpu.memory_space<vmem>>, vector<1x128xf32>
    %121 = vector.broadcast %120 : vector<1x128xf32> to vector<128x128xf32>
    %122 = arith.mulf %119, %121 : vector<128x128xf32>
    %c0_48 = arith.constant 0 : index
    %c1024_49 = arith.constant 1024 : index
    %123 = vector.load %arg6[%c0_48, %c1024_49] : memref<1x1152xf32, #tpu.memory_space<vmem>>, vector<1x128xf32>
    %124 = vector.broadcast %123 : vector<1x128xf32> to vector<128x128xf32>
    %125 = arith.addf %122, %124 : vector<128x128xf32>
    %cst_50 = arith.constant 0.000000e+00 : f32
    %126 = vector.broadcast %cst_50 : f32 to vector<128x128xf32>
    %127 = arith.maximumf %125, %126 : vector<128x128xf32>
    %128 = vector.extract_strided_slice %33 {offsets = [0, 128], sizes = [128, 128], strides = [1, 1]} : vector<128x256xf32> to vector<128x128xf32>
    %129 = vector.extract_strided_slice %60 {offsets = [0, 256], sizes = [128, 128], strides = [1, 1]} : vector<128x640xf32> to vector<128x128xf32>
    %130 = arith.addf %128, %129 : vector<128x128xf32>
    %131 = vector.extract_strided_slice %60 {offsets = [0, 384], sizes = [128, 128], strides = [1, 1]} : vector<128x640xf32> to vector<128x128xf32>
    %132 = arith.addf %130, %131 : vector<128x128xf32>
    %133 = arith.addf %132, %100 : vector<128x128xf32>
    %134 = arith.addf %133, %127 : vector<128x128xf32>
    %135 = vector.extract_strided_slice %60 {offsets = [0, 512], sizes = [128, 128], strides = [1, 1]} : vector<128x640xf32> to vector<128x128xf32>
    %136 = arith.addf %134, %135 : vector<128x128xf32>
    %c1 = arith.constant 1 : index
    %c0_51 = arith.constant 0 : index
    %c0_52 = arith.constant 0 : index
    %137 = vector.load %arg7[%c1, %c0_51, %c0_52] : memref<2x128x128xf32, #tpu.memory_space<vmem>>, vector<1x128x128xf32>
    %138 = vector.shape_cast %137 : vector<1x128x128xf32> to vector<128x128xf32>
    %139 = vector.shape_cast %136 : vector<128x128xf32> to vector<1x128x128xf32>
    tpu.vector_store %arg7[%c1, %c0_51, %c0_52], %139 {strides = array<i32>} : memref<2x128x128xf32, #tpu.memory_space<vmem>>, vector<1x128x128xf32>,
    return
  }
  func.func @transform_0(%arg0: i32) -> (i32, i32, i32) {
    %c0_i32 = arith.constant 0 : i32
    %c0_i32_0 = arith.constant 0 : i32
    %c0_i32_1 = arith.constant 0 : i32
    return %arg0, %c0_i32, %c0_i32_0 : i32, i32, i32
  }
  func.func @transform_1(%arg0: i32) -> (i32, i32) {
    %c0_i32 = arith.constant 0 : i32
    %c0_i32_0 = arith.constant 0 : i32
    return %arg0, %c0_i32 : i32, i32
  }
  func.func @transform_2(%arg0: i32) -> (i32, i32) {
    %c0_i32 = arith.constant 0 : i32
    %c0_i32_0 = arith.constant 0 : i32
    %c0_i32_1 = arith.constant 0 : i32
    return %c0_i32, %c0_i32_0 : i32, i32
  }
  func.func @transform_3(%arg0: i32) -> (i32, i32) {
    %c0_i32 = arith.constant 0 : i32
    %c0_i32_0 = arith.constant 0 : i32
    %c0_i32_1 = arith.constant 0 : i32
    return %c0_i32, %c0_i32_0 : i32, i32
  }
  func.func @transform_4(%arg0: i32) -> (i32, i32) {
    %c0_i32 = arith.constant 0 : i32
    %c0_i32_0 = arith.constant 0 : i32
    %c0_i32_1 = arith.constant 0 : i32
    return %c0_i32, %c0_i32_0 : i32, i32
  }
  func.func @transform_5(%arg0: i32) -> (i32, i32) {
    %c0_i32 = arith.constant 0 : i32
    %c0_i32_0 = arith.constant 0 : i32
    %c0_i32_1 = arith.constant 0 : i32
    return %c0_i32, %c0_i32_0 : i32, i32
  }
  func.func @transform_6(%arg0: i32) -> (i32, i32, i32) {
    %c0_i32 = arith.constant 0 : i32
    %c0_i32_0 = arith.constant 0 : i32
    %c0_i32_1 = arith.constant 0 : i32
    return %c0_i32, %arg0, %c0_i32_0 : i32, i32, i32
  }
}

</mosaic_0001>

<llo_original>
// kernel: tpu_custom_call.1
$region0: #{tpu_custom_call.1}
  #allocation0 [shape = 'u32[]', space=smem, size = 0x4, offset = 0x4, fixed_abs, tag = 'smem constant byte address 0x4 - core index']
  #allocation1 [shape = 'u32[72,128]{1,0:T(1,128)}', space=vmem, size = 0x9000, scoped, tag = 'internal scratch']
  #allocation14 [shape = 's32[]', space=sflag, size = 0x4, offset = 0, fixed_abs, tag = 'sflag constant byte address 0x0 - dummy sync flag']
  %s0 = inlined_call_operand.hbm [shape: bf16[2,128,128], index: 0, kind: input, shape index: {}]
  %s1 = inlined_call_operand.hbm [shape: bf16[256,128], index: 1, kind: input, shape index: {}]
  %s2 = inlined_call_operand.hbm [shape: bf16[128,896], index: 2, kind: input, shape index: {}]
  %s3 = inlined_call_operand.hbm [shape: bf16[128,256], index: 3, kind: input, shape index: {}]
  %s4 = inlined_call_operand.hbm [shape: f32[1,1152], index: 4, kind: input, shape index: {}]
  %s5 = inlined_call_operand.hbm [shape: f32[1,1152], index: 5, kind: input, shape index: {}]
  %s6 = inlined_call_operand.hbm [shape: f32[2,256,128], index: 6, kind: output, shape index: {}]
  %s7 = sld [smem:[#allocation0]]
  $region81: #{tpu_custom_call.1} parent=0
    _
  %s9 = ssub.s32 1, %s7
  %s10 = scalar_select 0, %s9, %s7
  $region1: #{tpu_custom_call.1} parent=0
    #allocation2 [shape = 'u8[65536]{0}', space=vmem, size = 0x10000, scoped, tag = 'input window, operand 0']
    #allocation3 [shape = 's32[2]{0}', space=sflag, size = 0x8, scoped, tag = 'scoped memory for tpu_custom_call.1']
    #allocation4 [shape = 's32[2]{0}', space=sflag, size = 0x8, scoped, tag = 'scoped memory for tpu_custom_call.1']
    #allocation5 [shape = 'u8[65536]{0}', space=vmem, size = 0x10000, scoped, tag = 'input window, operand 1']
    #allocation6 [shape = 's32[2]{0}', space=sflag, size = 0x8, scoped, tag = 'scoped memory for tpu_custom_call.1']
    #allocation7 [shape = 'u8[229376]{0}', space=vmem, size = 0x38000, scoped, tag = 'input window, operand 2, single buffered']
    #allocation8 [shape = 'u8[65536]{0}', space=vmem, size = 0x10000, scoped, tag = 'input window, operand 3, single buffered']
    #allocation9 [shape = 's32[1]{0}', space=sflag, size = 0x4, scoped, tag = 'scoped memory for tpu_custom_call.1']
    #allocation10 [shape = 'u8[4608]{0}', space=vmem, size = 0x1400, scoped, tag = 'input window, operand 4, single buffered']
    #allocation11 [shape = 'u8[4608]{0}', space=vmem, size = 0x1400, scoped, tag = 'input window, operand 5, single buffered']
    #allocation12 [shape = 's32[1]{0}', space=sflag, size = 0x4, scoped, tag = 'scoped memory for tpu_custom_call.1']
    #allocation13 [shape = 'u8[262144]{0}', space=vmem, size = 0x40000, scoped, tag = 'output window, operand 0']
    %11 = vsyncpa [#allocation3], 0
    %s12 = scalar_lea.sflag [#allocation3], 1
    %13 = vsyncpa %s12, 0
    %14 = vsyncpa [#allocation6], 0
    %s15 = scalar_lea.sflag [#allocation6], 1
    %16 = vsyncpa %s15, 0
    %17 = vsyncpa [#allocation9], 0
    %18 = vsyncpa [#allocation12], 0
    %19 = vsyncpa [#allocation4], 0
    %s20 = scalar_lea.sflag [#allocation4], 1
    %21 = vsyncpa %s20, 0
    loop: start=0, step=1, limit=4
    $region2: #{tpu_custom_call.1} parent=1 // loop_pre_header
      _
    $region3: #{tpu_custom_call.1} parent=1 // loop_header
      %s23 = sphi 0, %s27
      %p24 = scmp.ge.s32.totalorder %s23, 4
      %s33 = sphi 0, %s35
      %s36 = sphi 0, %s33
      %s37 = sphi 0, %s36
      %s53 = sphi 0, %s37
      %s59 = sphi 0, %s61
      %s62 = sphi 0, %s59
      %s63 = sphi 0, %s62
      %s79 = sphi 0, %s63
      %s83 = sphi 0, %s83
      %s85 = sphi 0, %s83
      %s86 = sphi 0, %s85
      %s100 = sphi 0, %s86
      %s104 = sphi 0, %s104
      %s106 = sphi 0, %s104
      %s107 = sphi 0, %s106
      %s121 = sphi 0, %s107
      %s125 = sphi 0, %s125
      %s127 = sphi 0, %s125
      %s128 = sphi 0, %s127
      %s142 = sphi 0, %s128
      %s146 = sphi 0, %s146
      %s148 = sphi 0, %s146
      %s149 = sphi 0, %s148
      %s163 = sphi 0, %s149
      %s169 = sphi 0, %s171
      %s172 = sphi 0, %s169
      %s173 = sphi 0, %s172
      %s189 = sphi 0, %s173
    $region4: #{tpu_custom_call.1} parent=1 // loop_header_branch
      %26 = sbr.rel (%p24) target = $region8
    $region5: #{tpu_custom_call.1} parent=1 // loop_body
      %s28 = ssub.s32 %s23, 1
      %s29 = ssub.s32 %s23, 2
      %s30 = sadd.s32 %s23, 1
      %s31 = ssub.s32 %s23, %s30
      %p32 = scmp.eq.s32.totalorder %s31, 0
      %s34 = sadd.s32 %s33, 1
      %s35 = scalar_select %p32, %s33, %s34
      %p38 = pneg %p32
      %p39 = scmp.eq.s32.totalorder %s23, 1
      %p40 = por %p38, %p39
      %p41 = scmp.ne.s32.totalorder %s33, %s36
      %p42 = scmp.eq.s32.totalorder %s23, 0
      %p43 = por %p41, %p42
      %p44 = scmp.ne.s32.totalorder %s33, %s36
      %p45 = scmp.eq.s32.totalorder %s28, 1
      %p46 = por %p44, %p45
      %p47 = scmp.ne.s32.totalorder %s36, %s37
      %p48 = scmp.eq.s32.totalorder %s28, 0
      %p49 = por %p47, %p48
      %p50 = scmp.ne.s32.totalorder %s36, %s37
      %p51 = scmp.eq.s32.totalorder %s29, 1
      %p52 = por %p50, %p51
      %p54 = scmp.ne.s32.totalorder %s37, %s53
      %p55 = scmp.eq.s32.totalorder %s29, 0
      %p56 = por %p54, %p55
      %s57 = ssub.s32 %s23, %s30
      %p58 = scmp.eq.s32.totalorder %s57, 0
      %s60 = sadd.s32 %s59, 1
      %s61 = scalar_select %p58, %s59, %s60
      %p64 = pneg %p58
      %p65 = scmp.eq.s32.totalorder %s23, 1
      %p66 = por %p64, %p65
      %p67 = scmp.ne.s32.totalorder %s59, %s62
      %p68 = scmp.eq.s32.totalorder %s23, 0
      %p69 = por %p67, %p68
      %p70 = scmp.ne.s32.totalorder %s59, %s62
      %p71 = scmp.eq.s32.totalorder %s28, 1
      %p72 = por %p70, %p71
      %p73 = scmp.ne.s32.totalorder %s62, %s63
      %p74 = scmp.eq.s32.totalorder %s28, 0
      %p75 = por %p73, %p74
      %p76 = scmp.ne.s32.totalorder %s62, %s63
      %p77 = scmp.eq.s32.totalorder %s29, 1
      %p78 = por %p76, %p77
      %p80 = scmp.ne.s32.totalorder %s63, %s79
      %p81 = scmp.eq.s32.totalorder %s29, 0
      %p82 = por %p80, %p81
      %s84 = sadd.s32 %s83, 1
      %p87 = scmp.eq.s32.totalorder %s23, 1
      %p88 = scmp.ne.s32.totalorder %s83, %s85
      %p89 = scmp.eq.s32.totalorder %s23, 0
      %p90 = por %p88, %p89
      %p91 = scmp.ne.s32.totalorder %s83, %s85
      %p92 = scmp.eq.s32.totalorder %s28, 1
      %p93 = por %p91, %p92
      %p94 = scmp.ne.s32.totalorder %s85, %s86
      %p95 = scmp.eq.s32.totalorder %s28, 0
      %p96 = por %p94, %p95
      %p97 = scmp.ne.s32.totalorder %s85, %s86
      %p98 = scmp.eq.s32.totalorder %s29, 1
      %p99 = por %p97, %p98
      %p101 = scmp.ne.s32.totalorder %s86, %s100
      %p102 = scmp.eq.s32.totalorder %s29, 0
      %p103 = por %p101, %p102
      %s105 = sadd.s32 %s104, 1
      %p108 = scmp.eq.s32.totalorder %s23, 1
      %p109 = scmp.ne.s32.totalorder %s104, %s106
      %p110 = scmp.eq.s32.totalorder %s23, 0
      %p111 = por %p109, %p110
      %p112 = scmp.ne.s32.totalorder %s104, %s106
      %p113 = scmp.eq.s32.totalorder %s28, 1
      %p114 = por %p112, %p113
      %p115 = scmp.ne.s32.totalorder %s106, %s107
      %p116 = scmp.eq.s32.totalorder %s28, 0
      %p117 = por %p115, %p116
      %p118 = scmp.ne.s32.totalorder %s106, %s107
      %p119 = scmp.eq.s32.totalorder %s29, 1
      %p120 = por %p118, %p119
      %p122 = scmp.ne.s32.totalorder %s107, %s121
      %p123 = scmp.eq.s32.totalorder %s29, 0
      %p124 = por %p122, %p123
      %s126 = sadd.s32 %s125, 1
      %p129 = scmp.eq.s32.totalorder %s23, 1
      %p130 = scmp.ne.s32.totalorder %s125, %s127
      %p131 = scmp.eq.s32.totalorder %s23, 0
      %p132 = por %p130, %p131
      %p133 = scmp.ne.s32.totalorder %s125, %s127
      %p134 = scmp.eq.s32.totalorder %s28, 1
      %p135 = por %p133, %p134
      %p136 = scmp.ne.s32.totalorder %s127, %s128
      %p137 = scmp.eq.s32.totalorder %s28, 0
      %p138 = por %p136, %p137
      %p139 = scmp.ne.s32.totalorder %s127, %s128
      %p140 = scmp.eq.s32.totalorder %s29, 1
      %p141 = por %p139, %p140
      %p143 = scmp.ne.s32.totalorder %s128, %s142
      %p144 = scmp.eq.s32.totalorder %s29, 0
      %p145 = por %p143, %p144
      %s147 = sadd.s32 %s146, 1
      %p150 = scmp.eq.s32.totalorder %s23, 1
      %p151 = scmp.ne.s32.totalorder %s146, %s148
      %p152 = scmp.eq.s32.totalorder %s23, 0
      %p153 = por %p151, %p152
      %p154 = scmp.ne.s32.totalorder %s146, %s148
      %p155 = scmp.eq.s32.totalorder %s28, 1
      %p156 = por %p154, %p155
      %p157 = scmp.ne.s32.totalorder %s148, %s149
      %p158 = scmp.eq.s32.totalorder %s28, 0
      %p159 = por %p157, %p158
      %p160 = scmp.ne.s32.totalorder %s148, %s149
      %p161 = scmp.eq.s32.totalorder %s29, 1
      %p162 = por %p160, %p161
      %p164 = scmp.ne.s32.totalorder %s149, %s163
      %p165 = scmp.eq.s32.totalorder %s29, 0
      %p166 = por %p164, %p165
      %s167 = ssub.s32 %s23, %s30
      %p168 = scmp.eq.s32.totalorder %s167, 0
      %s170 = sadd.s32 %s169, 1
      %s171 = scalar_select %p168, %s169, %s170
      %p174 = pneg %p168
      %p175 = scmp.eq.s32.totalorder %s23, 1
      %p176 = por %p174, %p175
      %p177 = scmp.ne.s32.totalorder %s169, %s172
      %p178 = scmp.eq.s32.totalorder %s23, 0
      %p179 = por %p177, %p178
      %p180 = scmp.ne.s32.totalorder %s169, %s172
      %p181 = scmp.eq.s32.totalorder %s28, 1
      %p182 = por %p180, %p181
      %p183 = scmp.ne.s32.totalorder %s172, %s173
      %p184 = scmp.eq.s32.totalorder %s28, 0
      %p185 = por %p183, %p184
      %p186 = scmp.ne.s32.totalorder %s172, %s173
      %p187 = scmp.eq.s32.totalorder %s29, 1
      %p188 = por %p186, %p187
      %p190 = scmp.ne.s32.totalorder %s173, %s189
      %p191 = scmp.eq.s32.totalorder %s29, 0
      %p192 = por %p190, %p191
      %p193 = scmp.le.s32.totalorder 1, %s23
      %p194 = scmp.lt.s32.totalorder %s23, 3
      %p195 = pnand %p193, %p194
      %p196 = pneg %p195
      // Predicated region
      $region9: #{tpu_custom_call.1} parent=5 // pred_check
        _
      $region10: #{tpu_custom_call.1} parent=5 // pred_check_branch
        %198 = sbr.rel (%p195) target = $region12
      $region11: #{tpu_custom_call.1} parent=5 // pred_region
        %s199 = ssub.s32 %s23, 1
        // Predicated region
        $region13: #{tpu_custom_call.1} parent=11 // pred_check
          %p200 = pneg %p96
        $region14: #{tpu_custom_call.1} parent=11 // pred_check_branch
          %202 = sbr.rel (%p200) target = $region16
        $region15: #{tpu_custom_call.1} parent=11 // pred_region
          %204 = vsyncadd [#allocation6], 0
          %s205 = sshll.u32 %s2, 4
          %s206 = int_to_ptr.hbm [resolvable:$true] %s205
          %s207 = sshll.u32 [#allocation7], 4
          %s208 = int_to_ptr.vmem [resolvable:$true] %s207
          %213 = dma.hbm_to_vmem [thread:$0]  %s206, 7168, %s208, [#allocation6], 448, 448, 28
        $region16: #{tpu_custom_call.1} parent=11 // pred_fallthru
          _
        // Predicated region
        $region17: #{tpu_custom_call.1} parent=11 // pred_check
          %p214 = pneg %p117
        $region18: #{tpu_custom_call.1} parent=11 // pred_check_branch
          %216 = sbr.rel (%p214) target = $region20
        $region19: #{tpu_custom_call.1} parent=11 // pred_region
          %218 = vsyncadd [#allocation9], 0
          %s219 = sshll.u32 %s3, 4
          %s220 = int_to_ptr.hbm [resolvable:$true] %s219
          %s221 = sshll.u32 [#allocation8], 4
          %s222 = int_to_ptr.vmem [resolvable:$true] %s221
          %227 = dma.hbm_to_vmem [thread:$0]  %s220, 2048, %s222, [#allocation9], 128, 128, 8
        $region20: #{tpu_custom_call.1} parent=11 // pred_fallthru
          _
        // Predicated region
        $region21: #{tpu_custom_call.1} parent=11 // pred_check
          %p228 = pneg %p138
        $region22: #{tpu_custom_call.1} parent=11 // pred_check_branch
          %230 = sbr.rel (%p228) target = $region24
        $region23: #{tpu_custom_call.1} parent=11 // pred_region
          %232 = vsyncadd [#allocation9], 0
          %s234 = sshll.u32 %s4, 4
          %s235 = int_to_ptr.hbm [resolvable:$true] %s234
          %s236 = sshll.u32 [#allocation10], 4
          %s237 = int_to_ptr.vmem [resolvable:$true] %s236
          %239 = dma.hbm_to_vmem [thread:$0]  %s235, 144, %s237, [#allocation9]
        $region24: #{tpu_custom_call.1} parent=11 // pred_fallthru
          _
        // Predicated region
        $region25: #{tpu_custom_call.1} parent=11 // pred_check
          %p240 = pneg %p159
        $region26: #{tpu_custom_call.1} parent=11 // pred_check_branch
          %242 = sbr.rel (%p240) target = $region28
        $region27: #{tpu_custom_call.1} parent=11 // pred_region
          %244 = vsyncadd [#allocation12], 0
          %s246 = sshll.u32 %s5, 4
          %s247 = int_to_ptr.hbm [resolvable:$true] %s246
          %s248 = sshll.u32 [#allocation11], 4
          %s249 = int_to_ptr.vmem [resolvable:$true] %s248
          %251 = dma.hbm_to_vmem [thread:$0]  %s247, 144, %s249, [#allocation12]
        $region28: #{tpu_custom_call.1} parent=11 // pred_fallthru
          _
      $region12: #{tpu_custom_call.1} parent=5 // pred_fallthru
        _
      %p252 = scmp.lt.s32.totalorder %s23, 2
      // Predicated region
      $region29: #{tpu_custom_call.1} parent=5 // pred_check
        %p253 = pneg %p252
      $region30: #{tpu_custom_call.1} parent=5 // pred_check_branch
        %255 = sbr.rel (%p253) target = $region32
      $region31: #{tpu_custom_call.1} parent=5 // pred_region
        // Predicated region
        $region33: #{tpu_custom_call.1} parent=31 // pred_check
          %p256 = pneg %p43
        $region34: #{tpu_custom_call.1} parent=31 // pred_check_branch
          %258 = sbr.rel (%p256) target = $region36
        $region35: #{tpu_custom_call.1} parent=31 // pred_region
          %s259 = sand.u32 %s33, 1
          %s260 = scalar_lea.sflag [#allocation3], %s259
          %s261 = sand.u32 %s33, 1
          %s262 = smul.addr %s261, 64
          %s263 = scalar_lea.vmem [#allocation2], %s262
          %265 = vsyncadd %s260, 0
          %s266 = smul.addr %s23, 16
          %s267 = smul.addr %s266, 4
          %s268 = scalar_lea.hbm %s0, %s267
          %s269 = sshll.u32 %s268, 4
          %s270 = int_to_ptr.hbm [resolvable:$true] %s269
          %s271 = sshll.u32 %s263, 4
          %s272 = int_to_ptr.vmem [resolvable:$true] %s271
          %277 = dma.hbm_to_vmem [thread:$0]  %s270, 1024, %s272, %s260, 64, 64, 4
        $region36: #{tpu_custom_call.1} parent=31 // pred_fallthru
          _
        // Predicated region
        $region37: #{tpu_custom_call.1} parent=31 // pred_check
          %p278 = pneg %p69
        $region38: #{tpu_custom_call.1} parent=31 // pred_check_branch
          %280 = sbr.rel (%p278) target = $region40
        $region39: #{tpu_custom_call.1} parent=31 // pred_region
          %s281 = sand.u32 %s23, 1
          %s282 = scalar_lea.sflag [#allocation6], %s281
          %s283 = sand.u32 %s59, 1
          %s284 = smul.addr %s283, 64
          %s285 = scalar_lea.vmem [#allocation5], %s284
          %s286 = smul.u32 16, %s23
          %288 = vsyncadd %s282, 0
          %s289 = smul.addr %s286, 4
          %s290 = scalar_lea.hbm %s1, %s289
          %s291 = sshll.u32 %s290, 4
          %s292 = int_to_ptr.hbm [resolvable:$true] %s291
          %s293 = sshll.u32 %s285, 4
          %s294 = int_to_ptr.vmem [resolvable:$true] %s293
          %299 = dma.hbm_to_vmem [thread:$0]  %s292, 1024, %s294, %s282, 64, 64, 4
        $region40: #{tpu_custom_call.1} parent=31 // pred_fallthru
          _
      $region32: #{tpu_custom_call.1} parent=5 // pred_fallthru
        _
      %p300 = scmp.le.s32.totalorder 1, %s23
      %p301 = scmp.lt.s32.totalorder %s23, 3
      %p302 = pnand %p300, %p301
      %p303 = pneg %p302
      // Predicated region
      $region41: #{tpu_custom_call.1} parent=5 // pred_check
        _
      $region42: #{tpu_custom_call.1} parent=5 // pred_check_branch
        %305 = sbr.rel (%p302) target = $region44
      $region43: #{tpu_custom_call.1} parent=5 // pred_region
        %s306 = ssub.s32 %s23, 1
        %s307 = sand.u32 %s36, 1
        %s308 = scalar_lea.sflag [#allocation3], %s307
        %s309 = sand.u32 %s36, 1
        %s310 = smul.addr %s309, 64
        %s311 = scalar_lea.vmem [#allocation2], %s310
        // Predicated region
        $region45: #{tpu_custom_call.1} parent=43 // pred_check
          %p312 = pneg %p49
        $region46: #{tpu_custom_call.1} parent=43 // pred_check_branch
          %314 = sbr.rel (%p312) target = $region48
        $region47: #{tpu_custom_call.1} parent=43 // pred_region
          %316 = dma.done %s308, 1024
        $region48: #{tpu_custom_call.1} parent=43 // pred_fallthru
          _
        %s317 = sand.u32 %s28, 1
        %s318 = scalar_lea.sflag [#allocation6], %s317
        %s319 = sand.u32 %s62, 1
        %s320 = smul.addr %s319, 64
        %s321 = scalar_lea.vmem [#allocation5], %s320
        // Predicated region
        $region49: #{tpu_custom_call.1} parent=43 // pred_check
          %p322 = pneg %p75
        $region50: #{tpu_custom_call.1} parent=43 // pred_check_branch
          %324 = sbr.rel (%p322) target = $region52
        $region51: #{tpu_custom_call.1} parent=43 // pred_region
          %326 = dma.done %s318, 1024
        $region52: #{tpu_custom_call.1} parent=43 // pred_fallthru
          _
        // Predicated region
        $region53: #{tpu_custom_call.1} parent=43 // pred_check
          %p327 = pneg %p96
        $region54: #{tpu_custom_call.1} parent=43 // pred_check_branch
          %329 = sbr.rel (%p327) target = $region56
        $region55: #{tpu_custom_call.1} parent=43 // pred_region
          %331 = dma.done [#allocation6], 7168
        $region56: #{tpu_custom_call.1} parent=43 // pred_fallthru
          _
        // Predicated region
        $region57: #{tpu_custom_call.1} parent=43 // pred_check
          %p332 = pneg %p117
        $region58: #{tpu_custom_call.1} parent=43 // pred_check_branch
          %334 = sbr.rel (%p332) target = $region60
        $region59: #{tpu_custom_call.1} parent=43 // pred_region
          %336 = dma.done [#allocation9], 2048
        $region60: #{tpu_custom_call.1} parent=43 // pred_fallthru
          _
        // Predicated region
        $region61: #{tpu_custom_call.1} parent=43 // pred_check
          %p337 = pneg %p138
        $region62: #{tpu_custom_call.1} parent=43 // pred_check_branch
          %339 = sbr.rel (%p337) target = $region64
        $region63: #{tpu_custom_call.1} parent=43 // pred_region
          %341 = dma.done [#allocation9], 144
        $region64: #{tpu_custom_call.1} parent=43 // pred_fallthru
          _
        // Predicated region
        $region65: #{tpu_custom_call.1} parent=43 // pred_check
          %p342 = pneg %p159
        $region66: #{tpu_custom_call.1} parent=43 // pred_check_branch
          %344 = sbr.rel (%p342) target = $region68
        $region67: #{tpu_custom_call.1} parent=43 // pred_region
          %346 = dma.done [#allocation12], 144
        $region68: #{tpu_custom_call.1} parent=43 // pred_fallthru
          _
        %s347 = sand.u32 %s36, 1
        %s348 = scalar_lea.sflag [#allocation3], %s347
        %s349 = sand.u32 %s36, 1
        %s350 = smul.addr %s349, 64
        %s351 = scalar_lea.vmem [#allocation2], %s350
        %p352 = pneg %p49
        %p353 = pneg %p46
        %s354 = sand.u32 %s28, 1
        %s355 = scalar_lea.sflag [#allocation6], %s354
        %s356 = sand.u32 %s62, 1
        %s357 = smul.addr %s356, 64
        %s358 = scalar_lea.vmem [#allocation5], %s357
        %p359 = pneg %p75
        %p360 = pneg %p72
        %p361 = pneg %p96
        %p362 = pneg %p93
        %p363 = pneg %p117
        %p364 = pneg %p114
        %p365 = pneg %p138
        %p366 = pneg %p135
        %p367 = pneg %p159
        %p368 = pneg %p156
        %p369 = pneg %p185
        %p370 = pneg %p182
        %s371 = sand.u32 %s172, 1
        %s372 = scalar_lea.sflag [#allocation4], %s371
        %s373 = sand.u32 %s172, 1
        %s374 = smul.addr %s373, 256
        %s375 = scalar_lea.vmem [#allocation13], %s374
        %s376 = smul.u32 16, %s28
        %s377 = smul.u32 16, %s28
        %v378 = vld [vmem:[%s311] sm:$0xf]
        %v379 = vld [vmem:[%s311 + $0x4] sm:$0xf]
        %v380 = vld [vmem:[%s311 + $0x8] sm:$0xf]
        %v381 = vld [vmem:[%s311 + $0xc] sm:$0xf]
        %v382 = vld [vmem:[%s311 + $0x10] sm:$0xf]
        %v383 = vld [vmem:[%s311 + $0x14] sm:$0xf]
        %v384 = vld [vmem:[%s311 + $0x18] sm:$0xf]
        %v385 = vld [vmem:[%s311 + $0x1c] sm:$0xf]
        %v386 = vld [vmem:[%s311 + $0x20] sm:$0xf]
        %v387 = vld [vmem:[%s311 + $0x24] sm:$0xf]
        %v388 = vld [vmem:[%s311 + $0x28] sm:$0xf]
        %v389 = vld [vmem:[%s311 + $0x2c] sm:$0xf]
        %v390 = vld [vmem:[%s311 + $0x30] sm:$0xf]
        %v391 = vld [vmem:[%s311 + $0x34] sm:$0xf]
        %v392 = vld [vmem:[%s311 + $0x38] sm:$0xf]
        %v393 = vld [vmem:[%s311 + $0x3c] sm:$0xf]
        %v394 = vld [vmem:[%s321] sm:$0xf]
        %v395 = vld [vmem:[%s321 + $0x4] sm:$0xf]
        %v396 = vld [vmem:[%s321 + $0x8] sm:$0xf]
        %v397 = vld [vmem:[%s321 + $0xc] sm:$0xf]
        %v398 = vld [vmem:[%s321 + $0x10] sm:$0xf]
        %v399 = vld [vmem:[%s321 + $0x14] sm:$0xf]
        %v400 = vld [vmem:[%s321 + $0x18] sm:$0xf]
        %v401 = vld [vmem:[%s321 + $0x1c] sm:$0xf]
        %v402 = vld [vmem:[%s321 + $0x20] sm:$0xf]
        %v403 = vld [vmem:[%s321 + $0x24] sm:$0xf]
        %v404 = vld [vmem:[%s321 + $0x28] sm:$0xf]
        %v405 = vld [vmem:[%s321 + $0x2c] sm:$0xf]
        %v406 = vld [vmem:[%s321 + $0x30] sm:$0xf]
        %v407 = vld [vmem:[%s321 + $0x34] sm:$0xf]
        %v408 = vld [vmem:[%s321 + $0x38] sm:$0xf]
        %v409 = vld [vmem:[%s321 + $0x3c] sm:$0xf]
        %v410 = vld [vmem:[#allocation7] sm:$0xff]
        %v411 = vld [vmem:[#allocation7 + $0x8] sm:$0xff]
        %v412 = vld [vmem:[#allocation7 + $0x10] sm:$0xff]
        %v413 = vld [vmem:[#allocation7 + $0x18] sm:$0xf]
        %v414 = vld [vmem:[#allocation7 + $0x1c] sm:$0xff]
        %v415 = vld [vmem:[#allocation7 + $0x24] sm:$0xff]
        %v416 = vld [vmem:[#allocation7 + $0x2c] sm:$0xff]
        %v417 = vld [vmem:[#allocation7 + $0x34] sm:$0xf]
        %v418 = vld [vmem:[#allocation7 + $0x38] sm:$0xff]
        %v419 = vld [vmem:[#allocation7 + $0x40] sm:$0xff]
        %v420 = vld [vmem:[#allocation7 + $0x48] sm:$0xff]
        %v421 = vld [vmem:[#allocation7 + $0x50] sm:$0xf]
        %v422 = vld [vmem:[#allocation7 + $0x54] sm:$0xff]
        %v423 = vld [vmem:[#allocation7 + $0x5c] sm:$0xff]
        %v424 = vld [vmem:[#allocation7 + $0x64] sm:$0xff]
        %v425 = vld [vmem:[#allocation7 + $0x6c] sm:$0xf]
        %v426 = vld [vmem:[#allocation7 + $0x70] sm:$0xff]
        %v427 = vld [vmem:[#allocation7 + $0x78] sm:$0xff]
        %v428 = vld [vmem:[#allocation7 + $0x80] sm:$0xff]
        %v429 = vld [vmem:[#allocation7 + $0x88] sm:$0xf]
        %v430 = vld [vmem:[#allocation7 + $0x8c] sm:$0xff]
        %v431 = vld [vmem:[#allocation7 + $0x94] sm:$0xff]
        %v432 = vld [vmem:[#allocation7 + $0x9c] sm:$0xff]
        %v433 = vld [vmem:[#allocation7 + $0xa4] sm:$0xf]
        %v434 = vld [vmem:[#allocation7 + $0xa8] sm:$0xff]
        %v435 = vld [vmem:[#allocation7 + $0xb0] sm:$0xff]
        %v436 = vld [vmem:[#allocation7 + $0xb8] sm:$0xff]
        %v437 = vld [vmem:[#allocation7 + $0xc0] sm:$0xf]
        %v438 = vld [vmem:[#allocation7 + $0xc4] sm:$0xff]
        %v439 = vld [vmem:[#allocation7 + $0xcc] sm:$0xff]
        %v440 = vld [vmem:[#allocation7 + $0xd4] sm:$0xff]
        %v441 = vld [vmem:[#allocation7 + $0xdc] sm:$0xf]
        %v442 = vld [vmem:[#allocation7 + $0xe0] sm:$0xff]
        %v443 = vld [vmem:[#allocation7 + $0xe8] sm:$0xff]
        %v444 = vld [vmem:[#allocation7 + $0xf0] sm:$0xff]
        %v445 = vld [vmem:[#allocation7 + $0xf8] sm:$0xf]
        %v446 = vld [vmem:[#allocation7 + $0xfc] sm:$0xff]
        %v447 = vld [vmem:[#allocation7 + $0x104] sm:$0xff]
        %v448 = vld [vmem:[#allocation7 + $0x10c] sm:$0xff]
        %v449 = vld [vmem:[#allocation7 + $0x114] sm:$0xf]
        %v450 = vld [vmem:[#allocation7 + $0x118] sm:$0xff]
        %v451 = vld [vmem:[#allocation7 + $0x120] sm:$0xff]
        %v452 = vld [vmem:[#allocation7 + $0x128] sm:$0xff]
        %v453 = vld [vmem:[#allocation7 + $0x130] sm:$0xf]
        %v454 = vld [vmem:[#allocation7 + $0x134] sm:$0xff]
        %v455 = vld [vmem:[#allocation7 + $0x13c] sm:$0xff]
        %v456 = vld [vmem:[#allocation7 + $0x144] sm:$0xff]
        %v457 = vld [vmem:[#allocation7 + $0x14c] sm:$0xf]
        %v458 = vld [vmem:[#allocation7 + $0x150] sm:$0xff]
        %v459 = vld [vmem:[#allocation7 + $0x158] sm:$0xff]
        %v460 = vld [vmem:[#allocation7 + $0x160] sm:$0xff]
        %v461 = vld [vmem:[#allocation7 + $0x168] sm:$0xf]
        %v462 = vld [vmem:[#allocation7 + $0x16c] sm:$0xff]
        %v463 = vld [vmem:[#allocation7 + $0x174] sm:$0xff]
        %v464 = vld [vmem:[#allocation7 + $0x17c] sm:$0xff]
        %v465 = vld [vmem:[#allocation7 + $0x184] sm:$0xf]
        %v466 = vld [vmem:[#allocation7 + $0x188] sm:$0xff]
        %v467 = vld [vmem:[#allocation7 + $0x190] sm:$0xff]
        %v468 = vld [vmem:[#allocation7 + $0x198] sm:$0xff]
        %v469 = vld [vmem:[#allocation7 + $0x1a0] sm:$0xf]
        %v470 = vld [vmem:[#allocation7 + $0x1a4] sm:$0xff]
        %v471 = vld [vmem:[#allocation7 + $0x1ac] sm:$0xff]
        %v472 = vld [vmem:[#allocation7 + $0x1b4] sm:$0xff]
        %v473 = vld [vmem:[#allocation7 + $0x1bc] sm:$0xf]
        %v490 = vunpack.c.l.b16 %v394
        %v491 = vunpack.c.l.b16 %v395
        %v492 = vunpack.c.l.b16 %v396
        %v493 = vunpack.c.l.b16 %v397
        %v494 = vunpack.c.l.b16 %v398
        %v495 = vunpack.c.l.b16 %v399
        %v496 = vunpack.c.l.b16 %v400
        %v497 = vunpack.c.l.b16 %v401
        %v498 = vunpack.c.l.b16 %v402
        %v499 = vunpack.c.l.b16 %v403
        %v500 = vunpack.c.l.b16 %v404
        %v501 = vunpack.c.l.b16 %v405
        %v502 = vunpack.c.l.b16 %v406
        %v503 = vunpack.c.l.b16 %v407
        %v504 = vunpack.c.l.b16 %v408
        %v505 = vunpack.c.l.b16 %v409
        %v506 = vpack.c.b16 %v491, %v490
        %v507 = vpack.c.b16 %v493, %v492
        %v508 = vpack.c.b16 %v495, %v494
        %v509 = vpack.c.b16 %v497, %v496
        %v510 = vpack.c.b16 %v499, %v498
        %v511 = vpack.c.b16 %v501, %v500
        %v512 = vpack.c.b16 %v503, %v502
        %v513 = vpack.c.b16 %v505, %v504
        %v586 = vunpack.c.l.b16 %v410
        %v587 = vunpack.c.h.b16 %v410
        %v588 = vunpack.c.l.b16 %v411
        %v589 = vunpack.c.h.b16 %v411
        %v590 = vunpack.c.l.b16 %v412
        %v591 = vunpack.c.h.b16 %v412
        %v592 = vunpack.c.l.b16 %v413
        %v593 = vunpack.c.l.b16 %v414
        %v594 = vunpack.c.h.b16 %v414
        %v595 = vunpack.c.l.b16 %v415
        %v596 = vunpack.c.h.b16 %v415
        %v597 = vunpack.c.l.b16 %v416
        %v598 = vunpack.c.h.b16 %v416
        %v599 = vunpack.c.l.b16 %v417
        %v600 = vunpack.c.l.b16 %v418
        %v601 = vunpack.c.h.b16 %v418
        %v602 = vunpack.c.l.b16 %v419
        %v603 = vunpack.c.h.b16 %v419
        %v604 = vunpack.c.l.b16 %v420
        %v605 = vunpack.c.h.b16 %v420
        %v606 = vunpack.c.l.b16 %v421
        %v607 = vunpack.c.l.b16 %v422
        %v608 = vunpack.c.h.b16 %v422
        %v609 = vunpack.c.l.b16 %v423
        %v610 = vunpack.c.h.b16 %v423
        %v611 = vunpack.c.l.b16 %v424
        %v612 = vunpack.c.h.b16 %v424
        %v613 = vunpack.c.l.b16 %v425
        %v614 = vunpack.c.l.b16 %v426
        %v615 = vunpack.c.h.b16 %v426
        %v616 = vunpack.c.l.b16 %v427
        %v617 = vunpack.c.h.b16 %v427
        %v618 = vunpack.c.l.b16 %v428
        %v619 = vunpack.c.h.b16 %v428
        %v620 = vunpack.c.l.b16 %v429
        %v621 = vunpack.c.l.b16 %v430
        %v622 = vunpack.c.h.b16 %v430
        %v623 = vunpack.c.l.b16 %v431
        %v624 = vunpack.c.h.b16 %v431
        %v625 = vunpack.c.l.b16 %v432
        %v626 = vunpack.c.h.b16 %v432
        %v627 = vunpack.c.l.b16 %v433
        %v628 = vunpack.c.l.b16 %v434
        %v629 = vunpack.c.h.b16 %v434
        %v630 = vunpack.c.l.b16 %v435
        %v631 = vunpack.c.h.b16 %v435
        %v632 = vunpack.c.l.b16 %v436
        %v633 = vunpack.c.h.b16 %v436
        %v634 = vunpack.c.l.b16 %v437
        %v635 = vunpack.c.l.b16 %v438
        %v636 = vunpack.c.h.b16 %v438
        %v637 = vunpack.c.l.b16 %v439
        %v638 = vunpack.c.h.b16 %v439
        %v639 = vunpack.c.l.b16 %v440
        %v640 = vunpack.c.h.b16 %v440
        %v641 = vunpack.c.l.b16 %v441
        %v642 = vunpack.c.l.b16 %v442
        %v643 = vunpack.c.h.b16 %v442
        %v644 = vunpack.c.l.b16 %v443
        %v645 = vunpack.c.h.b16 %v443
        %v646 = vunpack.c.l.b16 %v444
        %v647 = vunpack.c.h.b16 %v444
        %v648 = vunpack.c.l.b16 %v445
        %v649 = vunpack.c.l.b16 %v446
        %v650 = vunpack.c.h.b16 %v446
        %v651 = vunpack.c.l.b16 %v447
        %v652 = vunpack.c.h.b16 %v447
        %v653 = vunpack.c.l.b16 %v448
        %v654 = vunpack.c.h.b16 %v448
        %v655 = vunpack.c.l.b16 %v449
        %v656 = vunpack.c.l.b16 %v450
        %v657 = vunpack.c.h.b16 %v450
        %v658 = vunpack.c.l.b16 %v451
        %v659 = vunpack.c.h.b16 %v451
        %v660 = vunpack.c.l.b16 %v452
        %v661 = vunpack.c.h.b16 %v452
        %v662 = vunpack.c.l.b16 %v453
        %v663 = vunpack.c.l.b16 %v454
        %v664 = vunpack.c.h.b16 %v454
        %v665 = vunpack.c.l.b16 %v455
        %v666 = vunpack.c.h.b16 %v455
        %v667 = vunpack.c.l.b16 %v456
        %v668 = vunpack.c.h.b16 %v456
        %v669 = vunpack.c.l.b16 %v457
        %v670 = vunpack.c.l.b16 %v458
        %v671 = vunpack.c.h.b16 %v458
        %v672 = vunpack.c.l.b16 %v459
        %v673 = vunpack.c.h.b16 %v459
        %v674 = vunpack.c.l.b16 %v460
        %v675 = vunpack.c.h.b16 %v460
        %v676 = vunpack.c.l.b16 %v461
        %v677 = vunpack.c.l.b16 %v462
        %v678 = vunpack.c.h.b16 %v462
        %v679 = vunpack.c.l.b16 %v463
        %v680 = vunpack.c.h.b16 %v463
        %v681 = vunpack.c.l.b16 %v464
        %v682 = vunpack.c.h.b16 %v464
        %v683 = vunpack.c.l.b16 %v465
        %v684 = vunpack.c.l.b16 %v466
        %v685 = vunpack.c.h.b16 %v466
        %v686 = vunpack.c.l.b16 %v467
        %v687 = vunpack.c.h.b16 %v467
        %v688 = vunpack.c.l.b16 %v468
        %v689 = vunpack.c.h.b16 %v468
        %v690 = vunpack.c.l.b16 %v469
        %v691 = vunpack.c.l.b16 %v470
        %v692 = vunpack.c.h.b16 %v470
        %v693 = vunpack.c.l.b16 %v471
        %v694 = vunpack.c.h.b16 %v471
        %v695 = vunpack.c.l.b16 %v472
        %v696 = vunpack.c.h.b16 %v472
        %v697 = vunpack.c.l.b16 %v473
        %v698 = vpack.c.b16 %v593, %v586
        %v699 = vpack.c.b16 %v594, %v587
        %v700 = vpack.c.b16 %v595, %v588
        %v701 = vpack.c.b16 %v596, %v589
        %v702 = vpack.c.b16 %v597, %v590
        %v703 = vpack.c.b16 %v598, %v591
        %v704 = vpack.c.b16 %v599, %v592
        %v705 = vpack.c.b16 %v607, %v600
        %v706 = vpack.c.b16 %v608, %v601
        %v707 = vpack.c.b16 %v609, %v602
        %v708 = vpack.c.b16 %v610, %v603
        %v709 = vpack.c.b16 %v611, %v604
        %v710 = vpack.c.b16 %v612, %v605
        %v711 = vpack.c.b16 %v613, %v606
        %v712 = vpack.c.b16 %v621, %v614
        %v713 = vpack.c.b16 %v622, %v615
        %v714 = vpack.c.b16 %v623, %v616
        %v715 = vpack.c.b16 %v624, %v617
        %v716 = vpack.c.b16 %v625, %v618
        %v717 = vpack.c.b16 %v626, %v619
        %v718 = vpack.c.b16 %v627, %v620
        %v719 = vpack.c.b16 %v635, %v628
        %v720 = vpack.c.b16 %v636, %v629
        %v721 = vpack.c.b16 %v637, %v630
        %v722 = vpack.c.b16 %v638, %v631
        %v723 = vpack.c.b16 %v639, %v632
        %v724 = vpack.c.b16 %v640, %v633
        %v725 = vpack.c.b16 %v641, %v634
        %v726 = vpack.c.b16 %v649, %v642
        %v727 = vpack.c.b16 %v650, %v643
        %v728 = vpack.c.b16 %v651, %v644
        %v729 = vpack.c.b16 %v652, %v645
        %v730 = vpack.c.b16 %v653, %v646
        %v731 = vpack.c.b16 %v654, %v647
        %v732 = vpack.c.b16 %v655, %v648
        %v733 = vpack.c.b16 %v663, %v656
        %v734 = vpack.c.b16 %v664, %v657
        %v735 = vpack.c.b16 %v665, %v658
        %v736 = vpack.c.b16 %v666, %v659
        %v737 = vpack.c.b16 %v667, %v660
        %v738 = vpack.c.b16 %v668, %v661
        %v739 = vpack.c.b16 %v669, %v662
        %v740 = vpack.c.b16 %v677, %v670
        %v741 = vpack.c.b16 %v678, %v671
        %v742 = vpack.c.b16 %v679, %v672
        %v743 = vpack.c.b16 %v680, %v673
        %v744 = vpack.c.b16 %v681, %v674
        %v745 = vpack.c.b16 %v682, %v675
        %v746 = vpack.c.b16 %v683, %v676
        %v747 = vpack.c.b16 %v691, %v684
        %v748 = vpack.c.b16 %v692, %v685
        %v749 = vpack.c.b16 %v693, %v686
        %v750 = vpack.c.b16 %v694, %v687
        %v751 = vpack.c.b16 %v695, %v688
        %v752 = vpack.c.b16 %v696, %v689
        %v753 = vpack.c.b16 %v697, %v690
        %810 = vmatpush.bf16.msra.mxu0 %v747
        %811 = vmatpush.bf16.msra.mxu0 %v740
        %812 = vmatpush.bf16.msra.mxu0 %v733
        %813 = vmatpush.bf16.msra.mxu0 %v726
        %814 = vmatpush.bf16.msra.mxu0 %v719
        %815 = vmatpush.bf16.msra.mxu0 %v712
        %816 = vmatpush.bf16.msra.mxu0 %v705
        %817 = vmatpush.bf16.msra.mxu0 %v698
        %818 = vmatmul.bf16.gmra.mxu0 %v506
        %v819 = vpop.f32.mrf.mxu0
        %v820 = vadd.f32 0.0, %v819
        %v821 = vpop.f32.mrf.mxu0
        %v822 = vadd.f32 0.0, %v821
        %823 = vmatmul.bf16.gmra.mxu0 %v507
        %v824 = vpop.f32.mrf.mxu0
        %v825 = vadd.f32 0.0, %v824
        %v826 = vpop.f32.mrf.mxu0
        %v827 = vadd.f32 0.0, %v826
        %828 = vmatmul.bf16.gmra.mxu0 %v508
        %v829 = vpop.f32.mrf.mxu0
        %v830 = vadd.f32 0.0, %v829
        %v831 = vpop.f32.mrf.mxu0
        %v832 = vadd.f32 0.0, %v831
        %833 = vmatmul.bf16.gmra.mxu0 %v509
        %v834 = vpop.f32.mrf.mxu0
        %v835 = vadd.f32 0.0, %v834
        %v836 = vpop.f32.mrf.mxu0
        %v837 = vadd.f32 0.0, %v836
        %838 = vmatmul.bf16.gmra.mxu0 %v510
        %v839 = vpop.f32.mrf.mxu0
        %v840 = vadd.f32 0.0, %v839
        %v841 = vpop.f32.mrf.mxu0
        %v842 = vadd.f32 0.0, %v841
        %843 = vmatmul.bf16.gmra.mxu0 %v511
        %v844 = vpop.f32.mrf.mxu0
        %v845 = vadd.f32 0.0, %v844
        %v846 = vpop.f32.mrf.mxu0
        %v847 = vadd.f32 0.0, %v846
        %848 = vmatmul.bf16.gmra.mxu0 %v512
        %v849 = vpop.f32.mrf.mxu0
        %v850 = vadd.f32 0.0, %v849
        %v851 = vpop.f32.mrf.mxu0
        %v852 = vadd.f32 0.0, %v851
        %853 = vmatmul.bf16.gmra.mxu0 %v513
        %v854 = vpop.f32.mrf.mxu0
        %v855 = vadd.f32 0.0, %v854
        %v856 = vpop.f32.mrf.mxu0
        %v857 = vadd.f32 0.0, %v856
        %858 = vdwg.mxu0
        %859 = vmatpush.bf16.msra.mxu0 %v748
        %860 = vmatpush.bf16.msra.mxu0 %v741
        %861 = vmatpush.bf16.msra.mxu0 %v734
        %862 = vmatpush.bf16.msra.mxu0 %v727
        %863 = vmatpush.bf16.msra.mxu0 %v720
        %864 = vmatpush.bf16.msra.mxu0 %v713
        %865 = vmatpush.bf16.msra.mxu0 %v706
        %866 = vmatpush.bf16.msra.mxu0 %v699
        %867 = vmatmul.bf16.gmra.mxu0 %v506
        %v868 = vpop.f32.mrf.mxu0
        %v869 = vadd.f32 0.0, %v868
        %v870 = vpop.f32.mrf.mxu0
        %v871 = vadd.f32 0.0, %v870
        %872 = vmatmul.bf16.gmra.mxu0 %v507
        %v873 = vpop.f32.mrf.mxu0
        %v874 = vadd.f32 0.0, %v873
        %v875 = vpop.f32.mrf.mxu0
        %v876 = vadd.f32 0.0, %v875
        %877 = vmatmul.bf16.gmra.mxu0 %v508
        %v878 = vpop.f32.mrf.mxu0
        %v879 = vadd.f32 0.0, %v878
        %v880 = vpop.f32.mrf.mxu0
        %v881 = vadd.f32 0.0, %v880
        %882 = vmatmul.bf16.gmra.mxu0 %v509
        %v883 = vpop.f32.mrf.mxu0
        %v884 = vadd.f32 0.0, %v883
        %v885 = vpop.f32.mrf.mxu0
        %v886 = vadd.f32 0.0, %v885
        %887 = vmatmul.bf16.gmra.mxu0 %v510
        %v888 = vpop.f32.mrf.mxu0
        %v889 = vadd.f32 0.0, %v888
        %v890 = vpop.f32.mrf.mxu0
        %v891 = vadd.f32 0.0, %v890
        %892 = vmatmul.bf16.gmra.mxu0 %v511
        %v893 = vpop.f32.mrf.mxu0
        %v894 = vadd.f32 0.0, %v893
        %v895 = vpop.f32.mrf.mxu0
        %v896 = vadd.f32 0.0, %v895
        %897 = vmatmul.bf16.gmra.mxu0 %v512
        %v898 = vpop.f32.mrf.mxu0
        %v899 = vadd.f32 0.0, %v898
        %v900 = vpop.f32.mrf.mxu0
        %v901 = vadd.f32 0.0, %v900
        %902 = vmatmul.bf16.gmra.mxu0 %v513
        %v903 = vpop.f32.mrf.mxu0
        %v904 = vadd.f32 0.0, %v903
        %v905 = vpop.f32.mrf.mxu0
        %v906 = vadd.f32 0.0, %v905
        %907 = vdwg.mxu0
        %908 = vmatpush.bf16.msra.mxu0 %v749
        %909 = vmatpush.bf16.msra.mxu0 %v742
        %910 = vmatpush.bf16.msra.mxu0 %v735
        %911 = vmatpush.bf16.msra.mxu0 %v728
        %912 = vmatpush.bf16.msra.mxu0 %v721
        %913 = vmatpush.bf16.msra.mxu0 %v714
        %914 = vmatpush.bf16.msra.mxu0 %v707
        %915 = vmatpush.bf16.msra.mxu0 %v700
        %916 = vmatmul.bf16.gmra.mxu0 %v506
        %v917 = vpop.f32.mrf.mxu0
        %v918 = vadd.f32 0.0, %v917
        %v919 = vpop.f32.mrf.mxu0
        %v920 = vadd.f32 0.0, %v919
        %921 = vmatmul.bf16.gmra.mxu0 %v507
        %v922 = vpop.f32.mrf.mxu0
        %v923 = vadd.f32 0.0, %v922
        %v924 = vpop.f32.mrf.mxu0
        %v925 = vadd.f32 0.0, %v924
        %926 = vmatmul.bf16.gmra.mxu0 %v508
        %v927 = vpop.f32.mrf.mxu0
        %v928 = vadd.f32 0.0, %v927
        %v929 = vpop.f32.mrf.mxu0
        %v930 = vadd.f32 0.0, %v929
        %931 = vmatmul.bf16.gmra.mxu0 %v509
        %v932 = vpop.f32.mrf.mxu0
        %v933 = vadd.f32 0.0, %v932
        %v934 = vpop.f32.mrf.mxu0
        %v935 = vadd.f32 0.0, %v934
        %936 = vmatmul.bf16.gmra.mxu0 %v510
        %v937 = vpop.f32.mrf.mxu0
        %v938 = vadd.f32 0.0, %v937
        %v939 = vpop.f32.mrf.mxu0
        %v940 = vadd.f32 0.0, %v939
        %941 = vmatmul.bf16.gmra.mxu0 %v511
        %v942 = vpop.f32.mrf.mxu0
        %v943 = vadd.f32 0.0, %v942
        %v944 = vpop.f32.mrf.mxu0
        %v945 = vadd.f32 0.0, %v944
        %946 = vmatmul.bf16.gmra.mxu0 %v512
        %v947 = vpop.f32.mrf.mxu0
        %v948 = vadd.f32 0.0, %v947
        %v949 = vpop.f32.mrf.mxu0
        %v950 = vadd.f32 0.0, %v949
        %951 = vmatmul.bf16.gmra.mxu0 %v513
        %v952 = vpop.f32.mrf.mxu0
        %v953 = vadd.f32 0.0, %v952
        %v954 = vpop.f32.mrf.mxu0
        %v955 = vadd.f32 0.0, %v954
        %956 = vdwg.mxu0
        %957 = vmatpush.bf16.msra.mxu0 %v750
        %958 = vmatpush.bf16.msra.mxu0 %v743
        %959 = vmatpush.bf16.msra.mxu0 %v736
        %960 = vmatpush.bf16.msra.mxu0 %v729
        %961 = vmatpush.bf16.msra.mxu0 %v722
        %962 = vmatpush.bf16.msra.mxu0 %v715
        %963 = vmatpush.bf16.msra.mxu0 %v708
        %964 = vmatpush.bf16.msra.mxu0 %v701
        %965 = vmatmul.bf16.gmra.mxu0 %v506
        %v966 = vpop.f32.mrf.mxu0
        %v967 = vadd.f32 0.0, %v966
        %v968 = vpop.f32.mrf.mxu0
        %v969 = vadd.f32 0.0, %v968
        %970 = vmatmul.bf16.gmra.mxu0 %v507
        %v971 = vpop.f32.mrf.mxu0
        %v972 = vadd.f32 0.0, %v971
        %v973 = vpop.f32.mrf.mxu0
        %v974 = vadd.f32 0.0, %v973
        %975 = vmatmul.bf16.gmra.mxu0 %v508
        %v976 = vpop.f32.mrf.mxu0
        %v977 = vadd.f32 0.0, %v976
        %v978 = vpop.f32.mrf.mxu0
        %v979 = vadd.f32 0.0, %v978
        %980 = vmatmul.bf16.gmra.mxu0 %v509
        %v981 = vpop.f32.mrf.mxu0
        %v982 = vadd.f32 0.0, %v981
        %v983 = vpop.f32.mrf.mxu0
        %v984 = vadd.f32 0.0, %v983
        %985 = vmatmul.bf16.gmra.mxu0 %v510
        %v986 = vpop.f32.mrf.mxu0
        %v987 = vadd.f32 0.0, %v986
        %v988 = vpop.f32.mrf.mxu0
        %v989 = vadd.f32 0.0, %v988
        %990 = vmatmul.bf16.gmra.mxu0 %v511
        %v991 = vpop.f32.mrf.mxu0
        %v992 = vadd.f32 0.0, %v991
        %v993 = vpop.f32.mrf.mxu0
        %v994 = vadd.f32 0.0, %v993
        %995 = vmatmul.bf16.gmra.mxu0 %v512
        %v996 = vpop.f32.mrf.mxu0
        %v997 = vadd.f32 0.0, %v996
        %v998 = vpop.f32.mrf.mxu0
        %v999 = vadd.f32 0.0, %v998
        %1000 = vmatmul.bf16.gmra.mxu0 %v513
        %v1001 = vpop.f32.mrf.mxu0
        %v1002 = vadd.f32 0.0, %v1001
        %v1003 = vpop.f32.mrf.mxu0
        %v1004 = vadd.f32 0.0, %v1003
        %1005 = vdwg.mxu0
        %1006 = vmatpush.bf16.msra.mxu0 %v751
        %1007 = vmatpush.bf16.msra.mxu0 %v744
        %1008 = vmatpush.bf16.msra.mxu0 %v737
        %1009 = vmatpush.bf16.msra.mxu0 %v730
        %1010 = vmatpush.bf16.msra.mxu0 %v723
        %1011 = vmatpush.bf16.msra.mxu0 %v716
        %1012 = vmatpush.bf16.msra.mxu0 %v709
        %1013 = vmatpush.bf16.msra.mxu0 %v702
        %1014 = vmatmul.bf16.gmra.mxu0 %v506
        %v1015 = vpop.f32.mrf.mxu0
        %v1016 = vadd.f32 0.0, %v1015
        %v1017 = vpop.f32.mrf.mxu0
        %v1018 = vadd.f32 0.0, %v1017
        %1019 = vmatmul.bf16.gmra.mxu0 %v507
        %v1020 = vpop.f32.mrf.mxu0
        %v1021 = vadd.f32 0.0, %v1020
        %v1022 = vpop.f32.mrf.mxu0
        %v1023 = vadd.f32 0.0, %v1022
        %1024 = vmatmul.bf16.gmra.mxu0 %v508
        %v1025 = vpop.f32.mrf.mxu0
        %v1026 = vadd.f32 0.0, %v1025
        %v1027 = vpop.f32.mrf.mxu0
        %v1028 = vadd.f32 0.0, %v1027
        %1029 = vmatmul.bf16.gmra.mxu0 %v509
        %v1030 = vpop.f32.mrf.mxu0
        %v1031 = vadd.f32 0.0, %v1030
        %v1032 = vpop.f32.mrf.mxu0
        %v1033 = vadd.f32 0.0, %v1032
        %1034 = vmatmul.bf16.gmra.mxu0 %v510
        %v1035 = vpop.f32.mrf.mxu0
        %v1036 = vadd.f32 0.0, %v1035
        %v1037 = vpop.f32.mrf.mxu0
        %v1038 = vadd.f32 0.0, %v1037
        %1039 = vmatmul.bf16.gmra.mxu0 %v511
        %v1040 = vpop.f32.mrf.mxu0
        %v1041 = vadd.f32 0.0, %v1040
        %v1042 = vpop.f32.mrf.mxu0
        %v1043 = vadd.f32 0.0, %v1042
        %1044 = vmatmul.bf16.gmra.mxu0 %v512
        %v1045 = vpop.f32.mrf.mxu0
        %v1046 = vadd.f32 0.0, %v1045
        %v1047 = vpop.f32.mrf.mxu0
        %v1048 = vadd.f32 0.0, %v1047
        %1049 = vmatmul.bf16.gmra.mxu0 %v513
        %v1050 = vpop.f32.mrf.mxu0
        %v1051 = vadd.f32 0.0, %v1050
        %v1052 = vpop.f32.mrf.mxu0
        %v1053 = vadd.f32 0.0, %v1052
        %1054 = vdwg.mxu0
        %1055 = vmatpush.bf16.msra.mxu0 %v752
        %1056 = vmatpush.bf16.msra.mxu0 %v745
        %1057 = vmatpush.bf16.msra.mxu0 %v738
        %1058 = vmatpush.bf16.msra.mxu0 %v731
        %1059 = vmatpush.bf16.msra.mxu0 %v724
        %1060 = vmatpush.bf16.msra.mxu0 %v717
        %1061 = vmatpush.bf16.msra.mxu0 %v710
        %1062 = vmatpush.bf16.msra.mxu0 %v703
        %1063 = vmatmul.bf16.gmra.mxu0 %v506
        %v1064 = vpop.f32.mrf.mxu0
        %v1065 = vadd.f32 0.0, %v1064
        %v1066 = vpop.f32.mrf.mxu0
        %v1067 = vadd.f32 0.0, %v1066
        %1068 = vmatmul.bf16.gmra.mxu0 %v507
        %v1069 = vpop.f32.mrf.mxu0
        %v1070 = vadd.f32 0.0, %v1069
        %v1071 = vpop.f32.mrf.mxu0
        %v1072 = vadd.f32 0.0, %v1071
        %1073 = vmatmul.bf16.gmra.mxu0 %v508
        %v1074 = vpop.f32.mrf.mxu0
        %v1075 = vadd.f32 0.0, %v1074
        %v1076 = vpop.f32.mrf.mxu0
        %v1077 = vadd.f32 0.0, %v1076
        %1078 = vmatmul.bf16.gmra.mxu0 %v509
        %v1079 = vpop.f32.mrf.mxu0
        %v1080 = vadd.f32 0.0, %v1079
        %v1081 = vpop.f32.mrf.mxu0
        %v1082 = vadd.f32 0.0, %v1081
        %1083 = vmatmul.bf16.gmra.mxu0 %v510
        %v1084 = vpop.f32.mrf.mxu0
        %v1085 = vadd.f32 0.0, %v1084
        %v1086 = vpop.f32.mrf.mxu0
        %v1087 = vadd.f32 0.0, %v1086
        %1088 = vmatmul.bf16.gmra.mxu0 %v511
        %v1089 = vpop.f32.mrf.mxu0
        %v1090 = vadd.f32 0.0, %v1089
        %v1091 = vpop.f32.mrf.mxu0
        %v1092 = vadd.f32 0.0, %v1091
        %1093 = vmatmul.bf16.gmra.mxu0 %v512
        %v1094 = vpop.f32.mrf.mxu0
        %v1095 = vadd.f32 0.0, %v1094
        %v1096 = vpop.f32.mrf.mxu0
        %v1097 = vadd.f32 0.0, %v1096
        %1098 = vmatmul.bf16.gmra.mxu0 %v513
        %v1099 = vpop.f32.mrf.mxu0
        %v1100 = vadd.f32 0.0, %v1099
        %v1101 = vpop.f32.mrf.mxu0
        %v1102 = vadd.f32 0.0, %v1101
        %1103 = vdwg.mxu0
        %1104 = vmatpush.bf16.msra.mxu0 %v753
        %1105 = vmatpush.bf16.msra.mxu0 %v746
        %1106 = vmatpush.bf16.msra.mxu0 %v739
        %1107 = vmatpush.bf16.msra.mxu0 %v732
        %1108 = vmatpush.bf16.msra.mxu0 %v725
        %1109 = vmatpush.bf16.msra.mxu0 %v718
        %1110 = vmatpush.bf16.msra.mxu0 %v711
        %1111 = vmatpush.bf16.msra.mxu0 %v704
        %1112 = vmatmul.bf16.gmra.mxu0 %v506
        %v1113 = vpop.f32.mrf.mxu0
        %v1114 = vadd.f32 0.0, %v1113
        %v1115 = vpop.f32.mrf.mxu0
        %v1116 = vadd.f32 0.0, %v1115
        %1117 = vmatmul.bf16.gmra.mxu0 %v507
        %v1118 = vpop.f32.mrf.mxu0
        %v1119 = vadd.f32 0.0, %v1118
        %v1120 = vpop.f32.mrf.mxu0
        %v1121 = vadd.f32 0.0, %v1120
        %1122 = vmatmul.bf16.gmra.mxu0 %v508
        %v1123 = vpop.f32.mrf.mxu0
        %v1124 = vadd.f32 0.0, %v1123
        %v1125 = vpop.f32.mrf.mxu0
        %v1126 = vadd.f32 0.0, %v1125
        %1127 = vmatmul.bf16.gmra.mxu0 %v509
        %v1128 = vpop.f32.mrf.mxu0
        %v1129 = vadd.f32 0.0, %v1128
        %v1130 = vpop.f32.mrf.mxu0
        %v1131 = vadd.f32 0.0, %v1130
        %1132 = vmatmul.bf16.gmra.mxu0 %v510
        %v1133 = vpop.f32.mrf.mxu0
        %v1134 = vadd.f32 0.0, %v1133
        %v1135 = vpop.f32.mrf.mxu0
        %v1136 = vadd.f32 0.0, %v1135
        %1137 = vmatmul.bf16.gmra.mxu0 %v511
        %v1138 = vpop.f32.mrf.mxu0
        %v1139 = vadd.f32 0.0, %v1138
        %v1140 = vpop.f32.mrf.mxu0
        %v1141 = vadd.f32 0.0, %v1140
        %1142 = vmatmul.bf16.gmra.mxu0 %v512
        %v1143 = vpop.f32.mrf.mxu0
        %v1144 = vadd.f32 0.0, %v1143
        %v1145 = vpop.f32.mrf.mxu0
        %v1146 = vadd.f32 0.0, %v1145
        %1147 = vmatmul.bf16.gmra.mxu0 %v513
        %v1148 = vpop.f32.mrf.mxu0
        %v1149 = vadd.f32 0.0, %v1148
        %v1150 = vpop.f32.mrf.mxu0
        %v1151 = vadd.f32 0.0, %v1150
        %1152 = vdwg.mxu0
        %v1153 = vpack.c.bf16 %v822, %v820
        %v1154 = vpack.c.bf16 %v871, %v869
        %v1155 = vpack.c.bf16 %v827, %v825
        %v1156 = vpack.c.bf16 %v876, %v874
        %v1157 = vpack.c.bf16 %v832, %v830
        %v1158 = vpack.c.bf16 %v881, %v879
        %v1159 = vpack.c.bf16 %v837, %v835
        %v1160 = vpack.c.bf16 %v886, %v884
        %v1161 = vpack.c.bf16 %v842, %v840
        %v1162 = vpack.c.bf16 %v891, %v889
        %v1163 = vpack.c.bf16 %v847, %v845
        %v1164 = vpack.c.bf16 %v896, %v894
        %v1165 = vpack.c.bf16 %v852, %v850
        %v1166 = vpack.c.bf16 %v901, %v899
        %v1167 = vpack.c.bf16 %v857, %v855
        %v1168 = vpack.c.bf16 %v906, %v904
        %v1185 = vunpack.c.l.b16 %v378
        %v1186 = vunpack.c.l.b16 %v379
        %v1187 = vunpack.c.l.b16 %v380
        %v1188 = vunpack.c.l.b16 %v381
        %v1189 = vunpack.c.l.b16 %v382
        %v1190 = vunpack.c.l.b16 %v383
        %v1191 = vunpack.c.l.b16 %v384
        %v1192 = vunpack.c.l.b16 %v385
        %v1193 = vunpack.c.l.b16 %v386
        %v1194 = vunpack.c.l.b16 %v387
        %v1195 = vunpack.c.l.b16 %v388
        %v1196 = vunpack.c.l.b16 %v389
        %v1197 = vunpack.c.l.b16 %v390
        %v1198 = vunpack.c.l.b16 %v391
        %v1199 = vunpack.c.l.b16 %v392
        %v1200 = vunpack.c.l.b16 %v393
        %v1201 = vpack.c.b16 %v1186, %v1185
        %v1202 = vpack.c.b16 %v1188, %v1187
        %v1203 = vpack.c.b16 %v1190, %v1189
        %v1204 = vpack.c.b16 %v1192, %v1191
        %v1205 = vpack.c.b16 %v1194, %v1193
        %v1206 = vpack.c.b16 %v1196, %v1195
        %v1207 = vpack.c.b16 %v1198, %v1197
        %v1208 = vpack.c.b16 %v1200, %v1199
        %1217 = vmatpush.bf16.msra.mxu0 %v1167
        %1218 = vmatpush.bf16.msra.mxu0 %v1165
        %1219 = vmatpush.bf16.msra.mxu0 %v1163
        %1220 = vmatpush.bf16.msra.mxu0 %v1161
        %1221 = vmatpush.bf16.msra.mxu0 %v1159
        %1222 = vmatpush.bf16.msra.mxu0 %v1157
        %1223 = vmatpush.bf16.msra.mxu0 %v1155
        %1224 = vmatpush.bf16.msra.mxu0 %v1153
        %1225 = vmatmul.bf16.gmra.mxu0 %v1201
        %v1226 = vpop.f32.mrf.mxu0
        %v1227 = vadd.f32 0.0, %v1226
        %v1228 = vpop.f32.mrf.mxu0
        %v1229 = vadd.f32 0.0, %v1228
        %1230 = vmatmul.bf16.gmra.mxu0 %v1202
        %v1231 = vpop.f32.mrf.mxu0
        %v1232 = vadd.f32 0.0, %v1231
        %v1233 = vpop.f32.mrf.mxu0
        %v1234 = vadd.f32 0.0, %v1233
        %1235 = vmatmul.bf16.gmra.mxu0 %v1203
        %v1236 = vpop.f32.mrf.mxu0
        %v1237 = vadd.f32 0.0, %v1236
        %v1238 = vpop.f32.mrf.mxu0
        %v1239 = vadd.f32 0.0, %v1238
        %1240 = vmatmul.bf16.gmra.mxu0 %v1204
        %v1241 = vpop.f32.mrf.mxu0
        %v1242 = vadd.f32 0.0, %v1241
        %v1243 = vpop.f32.mrf.mxu0
        %v1244 = vadd.f32 0.0, %v1243
        %1245 = vmatmul.bf16.gmra.mxu0 %v1205
        %v1246 = vpop.f32.mrf.mxu0
        %v1247 = vadd.f32 0.0, %v1246
        %v1248 = vpop.f32.mrf.mxu0
        %v1249 = vadd.f32 0.0, %v1248
        %1250 = vmatmul.bf16.gmra.mxu0 %v1206
        %v1251 = vpop.f32.mrf.mxu0
        %v1252 = vadd.f32 0.0, %v1251
        %v1253 = vpop.f32.mrf.mxu0
        %v1254 = vadd.f32 0.0, %v1253
        %1255 = vmatmul.bf16.gmra.mxu0 %v1207
        %v1256 = vpop.f32.mrf.mxu0
        %v1257 = vadd.f32 0.0, %v1256
        %v1258 = vpop.f32.mrf.mxu0
        %v1259 = vadd.f32 0.0, %v1258
        %1260 = vmatmul.bf16.gmra.mxu0 %v1208
        %v1261 = vpop.f32.mrf.mxu0
        %v1262 = vadd.f32 0.0, %v1261
        %v1263 = vpop.f32.mrf.mxu0
        %v1264 = vadd.f32 0.0, %v1263
        %1265 = vdwg.mxu0
        %1266 = vmatpush.bf16.msra.mxu0 %v1168
        %1267 = vmatpush.bf16.msra.mxu0 %v1166
        %1268 = vmatpush.bf16.msra.mxu0 %v1164
        %1269 = vmatpush.bf16.msra.mxu0 %v1162
        %1270 = vmatpush.bf16.msra.mxu0 %v1160
        %1271 = vmatpush.bf16.msra.mxu0 %v1158
        %1272 = vmatpush.bf16.msra.mxu0 %v1156
        %1273 = vmatpush.bf16.msra.mxu0 %v1154
        %1274 = vmatmul.bf16.gmra.mxu0 %v1201
        %v1275 = vpop.f32.mrf.mxu0
        %v1276 = vadd.f32 0.0, %v1275
        %v1277 = vpop.f32.mrf.mxu0
        %v1278 = vadd.f32 0.0, %v1277
        %1279 = vmatmul.bf16.gmra.mxu0 %v1202
        %v1280 = vpop.f32.mrf.mxu0
        %v1281 = vadd.f32 0.0, %v1280
        %v1282 = vpop.f32.mrf.mxu0
        %v1283 = vadd.f32 0.0, %v1282
        %1284 = vmatmul.bf16.gmra.mxu0 %v1203
        %v1285 = vpop.f32.mrf.mxu0
        %v1286 = vadd.f32 0.0, %v1285
        %v1287 = vpop.f32.mrf.mxu0
        %v1288 = vadd.f32 0.0, %v1287
        %1289 = vmatmul.bf16.gmra.mxu0 %v1204
        %v1290 = vpop.f32.mrf.mxu0
        %v1291 = vadd.f32 0.0, %v1290
        %v1292 = vpop.f32.mrf.mxu0
        %v1293 = vadd.f32 0.0, %v1292
        %1294 = vmatmul.bf16.gmra.mxu0 %v1205
        %v1295 = vpop.f32.mrf.mxu0
        %v1296 = vadd.f32 0.0, %v1295
        %v1297 = vpop.f32.mrf.mxu0
        %v1298 = vadd.f32 0.0, %v1297
        %1299 = vmatmul.bf16.gmra.mxu0 %v1206
        %v1300 = vpop.f32.mrf.mxu0
        %v1301 = vadd.f32 0.0, %v1300
        %v1302 = vpop.f32.mrf.mxu0
        %v1303 = vadd.f32 0.0, %v1302
        %1304 = vmatmul.bf16.gmra.mxu0 %v1207
        %v1305 = vpop.f32.mrf.mxu0
        %v1306 = vadd.f32 0.0, %v1305
        %v1307 = vpop.f32.mrf.mxu0
        %v1308 = vadd.f32 0.0, %v1307
        %1309 = vmatmul.bf16.gmra.mxu0 %v1208
        %v1310 = vpop.f32.mrf.mxu0
        %v1311 = vadd.f32 0.0, %v1310
        %v1312 = vpop.f32.mrf.mxu0
        %v1313 = vadd.f32 0.0, %v1312
        %1314 = vdwg.mxu0
        %v1315 = vrot.slane %v1227, 4
        %v1316 = vadd.f32 %v1227, %v1315
        %v1317 = vrot.slane %v1316, 2
        %v1318 = vadd.f32 %v1316, %v1317
        %v1319 = vrot.slane %v1318, 1
        %v1320 = vadd.f32 %v1318, %v1319
        %v1321 = vrot.slane %v1276, 4
        %v1322 = vadd.f32 %v1276, %v1321
        %v1323 = vrot.slane %v1322, 2
        %v1324 = vadd.f32 %v1322, %v1323
        %v1325 = vrot.slane %v1324, 1
        %v1326 = vadd.f32 %v1324, %v1325
        %v1327 = vrot.slane %v1229, 4
        %v1328 = vadd.f32 %v1229, %v1327
        %v1329 = vrot.slane %v1328, 2
        %v1330 = vadd.f32 %v1328, %v1329
        %v1331 = vrot.slane %v1330, 1
        %v1332 = vadd.f32 %v1330, %v1331
        %v1333 = vrot.slane %v1278, 4
        %v1334 = vadd.f32 %v1278, %v1333
        %v1335 = vrot.slane %v1334, 2
        %v1336 = vadd.f32 %v1334, %v1335
        %v1337 = vrot.slane %v1336, 1
        %v1338 = vadd.f32 %v1336, %v1337
        %v1339 = vrot.slane %v1232, 4
        %v1340 = vadd.f32 %v1232, %v1339
        %v1341 = vrot.slane %v1340, 2
        %v1342 = vadd.f32 %v1340, %v1341
        %v1343 = vrot.slane %v1342, 1
        %v1344 = vadd.f32 %v1342, %v1343
        %v1345 = vrot.slane %v1281, 4
        %v1346 = vadd.f32 %v1281, %v1345
        %v1347 = vrot.slane %v1346, 2
        %v1348 = vadd.f32 %v1346, %v1347
        %v1349 = vrot.slane %v1348, 1
        %v1350 = vadd.f32 %v1348, %v1349
        %v1351 = vrot.slane %v1234, 4
        %v1352 = vadd.f32 %v1234, %v1351
        %v1353 = vrot.slane %v1352, 2
        %v1354 = vadd.f32 %v1352, %v1353
        %v1355 = vrot.slane %v1354, 1
        %v1356 = vadd.f32 %v1354, %v1355
        %v1357 = vrot.slane %v1283, 4
        %v1358 = vadd.f32 %v1283, %v1357
        %v1359 = vrot.slane %v1358, 2
        %v1360 = vadd.f32 %v1358, %v1359
        %v1361 = vrot.slane %v1360, 1
        %v1362 = vadd.f32 %v1360, %v1361
        %v1363 = vrot.slane %v1237, 4
        %v1364 = vadd.f32 %v1237, %v1363
        %v1365 = vrot.slane %v1364, 2
        %v1366 = vadd.f32 %v1364, %v1365
        %v1367 = vrot.slane %v1366, 1
        %v1368 = vadd.f32 %v1366, %v1367
        %v1369 = vrot.slane %v1286, 4
        %v1370 = vadd.f32 %v1286, %v1369
        %v1371 = vrot.slane %v1370, 2
        %v1372 = vadd.f32 %v1370, %v1371
        %v1373 = vrot.slane %v1372, 1
        %v1374 = vadd.f32 %v1372, %v1373
        %v1375 = vrot.slane %v1239, 4
        %v1376 = vadd.f32 %v1239, %v1375
        %v1377 = vrot.slane %v1376, 2
        %v1378 = vadd.f32 %v1376, %v1377
        %v1379 = vrot.slane %v1378, 1
        %v1380 = vadd.f32 %v1378, %v1379
        %v1381 = vrot.slane %v1288, 4
        %v1382 = vadd.f32 %v1288, %v1381
        %v1383 = vrot.slane %v1382, 2
        %v1384 = vadd.f32 %v1382, %v1383
        %v1385 = vrot.slane %v1384, 1
        %v1386 = vadd.f32 %v1384, %v1385
        %v1387 = vrot.slane %v1242, 4
        %v1388 = vadd.f32 %v1242, %v1387
        %v1389 = vrot.slane %v1388, 2
        %v1390 = vadd.f32 %v1388, %v1389
        %v1391 = vrot.slane %v1390, 1
        %v1392 = vadd.f32 %v1390, %v1391
        %v1393 = vrot.slane %v1291, 4
        %v1394 = vadd.f32 %v1291, %v1393
        %v1395 = vrot.slane %v1394, 2
        %v1396 = vadd.f32 %v1394, %v1395
        %v1397 = vrot.slane %v1396, 1
        %v1398 = vadd.f32 %v1396, %v1397
        %v1399 = vrot.slane %v1244, 4
        %v1400 = vadd.f32 %v1244, %v1399
        %v1401 = vrot.slane %v1400, 2
        %v1402 = vadd.f32 %v1400, %v1401
        %v1403 = vrot.slane %v1402, 1
        %v1404 = vadd.f32 %v1402, %v1403
        %v1405 = vrot.slane %v1293, 4
        %v1406 = vadd.f32 %v1293, %v1405
        %v1407 = vrot.slane %v1406, 2
        %v1408 = vadd.f32 %v1406, %v1407
        %v1409 = vrot.slane %v1408, 1
        %v1410 = vadd.f32 %v1408, %v1409
        %v1411 = vrot.slane %v1247, 4
        %v1412 = vadd.f32 %v1247, %v1411
        %v1413 = vrot.slane %v1412, 2
        %v1414 = vadd.f32 %v1412, %v1413
        %v1415 = vrot.slane %v1414, 1
        %v1416 = vadd.f32 %v1414, %v1415
        %v1417 = vrot.slane %v1296, 4
        %v1418 = vadd.f32 %v1296, %v1417
        %v1419 = vrot.slane %v1418, 2
        %v1420 = vadd.f32 %v1418, %v1419
        %v1421 = vrot.slane %v1420, 1
        %v1422 = vadd.f32 %v1420, %v1421
        %v1423 = vrot.slane %v1249, 4
        %v1424 = vadd.f32 %v1249, %v1423
        %v1425 = vrot.slane %v1424, 2
        %v1426 = vadd.f32 %v1424, %v1425
        %v1427 = vrot.slane %v1426, 1
        %v1428 = vadd.f32 %v1426, %v1427
        %v1429 = vrot.slane %v1298, 4
        %v1430 = vadd.f32 %v1298, %v1429
        %v1431 = vrot.slane %v1430, 2
        %v1432 = vadd.f32 %v1430, %v1431
        %v1433 = vrot.slane %v1432, 1
        %v1434 = vadd.f32 %v1432, %v1433
        %v1435 = vrot.slane %v1252, 4
        %v1436 = vadd.f32 %v1252, %v1435
        %v1437 = vrot.slane %v1436, 2
        %v1438 = vadd.f32 %v1436, %v1437
        %v1439 = vrot.slane %v1438, 1
        %v1440 = vadd.f32 %v1438, %v1439
        %v1441 = vrot.slane %v1301, 4
        %v1442 = vadd.f32 %v1301, %v1441
        %v1443 = vrot.slane %v1442, 2
        %v1444 = vadd.f32 %v1442, %v1443
        %v1445 = vrot.slane %v1444, 1
        %v1446 = vadd.f32 %v1444, %v1445
        %v1447 = vrot.slane %v1254, 4
        %v1448 = vadd.f32 %v1254, %v1447
        %v1449 = vrot.slane %v1448, 2
        %v1450 = vadd.f32 %v1448, %v1449
        %v1451 = vrot.slane %v1450, 1
        %v1452 = vadd.f32 %v1450, %v1451
        %v1453 = vrot.slane %v1303, 4
        %v1454 = vadd.f32 %v1303, %v1453
        %v1455 = vrot.slane %v1454, 2
        %v1456 = vadd.f32 %v1454, %v1455
        %v1457 = vrot.slane %v1456, 1
        %v1458 = vadd.f32 %v1456, %v1457
        %v1459 = vrot.slane %v1257, 4
        %v1460 = vadd.f32 %v1257, %v1459
        %v1461 = vrot.slane %v1460, 2
        %v1462 = vadd.f32 %v1460, %v1461
        %v1463 = vrot.slane %v1462, 1
        %v1464 = vadd.f32 %v1462, %v1463
        %v1465 = vrot.slane %v1306, 4
        %v1466 = vadd.f32 %v1306, %v1465
        %v1467 = vrot.slane %v1466, 2
        %v1468 = vadd.f32 %v1466, %v1467
        %v1469 = vrot.slane %v1468, 1
        %v1470 = vadd.f32 %v1468, %v1469
        %v1471 = vrot.slane %v1259, 4
        %v1472 = vadd.f32 %v1259, %v1471
        %v1473 = vrot.slane %v1472, 2
        %v1474 = vadd.f32 %v1472, %v1473
        %v1475 = vrot.slane %v1474, 1
        %v1476 = vadd.f32 %v1474, %v1475
        %v1477 = vrot.slane %v1308, 4
        %v1478 = vadd.f32 %v1308, %v1477
        %v1479 = vrot.slane %v1478, 2
        %v1480 = vadd.f32 %v1478, %v1479
        %v1481 = vrot.slane %v1480, 1
        %v1482 = vadd.f32 %v1480, %v1481
        %v1483 = vrot.slane %v1262, 4
        %v1484 = vadd.f32 %v1262, %v1483
        %v1485 = vrot.slane %v1484, 2
        %v1486 = vadd.f32 %v1484, %v1485
        %v1487 = vrot.slane %v1486, 1
        %v1488 = vadd.f32 %v1486, %v1487
        %v1489 = vrot.slane %v1311, 4
        %v1490 = vadd.f32 %v1311, %v1489
        %v1491 = vrot.slane %v1490, 2
        %v1492 = vadd.f32 %v1490, %v1491
        %v1493 = vrot.slane %v1492, 1
        %v1494 = vadd.f32 %v1492, %v1493
        %v1495 = vrot.slane %v1264, 4
        %v1496 = vadd.f32 %v1264, %v1495
        %v1497 = vrot.slane %v1496, 2
        %v1498 = vadd.f32 %v1496, %v1497
        %v1499 = vrot.slane %v1498, 1
        %v1500 = vadd.f32 %v1498, %v1499
        %v1501 = vrot.slane %v1313, 4
        %v1502 = vadd.f32 %v1313, %v1501
        %v1503 = vrot.slane %v1502, 2
        %v1504 = vadd.f32 %v1502, %v1503
        %v1505 = vrot.slane %v1504, 1
        %v1506 = vadd.f32 %v1504, %v1505
        %v1507 = vrcp.pop 8.0
        %v1508 = vmul.f32 8.0, %v1507
        %v1509 = vsub.f32 1.0, %v1508
        %v1510 = vmul.f32 %v1507, %v1509
        %v1511 = vadd.f32 %v1507, %v1510
        %vm1512 = vweird.f32 %v1507
        %v1513 = vsel %vm1512, %v1507, %v1511
        %v1514 = vmul.f32 %v1320, %v1513
        %v1515 = vmul.f32 %v1326, %v1513
        %v1516 = vmul.f32 %v1332, %v1513
        %v1517 = vmul.f32 %v1338, %v1513
        %v1518 = vmul.f32 %v1344, %v1513
        %v1519 = vmul.f32 %v1350, %v1513
        %v1520 = vmul.f32 %v1356, %v1513
        %v1521 = vmul.f32 %v1362, %v1513
        %v1522 = vmul.f32 %v1368, %v1513
        %v1523 = vmul.f32 %v1374, %v1513
        %v1524 = vmul.f32 %v1380, %v1513
        %v1525 = vmul.f32 %v1386, %v1513
        %v1526 = vmul.f32 %v1392, %v1513
        %v1527 = vmul.f32 %v1398, %v1513
        %v1528 = vmul.f32 %v1404, %v1513
        %v1529 = vmul.f32 %v1410, %v1513
        %v1530 = vmul.f32 %v1416, %v1513
        %v1531 = vmul.f32 %v1422, %v1513
        %v1532 = vmul.f32 %v1428, %v1513
        %v1533 = vmul.f32 %v1434, %v1513
        %v1534 = vmul.f32 %v1440, %v1513
        %v1535 = vmul.f32 %v1446, %v1513
        %v1536 = vmul.f32 %v1452, %v1513
        %v1537 = vmul.f32 %v1458, %v1513
        %v1538 = vmul.f32 %v1464, %v1513
        %v1539 = vmul.f32 %v1470, %v1513
        %v1540 = vmul.f32 %v1476, %v1513
        %v1541 = vmul.f32 %v1482, %v1513
        %v1542 = vmul.f32 %v1488, %v1513
        %v1543 = vmul.f32 %v1494, %v1513
        %v1544 = vmul.f32 %v1500, %v1513
        %v1545 = vmul.f32 %v1506, %v1513
        %v1546 = vsub.f32 %v1227, %v1514
        %v1547 = vsub.f32 %v1276, %v1515
        %v1548 = vsub.f32 %v1229, %v1516
        %v1549 = vsub.f32 %v1278, %v1517
        %v1550 = vsub.f32 %v1232, %v1518
        %v1551 = vsub.f32 %v1281, %v1519
        %v1552 = vsub.f32 %v1234, %v1520
        %v1553 = vsub.f32 %v1283, %v1521
        %v1554 = vsub.f32 %v1237, %v1522
        %v1555 = vsub.f32 %v1286, %v1523
        %v1556 = vsub.f32 %v1239, %v1524
        %v1557 = vsub.f32 %v1288, %v1525
        %v1558 = vsub.f32 %v1242, %v1526
        %v1559 = vsub.f32 %v1291, %v1527
        %v1560 = vsub.f32 %v1244, %v1528
        %v1561 = vsub.f32 %v1293, %v1529
        %v1562 = vsub.f32 %v1247, %v1530
        %v1563 = vsub.f32 %v1296, %v1531
        %v1564 = vsub.f32 %v1249, %v1532
        %v1565 = vsub.f32 %v1298, %v1533
        %v1566 = vsub.f32 %v1252, %v1534
        %v1567 = vsub.f32 %v1301, %v1535
        %v1568 = vsub.f32 %v1254, %v1536
        %v1569 = vsub.f32 %v1303, %v1537
        %v1570 = vsub.f32 %v1257, %v1538
        %v1571 = vsub.f32 %v1306, %v1539
        %v1572 = vsub.f32 %v1259, %v1540
        %v1573 = vsub.f32 %v1308, %v1541
        %v1574 = vsub.f32 %v1262, %v1542
        %v1575 = vsub.f32 %v1311, %v1543
        %v1576 = vsub.f32 %v1264, %v1544
        %v1577 = vsub.f32 %v1313, %v1545
        %v1578 = vmul.f32 %v1546, %v1546
        %v1579 = vmul.f32 %v1547, %v1547
        %v1580 = vmul.f32 %v1548, %v1548
        %v1581 = vmul.f32 %v1549, %v1549
        %v1582 = vmul.f32 %v1550, %v1550
        %v1583 = vmul.f32 %v1551, %v1551
        %v1584 = vmul.f32 %v1552, %v1552
        %v1585 = vmul.f32 %v1553, %v1553
        %v1586 = vmul.f32 %v1554, %v1554
        %v1587 = vmul.f32 %v1555, %v1555
        %v1588 = vmul.f32 %v1556, %v1556
        %v1589 = vmul.f32 %v1557, %v1557
        %v1590 = vmul.f32 %v1558, %v1558
        %v1591 = vmul.f32 %v1559, %v1559
        %v1592 = vmul.f32 %v1560, %v1560
        %v1593 = vmul.f32 %v1561, %v1561
        %v1594 = vmul.f32 %v1562, %v1562
        %v1595 = vmul.f32 %v1563, %v1563
        %v1596 = vmul.f32 %v1564, %v1564
        %v1597 = vmul.f32 %v1565, %v1565
        %v1598 = vmul.f32 %v1566, %v1566
        %v1599 = vmul.f32 %v1567, %v1567
        %v1600 = vmul.f32 %v1568, %v1568
        %v1601 = vmul.f32 %v1569, %v1569
        %v1602 = vmul.f32 %v1570, %v1570
        %v1603 = vmul.f32 %v1571, %v1571
        %v1604 = vmul.f32 %v1572, %v1572
        %v1605 = vmul.f32 %v1573, %v1573
        %v1606 = vmul.f32 %v1574, %v1574
        %v1607 = vmul.f32 %v1575, %v1575
        %v1608 = vmul.f32 %v1576, %v1576
        %v1609 = vmul.f32 %v1577, %v1577
        %v1610 = vrot.slane %v1578, 4
        %v1611 = vadd.f32 %v1578, %v1610
        %v1612 = vrot.slane %v1611, 2
        %v1613 = vadd.f32 %v1611, %v1612
        %v1614 = vrot.slane %v1613, 1
        %v1615 = vadd.f32 %v1613, %v1614
        %v1616 = vrot.slane %v1579, 4
        %v1617 = vadd.f32 %v1579, %v1616
        %v1618 = vrot.slane %v1617, 2
        %v1619 = vadd.f32 %v1617, %v1618
        %v1620 = vrot.slane %v1619, 1
        %v1621 = vadd.f32 %v1619, %v1620
        %v1622 = vrot.slane %v1580, 4
        %v1623 = vadd.f32 %v1580, %v1622
        %v1624 = vrot.slane %v1623, 2
        %v1625 = vadd.f32 %v1623, %v1624
        %v1626 = vrot.slane %v1625, 1
        %v1627 = vadd.f32 %v1625, %v1626
        %v1628 = vrot.slane %v1581, 4
        %v1629 = vadd.f32 %v1581, %v1628
        %v1630 = vrot.slane %v1629, 2
        %v1631 = vadd.f32 %v1629, %v1630
        %v1632 = vrot.slane %v1631, 1
        %v1633 = vadd.f32 %v1631, %v1632
        %v1634 = vrot.slane %v1582, 4
        %v1635 = vadd.f32 %v1582, %v1634
        %v1636 = vrot.slane %v1635, 2
        %v1637 = vadd.f32 %v1635, %v1636
        %v1638 = vrot.slane %v1637, 1
        %v1639 = vadd.f32 %v1637, %v1638
        %v1640 = vrot.slane %v1583, 4
        %v1641 = vadd.f32 %v1583, %v1640
        %v1642 = vrot.slane %v1641, 2
        %v1643 = vadd.f32 %v1641, %v1642
        %v1644 = vrot.slane %v1643, 1
        %v1645 = vadd.f32 %v1643, %v1644
        %v1646 = vrot.slane %v1584, 4
        %v1647 = vadd.f32 %v1584, %v1646
        %v1648 = vrot.slane %v1647, 2
        %v1649 = vadd.f32 %v1647, %v1648
        %v1650 = vrot.slane %v1649, 1
        %v1651 = vadd.f32 %v1649, %v1650
        %v1652 = vrot.slane %v1585, 4
        %v1653 = vadd.f32 %v1585, %v1652
        %v1654 = vrot.slane %v1653, 2
        %v1655 = vadd.f32 %v1653, %v1654
        %v1656 = vrot.slane %v1655, 1
        %v1657 = vadd.f32 %v1655, %v1656
        %v1658 = vrot.slane %v1586, 4
        %v1659 = vadd.f32 %v1586, %v1658
        %v1660 = vrot.slane %v1659, 2
        %v1661 = vadd.f32 %v1659, %v1660
        %v1662 = vrot.slane %v1661, 1
        %v1663 = vadd.f32 %v1661, %v1662
        %v1664 = vrot.slane %v1587, 4
        %v1665 = vadd.f32 %v1587, %v1664
        %v1666 = vrot.slane %v1665, 2
        %v1667 = vadd.f32 %v1665, %v1666
        %v1668 = vrot.slane %v1667, 1
        %v1669 = vadd.f32 %v1667, %v1668
        %v1670 = vrot.slane %v1588, 4
        %v1671 = vadd.f32 %v1588, %v1670
        %v1672 = vrot.slane %v1671, 2
        %v1673 = vadd.f32 %v1671, %v1672
        %v1674 = vrot.slane %v1673, 1
        %v1675 = vadd.f32 %v1673, %v1674
        %v1676 = vrot.slane %v1589, 4
        %v1677 = vadd.f32 %v1589, %v1676
        %v1678 = vrot.slane %v1677, 2
        %v1679 = vadd.f32 %v1677, %v1678
        %v1680 = vrot.slane %v1679, 1
        %v1681 = vadd.f32 %v1679, %v1680
        %v1682 = vrot.slane %v1590, 4
        %v1683 = vadd.f32 %v1590, %v1682
        %v1684 = vrot.slane %v1683, 2
        %v1685 = vadd.f32 %v1683, %v1684
        %v1686 = vrot.slane %v1685, 1
        %v1687 = vadd.f32 %v1685, %v1686
        %v1688 = vrot.slane %v1591, 4
        %v1689 = vadd.f32 %v1591, %v1688
        %v1690 = vrot.slane %v1689, 2
        %v1691 = vadd.f32 %v1689, %v1690
        %v1692 = vrot.slane %v1691, 1
        %v1693 = vadd.f32 %v1691, %v1692
        %v1694 = vrot.slane %v1592, 4
        %v1695 = vadd.f32 %v1592, %v1694
        %v1696 = vrot.slane %v1695, 2
        %v1697 = vadd.f32 %v1695, %v1696
        %v1698 = vrot.slane %v1697, 1
        %v1699 = vadd.f32 %v1697, %v1698
        %v1700 = vrot.slane %v1593, 4
        %v1701 = vadd.f32 %v1593, %v1700
        %v1702 = vrot.slane %v1701, 2
        %v1703 = vadd.f32 %v1701, %v1702
        %v1704 = vrot.slane %v1703, 1
        %v1705 = vadd.f32 %v1703, %v1704
        %v1706 = vrot.slane %v1594, 4
        %v1707 = vadd.f32 %v1594, %v1706
        %v1708 = vrot.slane %v1707, 2
        %v1709 = vadd.f32 %v1707, %v1708
        %v1710 = vrot.slane %v1709, 1
        %v1711 = vadd.f32 %v1709, %v1710
        %v1712 = vrot.slane %v1595, 4
        %v1713 = vadd.f32 %v1595, %v1712
        %v1714 = vrot.slane %v1713, 2
        %v1715 = vadd.f32 %v1713, %v1714
        %v1716 = vrot.slane %v1715, 1
        %v1717 = vadd.f32 %v1715, %v1716
        %v1718 = vrot.slane %v1596, 4
        %v1719 = vadd.f32 %v1596, %v1718
        %v1720 = vrot.slane %v1719, 2
        %v1721 = vadd.f32 %v1719, %v1720
        %v1722 = vrot.slane %v1721, 1
        %v1723 = vadd.f32 %v1721, %v1722
        %v1724 = vrot.slane %v1597, 4
        %v1725 = vadd.f32 %v1597, %v1724
        %v1726 = vrot.slane %v1725, 2
        %v1727 = vadd.f32 %v1725, %v1726
        %v1728 = vrot.slane %v1727, 1
        %v1729 = vadd.f32 %v1727, %v1728
        %v1730 = vrot.slane %v1598, 4
        %v1731 = vadd.f32 %v1598, %v1730
        %v1732 = vrot.slane %v1731, 2
        %v1733 = vadd.f32 %v1731, %v1732
        %v1734 = vrot.slane %v1733, 1
        %v1735 = vadd.f32 %v1733, %v1734
        %v1736 = vrot.slane %v1599, 4
        %v1737 = vadd.f32 %v1599, %v1736
        %v1738 = vrot.slane %v1737, 2
        %v1739 = vadd.f32 %v1737, %v1738
        %v1740 = vrot.slane %v1739, 1
        %v1741 = vadd.f32 %v1739, %v1740
        %v1742 = vrot.slane %v1600, 4
        %v1743 = vadd.f32 %v1600, %v1742
        %v1744 = vrot.slane %v1743, 2
        %v1745 = vadd.f32 %v1743, %v1744
        %v1746 = vrot.slane %v1745, 1
        %v1747 = vadd.f32 %v1745, %v1746
        %v1748 = vrot.slane %v1601, 4
        %v1749 = vadd.f32 %v1601, %v1748
        %v1750 = vrot.slane %v1749, 2
        %v1751 = vadd.f32 %v1749, %v1750
        %v1752 = vrot.slane %v1751, 1
        %v1753 = vadd.f32 %v1751, %v1752
        %v1754 = vrot.slane %v1602, 4
        %v1755 = vadd.f32 %v1602, %v1754
        %v1756 = vrot.slane %v1755, 2
        %v1757 = vadd.f32 %v1755, %v1756
        %v1758 = vrot.slane %v1757, 1
        %v1759 = vadd.f32 %v1757, %v1758
        %v1760 = vrot.slane %v1603, 4
        %v1761 = vadd.f32 %v1603, %v1760
        %v1762 = vrot.slane %v1761, 2
        %v1763 = vadd.f32 %v1761, %v1762
        %v1764 = vrot.slane %v1763, 1
        %v1765 = vadd.f32 %v1763, %v1764
        %v1766 = vrot.slane %v1604, 4
        %v1767 = vadd.f32 %v1604, %v1766
        %v1768 = vrot.slane %v1767, 2
        %v1769 = vadd.f32 %v1767, %v1768
        %v1770 = vrot.slane %v1769, 1
        %v1771 = vadd.f32 %v1769, %v1770
        %v1772 = vrot.slane %v1605, 4
        %v1773 = vadd.f32 %v1605, %v1772
        %v1774 = vrot.slane %v1773, 2
        %v1775 = vadd.f32 %v1773, %v1774
        %v1776 = vrot.slane %v1775, 1
        %v1777 = vadd.f32 %v1775, %v1776
        %v1778 = vrot.slane %v1606, 4
        %v1779 = vadd.f32 %v1606, %v1778
        %v1780 = vrot.slane %v1779, 2
        %v1781 = vadd.f32 %v1779, %v1780
        %v1782 = vrot.slane %v1781, 1
        %v1783 = vadd.f32 %v1781, %v1782
        %v1784 = vrot.slane %v1607, 4
        %v1785 = vadd.f32 %v1607, %v1784
        %v1786 = vrot.slane %v1785, 2
        %v1787 = vadd.f32 %v1785, %v1786
        %v1788 = vrot.slane %v1787, 1
        %v1789 = vadd.f32 %v1787, %v1788
        %v1790 = vrot.slane %v1608, 4
        %v1791 = vadd.f32 %v1608, %v1790
        %v1792 = vrot.slane %v1791, 2
        %v1793 = vadd.f32 %v1791, %v1792
        %v1794 = vrot.slane %v1793, 1
        %v1795 = vadd.f32 %v1793, %v1794
        %v1796 = vrot.slane %v1609, 4
        %v1797 = vadd.f32 %v1609, %v1796
        %v1798 = vrot.slane %v1797, 2
        %v1799 = vadd.f32 %v1797, %v1798
        %v1800 = vrot.slane %v1799, 1
        %v1801 = vadd.f32 %v1799, %v1800
        %v1802 = vmul.f32 %v1615, %v1513
        %v1803 = vmul.f32 %v1621, %v1513
        %v1804 = vmul.f32 %v1627, %v1513
        %v1805 = vmul.f32 %v1633, %v1513
        %v1806 = vmul.f32 %v1639, %v1513
        %v1807 = vmul.f32 %v1645, %v1513
        %v1808 = vmul.f32 %v1651, %v1513
        %v1809 = vmul.f32 %v1657, %v1513
        %v1810 = vmul.f32 %v1663, %v1513
        %v1811 = vmul.f32 %v1669, %v1513
        %v1812 = vmul.f32 %v1675, %v1513
        %v1813 = vmul.f32 %v1681, %v1513
        %v1814 = vmul.f32 %v1687, %v1513
        %v1815 = vmul.f32 %v1693, %v1513
        %v1816 = vmul.f32 %v1699, %v1513
        %v1817 = vmul.f32 %v1705, %v1513
        %v1818 = vmul.f32 %v1711, %v1513
        %v1819 = vmul.f32 %v1717, %v1513
        %v1820 = vmul.f32 %v1723, %v1513
        %v1821 = vmul.f32 %v1729, %v1513
        %v1822 = vmul.f32 %v1735, %v1513
        %v1823 = vmul.f32 %v1741, %v1513
        %v1824 = vmul.f32 %v1747, %v1513
        %v1825 = vmul.f32 %v1753, %v1513
        %v1826 = vmul.f32 %v1759, %v1513
        %v1827 = vmul.f32 %v1765, %v1513
        %v1828 = vmul.f32 %v1771, %v1513
        %v1829 = vmul.f32 %v1777, %v1513
        %v1830 = vmul.f32 %v1783, %v1513
        %v1831 = vmul.f32 %v1789, %v1513
        %v1832 = vmul.f32 %v1795, %v1513
        %v1833 = vmul.f32 %v1801, %v1513
        %v1834 = vadd.f32 %v1802, 1e-05
        %v1835 = vadd.f32 %v1803, 1e-05
        %v1836 = vadd.f32 %v1804, 1e-05
        %v1837 = vadd.f32 %v1805, 1e-05
        %v1838 = vadd.f32 %v1806, 1e-05
        %v1839 = vadd.f32 %v1807, 1e-05
        %v1840 = vadd.f32 %v1808, 1e-05
        %v1841 = vadd.f32 %v1809, 1e-05
        %v1842 = vadd.f32 %v1810, 1e-05
        %v1843 = vadd.f32 %v1811, 1e-05
        %v1844 = vadd.f32 %v1812, 1e-05
        %v1845 = vadd.f32 %v1813, 1e-05
        %v1846 = vadd.f32 %v1814, 1e-05
        %v1847 = vadd.f32 %v1815, 1e-05
        %v1848 = vadd.f32 %v1816, 1e-05
        %v1849 = vadd.f32 %v1817, 1e-05
        %v1850 = vadd.f32 %v1818, 1e-05
        %v1851 = vadd.f32 %v1819, 1e-05
        %v1852 = vadd.f32 %v1820, 1e-05
        %v1853 = vadd.f32 %v1821, 1e-05
        %v1854 = vadd.f32 %v1822, 1e-05
        %v1855 = vadd.f32 %v1823, 1e-05
        %v1856 = vadd.f32 %v1824, 1e-05
        %v1857 = vadd.f32 %v1825, 1e-05
        %v1858 = vadd.f32 %v1826, 1e-05
        %v1859 = vadd.f32 %v1827, 1e-05
        %v1860 = vadd.f32 %v1828, 1e-05
        %v1861 = vadd.f32 %v1829, 1e-05
        %v1862 = vadd.f32 %v1830, 1e-05
        %v1863 = vadd.f32 %v1831, 1e-05
        %v1864 = vadd.f32 %v1832, 1e-05
        %v1865 = vadd.f32 %v1833, 1e-05
        %v1866 = vrsqrt.pop %v1834
        %v1867 = vmul.f32 %v1866, %v1834
        %v1868 = vmul.f32 %v1867, %v1866
        %v1869 = vmul.f32 0.5, %v1868
        %v1870 = vsub.f32 1.5, %v1869
        %v1871 = vmul.f32 %v1866, %v1870
        %vm1872 = vweird.f32 %v1834
        %vm1873 = vweird.f32 %v1866
        %vm1874 = vmor %vm1872, %vm1873
        %v1875 = vsel %vm1874, %v1866, %v1871
        %v1876 = vrsqrt.pop %v1835
        %v1877 = vmul.f32 %v1876, %v1835
        %v1878 = vmul.f32 %v1877, %v1876
        %v1879 = vmul.f32 0.5, %v1878
        %v1880 = vsub.f32 1.5, %v1879
        %v1881 = vmul.f32 %v1876, %v1880
        %vm1882 = vweird.f32 %v1835
        %vm1883 = vweird.f32 %v1876
        %vm1884 = vmor %vm1882, %vm1883
        %v1885 = vsel %vm1884, %v1876, %v1881
        %v1886 = vrsqrt.pop %v1836
        %v1887 = vmul.f32 %v1886, %v1836
        %v1888 = vmul.f32 %v1887, %v1886
        %v1889 = vmul.f32 0.5, %v1888
        %v1890 = vsub.f32 1.5, %v1889
        %v1891 = vmul.f32 %v1886, %v1890
        %vm1892 = vweird.f32 %v1836
        %vm1893 = vweird.f32 %v1886
        %vm1894 = vmor %vm1892, %vm1893
        %v1895 = vsel %vm1894, %v1886, %v1891
        %v1896 = vrsqrt.pop %v1837
        %v1897 = vmul.f32 %v1896, %v1837
        %v1898 = vmul.f32 %v1897, %v1896
        %v1899 = vmul.f32 0.5, %v1898
        %v1900 = vsub.f32 1.5, %v1899
        %v1901 = vmul.f32 %v1896, %v1900
        %vm1902 = vweird.f32 %v1837
        %vm1903 = vweird.f32 %v1896
        %vm1904 = vmor %vm1902, %vm1903
        %v1905 = vsel %vm1904, %v1896, %v1901
        %v1906 = vrsqrt.pop %v1838
        %v1907 = vmul.f32 %v1906, %v1838
        %v1908 = vmul.f32 %v1907, %v1906
        %v1909 = vmul.f32 0.5, %v1908
        %v1910 = vsub.f32 1.5, %v1909
        %v1911 = vmul.f32 %v1906, %v1910
        %vm1912 = vweird.f32 %v1838
        %vm1913 = vweird.f32 %v1906
        %vm1914 = vmor %vm1912, %vm1913
        %v1915 = vsel %vm1914, %v1906, %v1911
        %v1916 = vrsqrt.pop %v1839
        %v1917 = vmul.f32 %v1916, %v1839
        %v1918 = vmul.f32 %v1917, %v1916
        %v1919 = vmul.f32 0.5, %v1918
        %v1920 = vsub.f32 1.5, %v1919
        %v1921 = vmul.f32 %v1916, %v1920
        %vm1922 = vweird.f32 %v1839
        %vm1923 = vweird.f32 %v1916
        %vm1924 = vmor %vm1922, %vm1923
        %v1925 = vsel %vm1924, %v1916, %v1921
        %v1926 = vrsqrt.pop %v1840
        %v1927 = vmul.f32 %v1926, %v1840
        %v1928 = vmul.f32 %v1927, %v1926
        %v1929 = vmul.f32 0.5, %v1928
        %v1930 = vsub.f32 1.5, %v1929
        %v1931 = vmul.f32 %v1926, %v1930
        %vm1932 = vweird.f32 %v1840
        %vm1933 = vweird.f32 %v1926
        %vm1934 = vmor %vm1932, %vm1933
        %v1935 = vsel %vm1934, %v1926, %v1931
        %v1936 = vrsqrt.pop %v1841
        %v1937 = vmul.f32 %v1936, %v1841
        %v1938 = vmul.f32 %v1937, %v1936
        %v1939 = vmul.f32 0.5, %v1938
        %v1940 = vsub.f32 1.5, %v1939
        %v1941 = vmul.f32 %v1936, %v1940
        %vm1942 = vweird.f32 %v1841
        %vm1943 = vweird.f32 %v1936
        %vm1944 = vmor %vm1942, %vm1943
        %v1945 = vsel %vm1944, %v1936, %v1941
        %v1946 = vrsqrt.pop %v1842
        %v1947 = vmul.f32 %v1946, %v1842
        %v1948 = vmul.f32 %v1947, %v1946
        %v1949 = vmul.f32 0.5, %v1948
        %v1950 = vsub.f32 1.5, %v1949
        %v1951 = vmul.f32 %v1946, %v1950
        %vm1952 = vweird.f32 %v1842
        %vm1953 = vweird.f32 %v1946
        %vm1954 = vmor %vm1952, %vm1953
        %v1955 = vsel %vm1954, %v1946, %v1951
        %v1956 = vrsqrt.pop %v1843
        %v1957 = vmul.f32 %v1956, %v1843
        %v1958 = vmul.f32 %v1957, %v1956
        %v1959 = vmul.f32 0.5, %v1958
        %v1960 = vsub.f32 1.5, %v1959
        %v1961 = vmul.f32 %v1956, %v1960
        %vm1962 = vweird.f32 %v1843
        %vm1963 = vweird.f32 %v1956
        %vm1964 = vmor %vm1962, %vm1963
        %v1965 = vsel %vm1964, %v1956, %v1961
        %v1966 = vrsqrt.pop %v1844
        %v1967 = vmul.f32 %v1966, %v1844
        %v1968 = vmul.f32 %v1967, %v1966
        %v1969 = vmul.f32 0.5, %v1968
        %v1970 = vsub.f32 1.5, %v1969
        %v1971 = vmul.f32 %v1966, %v1970
        %vm1972 = vweird.f32 %v1844
        %vm1973 = vweird.f32 %v1966
        %vm1974 = vmor %vm1972, %vm1973
        %v1975 = vsel %vm1974, %v1966, %v1971
        %v1976 = vrsqrt.pop %v1845
        %v1977 = vmul.f32 %v1976, %v1845
        %v1978 = vmul.f32 %v1977, %v1976
        %v1979 = vmul.f32 0.5, %v1978
        %v1980 = vsub.f32 1.5, %v1979
        %v1981 = vmul.f32 %v1976, %v1980
        %vm1982 = vweird.f32 %v1845
        %vm1983 = vweird.f32 %v1976
        %vm1984 = vmor %vm1982, %vm1983
        %v1985 = vsel %vm1984, %v1976, %v1981
        %v1986 = vrsqrt.pop %v1846
        %v1987 = vmul.f32 %v1986, %v1846
        %v1988 = vmul.f32 %v1987, %v1986
        %v1989 = vmul.f32 0.5, %v1988
        %v1990 = vsub.f32 1.5, %v1989
        %v1991 = vmul.f32 %v1986, %v1990
        %vm1992 = vweird.f32 %v1846
        %vm1993 = vweird.f32 %v1986
        %vm1994 = vmor %vm1992, %vm1993
        %v1995 = vsel %vm1994, %v1986, %v1991
        %v1996 = vrsqrt.pop %v1847
        %v1997 = vmul.f32 %v1996, %v1847
        %v1998 = vmul.f32 %v1997, %v1996
        %v1999 = vmul.f32 0.5, %v1998
        %v2000 = vsub.f32 1.5, %v1999
        %v2001 = vmul.f32 %v1996, %v2000
        %vm2002 = vweird.f32 %v1847
        %vm2003 = vweird.f32 %v1996
        %vm2004 = vmor %vm2002, %vm2003
        %v2005 = vsel %vm2004, %v1996, %v2001
        %v2006 = vrsqrt.pop %v1848
        %v2007 = vmul.f32 %v2006, %v1848
        %v2008 = vmul.f32 %v2007, %v2006
        %v2009 = vmul.f32 0.5, %v2008
        %v2010 = vsub.f32 1.5, %v2009
        %v2011 = vmul.f32 %v2006, %v2010
        %vm2012 = vweird.f32 %v1848
        %vm2013 = vweird.f32 %v2006
        %vm2014 = vmor %vm2012, %vm2013
        %v2015 = vsel %vm2014, %v2006, %v2011
        %v2016 = vrsqrt.pop %v1849
        %v2017 = vmul.f32 %v2016, %v1849
        %v2018 = vmul.f32 %v2017, %v2016
        %v2019 = vmul.f32 0.5, %v2018
        %v2020 = vsub.f32 1.5, %v2019
        %v2021 = vmul.f32 %v2016, %v2020
        %vm2022 = vweird.f32 %v1849
        %vm2023 = vweird.f32 %v2016
        %vm2024 = vmor %vm2022, %vm2023
        %v2025 = vsel %vm2024, %v2016, %v2021
        %v2026 = vrsqrt.pop %v1850
        %v2027 = vmul.f32 %v2026, %v1850
        %v2028 = vmul.f32 %v2027, %v2026
        %v2029 = vmul.f32 0.5, %v2028
        %v2030 = vsub.f32 1.5, %v2029
        %v2031 = vmul.f32 %v2026, %v2030
        %vm2032 = vweird.f32 %v1850
        %vm2033 = vweird.f32 %v2026
        %vm2034 = vmor %vm2032, %vm2033
        %v2035 = vsel %vm2034, %v2026, %v2031
        %v2036 = vrsqrt.pop %v1851
        %v2037 = vmul.f32 %v2036, %v1851
        %v2038 = vmul.f32 %v2037, %v2036
        %v2039 = vmul.f32 0.5, %v2038
        %v2040 = vsub.f32 1.5, %v2039
        %v2041 = vmul.f32 %v2036, %v2040
        %vm2042 = vweird.f32 %v1851
        %vm2043 = vweird.f32 %v2036
        %vm2044 = vmor %vm2042, %vm2043
        %v2045 = vsel %vm2044, %v2036, %v2041
        %v2046 = vrsqrt.pop %v1852
        %v2047 = vmul.f32 %v2046, %v1852
        %v2048 = vmul.f32 %v2047, %v2046
        %v2049 = vmul.f32 0.5, %v2048
        %v2050 = vsub.f32 1.5, %v2049
        %v2051 = vmul.f32 %v2046, %v2050
        %vm2052 = vweird.f32 %v1852
        %vm2053 = vweird.f32 %v2046
        %vm2054 = vmor %vm2052, %vm2053
        %v2055 = vsel %vm2054, %v2046, %v2051
        %v2056 = vrsqrt.pop %v1853
        %v2057 = vmul.f32 %v2056, %v1853
        %v2058 = vmul.f32 %v2057, %v2056
        %v2059 = vmul.f32 0.5, %v2058
        %v2060 = vsub.f32 1.5, %v2059
        %v2061 = vmul.f32 %v2056, %v2060
        %vm2062 = vweird.f32 %v1853
        %vm2063 = vweird.f32 %v2056
        %vm2064 = vmor %vm2062, %vm2063
        %v2065 = vsel %vm2064, %v2056, %v2061
        %v2066 = vrsqrt.pop %v1854
        %v2067 = vmul.f32 %v2066, %v1854
        %v2068 = vmul.f32 %v2067, %v2066
        %v2069 = vmul.f32 0.5, %v2068
        %v2070 = vsub.f32 1.5, %v2069
        %v2071 = vmul.f32 %v2066, %v2070
        %vm2072 = vweird.f32 %v1854
        %vm2073 = vweird.f32 %v2066
        %vm2074 = vmor %vm2072, %vm2073
        %v2075 = vsel %vm2074, %v2066, %v2071
        %v2076 = vrsqrt.pop %v1855
        %v2077 = vmul.f32 %v2076, %v1855
        %v2078 = vmul.f32 %v2077, %v2076
        %v2079 = vmul.f32 0.5, %v2078
        %v2080 = vsub.f32 1.5, %v2079
        %v2081 = vmul.f32 %v2076, %v2080
        %vm2082 = vweird.f32 %v1855
        %vm2083 = vweird.f32 %v2076
        %vm2084 = vmor %vm2082, %vm2083
        %v2085 = vsel %vm2084, %v2076, %v2081
        %v2086 = vrsqrt.pop %v1856
        %v2087 = vmul.f32 %v2086, %v1856
        %v2088 = vmul.f32 %v2087, %v2086
        %v2089 = vmul.f32 0.5, %v2088
        %v2090 = vsub.f32 1.5, %v2089
        %v2091 = vmul.f32 %v2086, %v2090
        %vm2092 = vweird.f32 %v1856
        %vm2093 = vweird.f32 %v2086
        %vm2094 = vmor %vm2092, %vm2093
        %v2095 = vsel %vm2094, %v2086, %v2091
        %v2096 = vrsqrt.pop %v1857
        %v2097 = vmul.f32 %v2096, %v1857
        %v2098 = vmul.f32 %v2097, %v2096
        %v2099 = vmul.f32 0.5, %v2098
        %v2100 = vsub.f32 1.5, %v2099
        %v2101 = vmul.f32 %v2096, %v2100
        %vm2102 = vweird.f32 %v1857
        %vm2103 = vweird.f32 %v2096
        %vm2104 = vmor %vm2102, %vm2103
        %v2105 = vsel %vm2104, %v2096, %v2101
        %v2106 = vrsqrt.pop %v1858
        %v2107 = vmul.f32 %v2106, %v1858
        %v2108 = vmul.f32 %v2107, %v2106
        %v2109 = vmul.f32 0.5, %v2108
        %v2110 = vsub.f32 1.5, %v2109
        %v2111 = vmul.f32 %v2106, %v2110
        %vm2112 = vweird.f32 %v1858
        %vm2113 = vweird.f32 %v2106
        %vm2114 = vmor %vm2112, %vm2113
        %v2115 = vsel %vm2114, %v2106, %v2111
        %v2116 = vrsqrt.pop %v1859
        %v2117 = vmul.f32 %v2116, %v1859
        %v2118 = vmul.f32 %v2117, %v2116
        %v2119 = vmul.f32 0.5, %v2118
        %v2120 = vsub.f32 1.5, %v2119
        %v2121 = vmul.f32 %v2116, %v2120
        %vm2122 = vweird.f32 %v1859
        %vm2123 = vweird.f32 %v2116
        %vm2124 = vmor %vm2122, %vm2123
        %v2125 = vsel %vm2124, %v2116, %v2121
        %v2126 = vrsqrt.pop %v1860
        %v2127 = vmul.f32 %v2126, %v1860
        %v2128 = vmul.f32 %v2127, %v2126
        %v2129 = vmul.f32 0.5, %v2128
        %v2130 = vsub.f32 1.5, %v2129
        %v2131 = vmul.f32 %v2126, %v2130
        %vm2132 = vweird.f32 %v1860
        %vm2133 = vweird.f32 %v2126
        %vm2134 = vmor %vm2132, %vm2133
        %v2135 = vsel %vm2134, %v2126, %v2131
        %v2136 = vrsqrt.pop %v1861
        %v2137 = vmul.f32 %v2136, %v1861
        %v2138 = vmul.f32 %v2137, %v2136
        %v2139 = vmul.f32 0.5, %v2138
        %v2140 = vsub.f32 1.5, %v2139
        %v2141 = vmul.f32 %v2136, %v2140
        %vm2142 = vweird.f32 %v1861
        %vm2143 = vweird.f32 %v2136
        %vm2144 = vmor %vm2142, %vm2143
        %v2145 = vsel %vm2144, %v2136, %v2141
        %v2146 = vrsqrt.pop %v1862
        %v2147 = vmul.f32 %v2146, %v1862
        %v2148 = vmul.f32 %v2147, %v2146
        %v2149 = vmul.f32 0.5, %v2148
        %v2150 = vsub.f32 1.5, %v2149
        %v2151 = vmul.f32 %v2146, %v2150
        %vm2152 = vweird.f32 %v1862
        %vm2153 = vweird.f32 %v2146
        %vm2154 = vmor %vm2152, %vm2153
        %v2155 = vsel %vm2154, %v2146, %v2151
        %v2156 = vrsqrt.pop %v1863
        %v2157 = vmul.f32 %v2156, %v1863
        %v2158 = vmul.f32 %v2157, %v2156
        %v2159 = vmul.f32 0.5, %v2158
        %v2160 = vsub.f32 1.5, %v2159
        %v2161 = vmul.f32 %v2156, %v2160
        %vm2162 = vweird.f32 %v1863
        %vm2163 = vweird.f32 %v2156
        %vm2164 = vmor %vm2162, %vm2163
        %v2165 = vsel %vm2164, %v2156, %v2161
        %v2166 = vrsqrt.pop %v1864
        %v2167 = vmul.f32 %v2166, %v1864
        %v2168 = vmul.f32 %v2167, %v2166
        %v2169 = vmul.f32 0.5, %v2168
        %v2170 = vsub.f32 1.5, %v2169
        %v2171 = vmul.f32 %v2166, %v2170
        %vm2172 = vweird.f32 %v1864
        %vm2173 = vweird.f32 %v2166
        %vm2174 = vmor %vm2172, %vm2173
        %v2175 = vsel %vm2174, %v2166, %v2171
        %v2176 = vrsqrt.pop %v1865
        %v2177 = vmul.f32 %v2176, %v1865
        %v2178 = vmul.f32 %v2177, %v2176
        %v2179 = vmul.f32 0.5, %v2178
        %v2180 = vsub.f32 1.5, %v2179
        %v2181 = vmul.f32 %v2176, %v2180
        %vm2182 = vweird.f32 %v1865
        %vm2183 = vweird.f32 %v2176
        %vm2184 = vmor %vm2182, %vm2183
        %v2185 = vsel %vm2184, %v2176, %v2181
        %v2186 = vmul.f32 %v1546, %v1875
        %v2187 = vmul.f32 %v1547, %v1885
        %v2188 = vmul.f32 %v1548, %v1895
        %v2189 = vmul.f32 %v1549, %v1905
        %v2190 = vmul.f32 %v1550, %v1915
        %v2191 = vmul.f32 %v1551, %v1925
        %v2192 = vmul.f32 %v1552, %v1935
        %v2193 = vmul.f32 %v1553, %v1945
        %v2194 = vmul.f32 %v1554, %v1955
        %v2195 = vmul.f32 %v1555, %v1965
        %v2196 = vmul.f32 %v1556, %v1975
        %v2197 = vmul.f32 %v1557, %v1985
        %v2198 = vmul.f32 %v1558, %v1995
        %v2199 = vmul.f32 %v1559, %v2005
        %v2200 = vmul.f32 %v1560, %v2015
        %v2201 = vmul.f32 %v1561, %v2025
        %v2202 = vmul.f32 %v1562, %v2035
        %v2203 = vmul.f32 %v1563, %v2045
        %v2204 = vmul.f32 %v1564, %v2055
        %v2205 = vmul.f32 %v1565, %v2065
        %v2206 = vmul.f32 %v1566, %v2075
        %v2207 = vmul.f32 %v1567, %v2085
        %v2208 = vmul.f32 %v1568, %v2095
        %v2209 = vmul.f32 %v1569, %v2105
        %v2210 = vmul.f32 %v1570, %v2115
        %v2211 = vmul.f32 %v1571, %v2125
        %v2212 = vmul.f32 %v1572, %v2135
        %v2213 = vmul.f32 %v1573, %v2145
        %v2214 = vmul.f32 %v1574, %v2155
        %v2215 = vmul.f32 %v1575, %v2165
        %v2216 = vmul.f32 %v1576, %v2175
        %v2217 = vmul.f32 %v1577, %v2185
        %v2218 = vld [vmem:[#allocation10] sm:$0x3]
        %v2220 = vperm.slane %v2218, 0
        %v2221 = vperm.slane %v2218, 1
        %v2224 = vmul.f32 %v2186, %v2220
        %v2225 = vmul.f32 %v2187, %v2221
        %v2226 = vmul.f32 %v2188, %v2220
        %v2227 = vmul.f32 %v2189, %v2221
        %v2228 = vmul.f32 %v2190, %v2220
        %v2229 = vmul.f32 %v2191, %v2221
        %v2230 = vmul.f32 %v2192, %v2220
        %v2231 = vmul.f32 %v2193, %v2221
        %v2232 = vmul.f32 %v2194, %v2220
        %v2233 = vmul.f32 %v2195, %v2221
        %v2234 = vmul.f32 %v2196, %v2220
        %v2235 = vmul.f32 %v2197, %v2221
        %v2236 = vmul.f32 %v2198, %v2220
        %v2237 = vmul.f32 %v2199, %v2221
        %v2238 = vmul.f32 %v2200, %v2220
        %v2239 = vmul.f32 %v2201, %v2221
        %v2240 = vmul.f32 %v2202, %v2220
        %v2241 = vmul.f32 %v2203, %v2221
        %v2242 = vmul.f32 %v2204, %v2220
        %v2243 = vmul.f32 %v2205, %v2221
        %v2244 = vmul.f32 %v2206, %v2220
        %v2245 = vmul.f32 %v2207, %v2221
        %v2246 = vmul.f32 %v2208, %v2220
        %v2247 = vmul.f32 %v2209, %v2221
        %v2248 = vmul.f32 %v2210, %v2220
        %v2249 = vmul.f32 %v2211, %v2221
        %v2250 = vmul.f32 %v2212, %v2220
        %v2251 = vmul.f32 %v2213, %v2221
        %v2252 = vmul.f32 %v2214, %v2220
        %v2253 = vmul.f32 %v2215, %v2221
        %v2254 = vmul.f32 %v2216, %v2220
        %v2255 = vmul.f32 %v2217, %v2221
        %v2256 = vld [vmem:[#allocation11] sm:$0x3]
        %v2258 = vperm.slane %v2256, 0
        %v2259 = vperm.slane %v2256, 1
        %v2262 = vadd.f32 %v2224, %v2258
        %v2263 = vadd.f32 %v2225, %v2259
        %v2264 = vadd.f32 %v2226, %v2258
        %v2265 = vadd.f32 %v2227, %v2259
        %v2266 = vadd.f32 %v2228, %v2258
        %v2267 = vadd.f32 %v2229, %v2259
        %v2268 = vadd.f32 %v2230, %v2258
        %v2269 = vadd.f32 %v2231, %v2259
        %v2270 = vadd.f32 %v2232, %v2258
        %v2271 = vadd.f32 %v2233, %v2259
        %v2272 = vadd.f32 %v2234, %v2258
        %v2273 = vadd.f32 %v2235, %v2259
        %v2274 = vadd.f32 %v2236, %v2258
        %v2275 = vadd.f32 %v2237, %v2259
        %v2276 = vadd.f32 %v2238, %v2258
        %v2277 = vadd.f32 %v2239, %v2259
        %v2278 = vadd.f32 %v2240, %v2258
        %v2279 = vadd.f32 %v2241, %v2259
        %v2280 = vadd.f32 %v2242, %v2258
        %v2281 = vadd.f32 %v2243, %v2259
        %v2282 = vadd.f32 %v2244, %v2258
        %v2283 = vadd.f32 %v2245, %v2259
        %v2284 = vadd.f32 %v2246, %v2258
        %v2285 = vadd.f32 %v2247, %v2259
        %v2286 = vadd.f32 %v2248, %v2258
        %v2287 = vadd.f32 %v2249, %v2259
        %v2288 = vadd.f32 %v2250, %v2258
        %v2289 = vadd.f32 %v2251, %v2259
        %v2290 = vadd.f32 %v2252, %v2258
        %v2291 = vadd.f32 %v2253, %v2259
        %v2292 = vadd.f32 %v2254, %v2258
        %v2293 = vadd.f32 %v2255, %v2259
        %v2294 = vmax.f32 %v2262, 0.0
        %v2295 = vmax.f32 %v2263, 0.0
        %v2296 = vmax.f32 %v2264, 0.0
        %v2297 = vmax.f32 %v2265, 0.0
        %v2298 = vmax.f32 %v2266, 0.0
        %v2299 = vmax.f32 %v2267, 0.0
        %v2300 = vmax.f32 %v2268, 0.0
        %v2301 = vmax.f32 %v2269, 0.0
        %v2302 = vmax.f32 %v2270, 0.0
        %v2303 = vmax.f32 %v2271, 0.0
        %v2304 = vmax.f32 %v2272, 0.0
        %v2305 = vmax.f32 %v2273, 0.0
        %v2306 = vmax.f32 %v2274, 0.0
        %v2307 = vmax.f32 %v2275, 0.0
        %v2308 = vmax.f32 %v2276, 0.0
        %v2309 = vmax.f32 %v2277, 0.0
        %v2310 = vmax.f32 %v2278, 0.0
        %v2311 = vmax.f32 %v2279, 0.0
        %v2312 = vmax.f32 %v2280, 0.0
        %v2313 = vmax.f32 %v2281, 0.0
        %v2314 = vmax.f32 %v2282, 0.0
        %v2315 = vmax.f32 %v2283, 0.0
        %v2316 = vmax.f32 %v2284, 0.0
        %v2317 = vmax.f32 %v2285, 0.0
        %v2318 = vmax.f32 %v2286, 0.0
        %v2319 = vmax.f32 %v2287, 0.0
        %v2320 = vmax.f32 %v2288, 0.0
        %v2321 = vmax.f32 %v2289, 0.0
        %v2322 = vmax.f32 %v2290, 0.0
        %v2323 = vmax.f32 %v2291, 0.0
        %v2324 = vmax.f32 %v2292, 0.0
        %v2325 = vmax.f32 %v2293, 0.0
        %v2326 = vrot.slane %v918, 4
        %v2327 = vadd.f32 %v918, %v2326
        %v2328 = vrot.slane %v2327, 2
        %v2329 = vadd.f32 %v2327, %v2328
        %v2330 = vrot.slane %v2329, 1
        %v2331 = vadd.f32 %v2329, %v2330
        %v2332 = vrot.slane %v967, 4
        %v2333 = vadd.f32 %v967, %v2332
        %v2334 = vrot.slane %v2333, 2
        %v2335 = vadd.f32 %v2333, %v2334
        %v2336 = vrot.slane %v2335, 1
        %v2337 = vadd.f32 %v2335, %v2336
        %v2338 = vrot.slane %v1016, 4
        %v2339 = vadd.f32 %v1016, %v2338
        %v2340 = vrot.slane %v2339, 2
        %v2341 = vadd.f32 %v2339, %v2340
        %v2342 = vrot.slane %v2341, 1
        %v2343 = vadd.f32 %v2341, %v2342
        %v2344 = vrot.slane %v1065, 4
        %v2345 = vadd.f32 %v1065, %v2344
        %v2346 = vrot.slane %v2345, 2
        %v2347 = vadd.f32 %v2345, %v2346
        %v2348 = vrot.slane %v2347, 1
        %v2349 = vadd.f32 %v2347, %v2348
        %v2350 = vrot.slane %v1114, 4
        %v2351 = vadd.f32 %v1114, %v2350
        %v2352 = vrot.slane %v2351, 2
        %v2353 = vadd.f32 %v2351, %v2352
        %v2354 = vrot.slane %v2353, 1
        %v2355 = vadd.f32 %v2353, %v2354
        %v2356 = vrot.slane %v920, 4
        %v2357 = vadd.f32 %v920, %v2356
        %v2358 = vrot.slane %v2357, 2
        %v2359 = vadd.f32 %v2357, %v2358
        %v2360 = vrot.slane %v2359, 1
        %v2361 = vadd.f32 %v2359, %v2360
        %v2362 = vrot.slane %v969, 4
        %v2363 = vadd.f32 %v969, %v2362
        %v2364 = vrot.slane %v2363, 2
        %v2365 = vadd.f32 %v2363, %v2364
        %v2366 = vrot.slane %v2365, 1
        %v2367 = vadd.f32 %v2365, %v2366
        %v2368 = vrot.slane %v1018, 4
        %v2369 = vadd.f32 %v1018, %v2368
        %v2370 = vrot.slane %v2369, 2
        %v2371 = vadd.f32 %v2369, %v2370
        %v2372 = vrot.slane %v2371, 1
        %v2373 = vadd.f32 %v2371, %v2372
        %v2374 = vrot.slane %v1067, 4
        %v2375 = vadd.f32 %v1067, %v2374
        %v2376 = vrot.slane %v2375, 2
        %v2377 = vadd.f32 %v2375, %v2376
        %v2378 = vrot.slane %v2377, 1
        %v2379 = vadd.f32 %v2377, %v2378
        %v2380 = vrot.slane %v1116, 4
        %v2381 = vadd.f32 %v1116, %v2380
        %v2382 = vrot.slane %v2381, 2
        %v2383 = vadd.f32 %v2381, %v2382
        %v2384 = vrot.slane %v2383, 1
        %v2385 = vadd.f32 %v2383, %v2384
        %v2386 = vrot.slane %v923, 4
        %v2387 = vadd.f32 %v923, %v2386
        %v2388 = vrot.slane %v2387, 2
        %v2389 = vadd.f32 %v2387, %v2388
        %v2390 = vrot.slane %v2389, 1
        %v2391 = vadd.f32 %v2389, %v2390
        %v2392 = vrot.slane %v972, 4
        %v2393 = vadd.f32 %v972, %v2392
        %v2394 = vrot.slane %v2393, 2
        %v2395 = vadd.f32 %v2393, %v2394
        %v2396 = vrot.slane %v2395, 1
        %v2397 = vadd.f32 %v2395, %v2396
        %v2398 = vrot.slane %v1021, 4
        %v2399 = vadd.f32 %v1021, %v2398
        %v2400 = vrot.slane %v2399, 2
        %v2401 = vadd.f32 %v2399, %v2400
        %v2402 = vrot.slane %v2401, 1
        %v2403 = vadd.f32 %v2401, %v2402
        %v2404 = vrot.slane %v1070, 4
        %v2405 = vadd.f32 %v1070, %v2404
        %v2406 = vrot.slane %v2405, 2
        %v2407 = vadd.f32 %v2405, %v2406
        %v2408 = vrot.slane %v2407, 1
        %v2409 = vadd.f32 %v2407, %v2408
        %v2410 = vrot.slane %v1119, 4
        %v2411 = vadd.f32 %v1119, %v2410
        %v2412 = vrot.slane %v2411, 2
        %v2413 = vadd.f32 %v2411, %v2412
        %v2414 = vrot.slane %v2413, 1
        %v2415 = vadd.f32 %v2413, %v2414
        %v2416 = vrot.slane %v925, 4
        %v2417 = vadd.f32 %v925, %v2416
        %v2418 = vrot.slane %v2417, 2
        %v2419 = vadd.f32 %v2417, %v2418
        %v2420 = vrot.slane %v2419, 1
        %v2421 = vadd.f32 %v2419, %v2420
        %v2422 = vrot.slane %v974, 4
        %v2423 = vadd.f32 %v974, %v2422
        %v2424 = vrot.slane %v2423, 2
        %v2425 = vadd.f32 %v2423, %v2424
        %v2426 = vrot.slane %v2425, 1
        %v2427 = vadd.f32 %v2425, %v2426
        %v2428 = vrot.slane %v1023, 4
        %v2429 = vadd.f32 %v1023, %v2428
        %v2430 = vrot.slane %v2429, 2
        %v2431 = vadd.f32 %v2429, %v2430
        %v2432 = vrot.slane %v2431, 1
        %v2433 = vadd.f32 %v2431, %v2432
        %v2434 = vrot.slane %v1072, 4
        %v2435 = vadd.f32 %v1072, %v2434
        %v2436 = vrot.slane %v2435, 2
        %v2437 = vadd.f32 %v2435, %v2436
        %v2438 = vrot.slane %v2437, 1
        %v2439 = vadd.f32 %v2437, %v2438
        %v2440 = vrot.slane %v1121, 4
        %v2441 = vadd.f32 %v1121, %v2440
        %v2442 = vrot.slane %v2441, 2
        %v2443 = vadd.f32 %v2441, %v2442
        %v2444 = vrot.slane %v2443, 1
        %v2445 = vadd.f32 %v2443, %v2444
        %v2446 = vrot.slane %v928, 4
        %v2447 = vadd.f32 %v928, %v2446
        %v2448 = vrot.slane %v2447, 2
        %v2449 = vadd.f32 %v2447, %v2448
        %v2450 = vrot.slane %v2449, 1
        %v2451 = vadd.f32 %v2449, %v2450
        %v2452 = vrot.slane %v977, 4
        %v2453 = vadd.f32 %v977, %v2452
        %v2454 = vrot.slane %v2453, 2
        %v2455 = vadd.f32 %v2453, %v2454
        %v2456 = vrot.slane %v2455, 1
        %v2457 = vadd.f32 %v2455, %v2456
        %v2458 = vrot.slane %v1026, 4
        %v2459 = vadd.f32 %v1026, %v2458
        %v2460 = vrot.slane %v2459, 2
        %v2461 = vadd.f32 %v2459, %v2460
        %v2462 = vrot.slane %v2461, 1
        %v2463 = vadd.f32 %v2461, %v2462
        %v2464 = vrot.slane %v1075, 4
        %v2465 = vadd.f32 %v1075, %v2464
        %v2466 = vrot.slane %v2465, 2
        %v2467 = vadd.f32 %v2465, %v2466
        %v2468 = vrot.slane %v2467, 1
        %v2469 = vadd.f32 %v2467, %v2468
        %v2470 = vrot.slane %v1124, 4
        %v2471 = vadd.f32 %v1124, %v2470
        %v2472 = vrot.slane %v2471, 2
        %v2473 = vadd.f32 %v2471, %v2472
        %v2474 = vrot.slane %v2473, 1
        %v2475 = vadd.f32 %v2473, %v2474
        %v2476 = vrot.slane %v930, 4
        %v2477 = vadd.f32 %v930, %v2476
        %v2478 = vrot.slane %v2477, 2
        %v2479 = vadd.f32 %v2477, %v2478
        %v2480 = vrot.slane %v2479, 1
        %v2481 = vadd.f32 %v2479, %v2480
        %v2482 = vrot.slane %v979, 4
        %v2483 = vadd.f32 %v979, %v2482
        %v2484 = vrot.slane %v2483, 2
        %v2485 = vadd.f32 %v2483, %v2484
        %v2486 = vrot.slane %v2485, 1
        %v2487 = vadd.f32 %v2485, %v2486
        %v2488 = vrot.slane %v1028, 4
        %v2489 = vadd.f32 %v1028, %v2488
        %v2490 = vrot.slane %v2489, 2
        %v2491 = vadd.f32 %v2489, %v2490
        %v2492 = vrot.slane %v2491, 1
        %v2493 = vadd.f32 %v2491, %v2492
        %v2494 = vrot.slane %v1077, 4
        %v2495 = vadd.f32 %v1077, %v2494
        %v2496 = vrot.slane %v2495, 2
        %v2497 = vadd.f32 %v2495, %v2496
        %v2498 = vrot.slane %v2497, 1
        %v2499 = vadd.f32 %v2497, %v2498
        %v2500 = vrot.slane %v1126, 4
        %v2501 = vadd.f32 %v1126, %v2500
        %v2502 = vrot.slane %v2501, 2
        %v2503 = vadd.f32 %v2501, %v2502
        %v2504 = vrot.slane %v2503, 1
        %v2505 = vadd.f32 %v2503, %v2504
        %v2506 = vrot.slane %v933, 4
        %v2507 = vadd.f32 %v933, %v2506
        %v2508 = vrot.slane %v2507, 2
        %v2509 = vadd.f32 %v2507, %v2508
        %v2510 = vrot.slane %v2509, 1
        %v2511 = vadd.f32 %v2509, %v2510
        %v2512 = vrot.slane %v982, 4
        %v2513 = vadd.f32 %v982, %v2512
        %v2514 = vrot.slane %v2513, 2
        %v2515 = vadd.f32 %v2513, %v2514
        %v2516 = vrot.slane %v2515, 1
        %v2517 = vadd.f32 %v2515, %v2516
        %v2518 = vrot.slane %v1031, 4
        %v2519 = vadd.f32 %v1031, %v2518
        %v2520 = vrot.slane %v2519, 2
        %v2521 = vadd.f32 %v2519, %v2520
        %v2522 = vrot.slane %v2521, 1
        %v2523 = vadd.f32 %v2521, %v2522
        %v2524 = vrot.slane %v1080, 4
        %v2525 = vadd.f32 %v1080, %v2524
        %v2526 = vrot.slane %v2525, 2
        %v2527 = vadd.f32 %v2525, %v2526
        %v2528 = vrot.slane %v2527, 1
        %v2529 = vadd.f32 %v2527, %v2528
        %v2530 = vrot.slane %v1129, 4
        %v2531 = vadd.f32 %v1129, %v2530
        %v2532 = vrot.slane %v2531, 2
        %v2533 = vadd.f32 %v2531, %v2532
        %v2534 = vrot.slane %v2533, 1
        %v2535 = vadd.f32 %v2533, %v2534
        %v2536 = vrot.slane %v935, 4
        %v2537 = vadd.f32 %v935, %v2536
        %v2538 = vrot.slane %v2537, 2
        %v2539 = vadd.f32 %v2537, %v2538
        %v2540 = vrot.slane %v2539, 1
        %v2541 = vadd.f32 %v2539, %v2540
        %v2542 = vrot.slane %v984, 4
        %v2543 = vadd.f32 %v984, %v2542
        %v2544 = vrot.slane %v2543, 2
        %v2545 = vadd.f32 %v2543, %v2544
        %v2546 = vrot.slane %v2545, 1
        %v2547 = vadd.f32 %v2545, %v2546
        %v2548 = vrot.slane %v1033, 4
        %v2549 = vadd.f32 %v1033, %v2548
        %v2550 = vrot.slane %v2549, 2
        %v2551 = vadd.f32 %v2549, %v2550
        %v2552 = vrot.slane %v2551, 1
        %v2553 = vadd.f32 %v2551, %v2552
        %v2554 = vrot.slane %v1082, 4
        %v2555 = vadd.f32 %v1082, %v2554
        %v2556 = vrot.slane %v2555, 2
        %v2557 = vadd.f32 %v2555, %v2556
        %v2558 = vrot.slane %v2557, 1
        %v2559 = vadd.f32 %v2557, %v2558
        %v2560 = vrot.slane %v1131, 4
        %v2561 = vadd.f32 %v1131, %v2560
        %v2562 = vrot.slane %v2561, 2
        %v2563 = vadd.f32 %v2561, %v2562
        %v2564 = vrot.slane %v2563, 1
        %v2565 = vadd.f32 %v2563, %v2564
        %v2566 = vrot.slane %v938, 4
        %v2567 = vadd.f32 %v938, %v2566
        %v2568 = vrot.slane %v2567, 2
        %v2569 = vadd.f32 %v2567, %v2568
        %v2570 = vrot.slane %v2569, 1
        %v2571 = vadd.f32 %v2569, %v2570
        %v2572 = vrot.slane %v987, 4
        %v2573 = vadd.f32 %v987, %v2572
        %v2574 = vrot.slane %v2573, 2
        %v2575 = vadd.f32 %v2573, %v2574
        %v2576 = vrot.slane %v2575, 1
        %v2577 = vadd.f32 %v2575, %v2576
        %v2578 = vrot.slane %v1036, 4
        %v2579 = vadd.f32 %v1036, %v2578
        %v2580 = vrot.slane %v2579, 2
        %v2581 = vadd.f32 %v2579, %v2580
        %v2582 = vrot.slane %v2581, 1
        %v2583 = vadd.f32 %v2581, %v2582
        %v2584 = vrot.slane %v1085, 4
        %v2585 = vadd.f32 %v1085, %v2584
        %v2586 = vrot.slane %v2585, 2
        %v2587 = vadd.f32 %v2585, %v2586
        %v2588 = vrot.slane %v2587, 1
        %v2589 = vadd.f32 %v2587, %v2588
        %v2590 = vrot.slane %v1134, 4
        %v2591 = vadd.f32 %v1134, %v2590
        %v2592 = vrot.slane %v2591, 2
        %v2593 = vadd.f32 %v2591, %v2592
        %v2594 = vrot.slane %v2593, 1
        %v2595 = vadd.f32 %v2593, %v2594
        %v2596 = vrot.slane %v940, 4
        %v2597 = vadd.f32 %v940, %v2596
        %v2598 = vrot.slane %v2597, 2
        %v2599 = vadd.f32 %v2597, %v2598
        %v2600 = vrot.slane %v2599, 1
        %v2601 = vadd.f32 %v2599, %v2600
        %v2602 = vrot.slane %v989, 4
        %v2603 = vadd.f32 %v989, %v2602
        %v2604 = vrot.slane %v2603, 2
        %v2605 = vadd.f32 %v2603, %v2604
        %v2606 = vrot.slane %v2605, 1
        %v2607 = vadd.f32 %v2605, %v2606
        %v2608 = vrot.slane %v1038, 4
        %v2609 = vadd.f32 %v1038, %v2608
        %v2610 = vrot.slane %v2609, 2
        %v2611 = vadd.f32 %v2609, %v2610
        %v2612 = vrot.slane %v2611, 1
        %v2613 = vadd.f32 %v2611, %v2612
        %v2614 = vrot.slane %v1087, 4
        %v2615 = vadd.f32 %v1087, %v2614
        %v2616 = vrot.slane %v2615, 2
        %v2617 = vadd.f32 %v2615, %v2616
        %v2618 = vrot.slane %v2617, 1
        %v2619 = vadd.f32 %v2617, %v2618
        %v2620 = vrot.slane %v1136, 4
        %v2621 = vadd.f32 %v1136, %v2620
        %v2622 = vrot.slane %v2621, 2
        %v2623 = vadd.f32 %v2621, %v2622
        %v2624 = vrot.slane %v2623, 1
        %v2625 = vadd.f32 %v2623, %v2624
        %v2626 = vrot.slane %v943, 4
        %v2627 = vadd.f32 %v943, %v2626
        %v2628 = vrot.slane %v2627, 2
        %v2629 = vadd.f32 %v2627, %v2628
        %v2630 = vrot.slane %v2629, 1
        %v2631 = vadd.f32 %v2629, %v2630
        %v2632 = vrot.slane %v992, 4
        %v2633 = vadd.f32 %v992, %v2632
        %v2634 = vrot.slane %v2633, 2
        %v2635 = vadd.f32 %v2633, %v2634
        %v2636 = vrot.slane %v2635, 1
        %v2637 = vadd.f32 %v2635, %v2636
        %v2638 = vrot.slane %v1041, 4
        %v2639 = vadd.f32 %v1041, %v2638
        %v2640 = vrot.slane %v2639, 2
        %v2641 = vadd.f32 %v2639, %v2640
        %v2642 = vrot.slane %v2641, 1
        %v2643 = vadd.f32 %v2641, %v2642
        %v2644 = vrot.slane %v1090, 4
        %v2645 = vadd.f32 %v1090, %v2644
        %v2646 = vrot.slane %v2645, 2
        %v2647 = vadd.f32 %v2645, %v2646
        %v2648 = vrot.slane %v2647, 1
        %v2649 = vadd.f32 %v2647, %v2648
        %v2650 = vrot.slane %v1139, 4
        %v2651 = vadd.f32 %v1139, %v2650
        %v2652 = vrot.slane %v2651, 2
        %v2653 = vadd.f32 %v2651, %v2652
        %v2654 = vrot.slane %v2653, 1
        %v2655 = vadd.f32 %v2653, %v2654
        %v2656 = vrot.slane %v945, 4
        %v2657 = vadd.f32 %v945, %v2656
        %v2658 = vrot.slane %v2657, 2
        %v2659 = vadd.f32 %v2657, %v2658
        %v2660 = vrot.slane %v2659, 1
        %v2661 = vadd.f32 %v2659, %v2660
        %v2662 = vrot.slane %v994, 4
        %v2663 = vadd.f32 %v994, %v2662
        %v2664 = vrot.slane %v2663, 2
        %v2665 = vadd.f32 %v2663, %v2664
        %v2666 = vrot.slane %v2665, 1
        %v2667 = vadd.f32 %v2665, %v2666
        %v2668 = vrot.slane %v1043, 4
        %v2669 = vadd.f32 %v1043, %v2668
        %v2670 = vrot.slane %v2669, 2
        %v2671 = vadd.f32 %v2669, %v2670
        %v2672 = vrot.slane %v2671, 1
        %v2673 = vadd.f32 %v2671, %v2672
        %v2674 = vrot.slane %v1092, 4
        %v2675 = vadd.f32 %v1092, %v2674
        %v2676 = vrot.slane %v2675, 2
        %v2677 = vadd.f32 %v2675, %v2676
        %v2678 = vrot.slane %v2677, 1
        %v2679 = vadd.f32 %v2677, %v2678
        %v2680 = vrot.slane %v1141, 4
        %v2681 = vadd.f32 %v1141, %v2680
        %v2682 = vrot.slane %v2681, 2
        %v2683 = vadd.f32 %v2681, %v2682
        %v2684 = vrot.slane %v2683, 1
        %v2685 = vadd.f32 %v2683, %v2684
        %v2686 = vrot.slane %v948, 4
        %v2687 = vadd.f32 %v948, %v2686
        %v2688 = vrot.slane %v2687, 2
        %v2689 = vadd.f32 %v2687, %v2688
        %v2690 = vrot.slane %v2689, 1
        %v2691 = vadd.f32 %v2689, %v2690
        %v2692 = vrot.slane %v997, 4
        %v2693 = vadd.f32 %v997, %v2692
        %v2694 = vrot.slane %v2693, 2
        %v2695 = vadd.f32 %v2693, %v2694
        %v2696 = vrot.slane %v2695, 1
        %v2697 = vadd.f32 %v2695, %v2696
        %v2698 = vrot.slane %v1046, 4
        %v2699 = vadd.f32 %v1046, %v2698
        %v2700 = vrot.slane %v2699, 2
        %v2701 = vadd.f32 %v2699, %v2700
        %v2702 = vrot.slane %v2701, 1
        %v2703 = vadd.f32 %v2701, %v2702
        %v2704 = vrot.slane %v1095, 4
        %v2705 = vadd.f32 %v1095, %v2704
        %v2706 = vrot.slane %v2705, 2
        %v2707 = vadd.f32 %v2705, %v2706
        %v2708 = vrot.slane %v2707, 1
        %v2709 = vadd.f32 %v2707, %v2708
        %v2710 = vrot.slane %v1144, 4
        %v2711 = vadd.f32 %v1144, %v2710
        %v2712 = vrot.slane %v2711, 2
        %v2713 = vadd.f32 %v2711, %v2712
        %v2714 = vrot.slane %v2713, 1
        %v2715 = vadd.f32 %v2713, %v2714
        %v2716 = vrot.slane %v950, 4
        %v2717 = vadd.f32 %v950, %v2716
        %v2718 = vrot.slane %v2717, 2
        %v2719 = vadd.f32 %v2717, %v2718
        %v2720 = vrot.slane %v2719, 1
        %v2721 = vadd.f32 %v2719, %v2720
        %v2722 = vrot.slane %v999, 4
        %v2723 = vadd.f32 %v999, %v2722
        %v2724 = vrot.slane %v2723, 2
        %v2725 = vadd.f32 %v2723, %v2724
        %v2726 = vrot.slane %v2725, 1
        %v2727 = vadd.f32 %v2725, %v2726
        %v2728 = vrot.slane %v1048, 4
        %v2729 = vadd.f32 %v1048, %v2728
        %v2730 = vrot.slane %v2729, 2
        %v2731 = vadd.f32 %v2729, %v2730
        %v2732 = vrot.slane %v2731, 1
        %v2733 = vadd.f32 %v2731, %v2732
        %v2734 = vrot.slane %v1097, 4
        %v2735 = vadd.f32 %v1097, %v2734
        %v2736 = vrot.slane %v2735, 2
        %v2737 = vadd.f32 %v2735, %v2736
        %v2738 = vrot.slane %v2737, 1
        %v2739 = vadd.f32 %v2737, %v2738
        %v2740 = vrot.slane %v1146, 4
        %v2741 = vadd.f32 %v1146, %v2740
        %v2742 = vrot.slane %v2741, 2
        %v2743 = vadd.f32 %v2741, %v2742
        %v2744 = vrot.slane %v2743, 1
        %v2745 = vadd.f32 %v2743, %v2744
        %v2746 = vrot.slane %v953, 4
        %v2747 = vadd.f32 %v953, %v2746
        %v2748 = vrot.slane %v2747, 2
        %v2749 = vadd.f32 %v2747, %v2748
        %v2750 = vrot.slane %v2749, 1
        %v2751 = vadd.f32 %v2749, %v2750
        %v2752 = vrot.slane %v1002, 4
        %v2753 = vadd.f32 %v1002, %v2752
        %v2754 = vrot.slane %v2753, 2
        %v2755 = vadd.f32 %v2753, %v2754
        %v2756 = vrot.slane %v2755, 1
        %v2757 = vadd.f32 %v2755, %v2756
        %v2758 = vrot.slane %v1051, 4
        %v2759 = vadd.f32 %v1051, %v2758
        %v2760 = vrot.slane %v2759, 2
        %v2761 = vadd.f32 %v2759, %v2760
        %v2762 = vrot.slane %v2761, 1
        %v2763 = vadd.f32 %v2761, %v2762
        %v2764 = vrot.slane %v1100, 4
        %v2765 = vadd.f32 %v1100, %v2764
        %v2766 = vrot.slane %v2765, 2
        %v2767 = vadd.f32 %v2765, %v2766
        %v2768 = vrot.slane %v2767, 1
        %v2769 = vadd.f32 %v2767, %v2768
        %v2770 = vrot.slane %v1149, 4
        %v2771 = vadd.f32 %v1149, %v2770
        %v2772 = vrot.slane %v2771, 2
        %v2773 = vadd.f32 %v2771, %v2772
        %v2774 = vrot.slane %v2773, 1
        %v2775 = vadd.f32 %v2773, %v2774
        %v2776 = vrot.slane %v955, 4
        %v2777 = vadd.f32 %v955, %v2776
        %v2778 = vrot.slane %v2777, 2
        %v2779 = vadd.f32 %v2777, %v2778
        %v2780 = vrot.slane %v2779, 1
        %v2781 = vadd.f32 %v2779, %v2780
        %v2782 = vrot.slane %v1004, 4
        %v2783 = vadd.f32 %v1004, %v2782
        %v2784 = vrot.slane %v2783, 2
        %v2785 = vadd.f32 %v2783, %v2784
        %v2786 = vrot.slane %v2785, 1
        %v2787 = vadd.f32 %v2785, %v2786
        %v2788 = vrot.slane %v1053, 4
        %v2789 = vadd.f32 %v1053, %v2788
        %v2790 = vrot.slane %v2789, 2
        %v2791 = vadd.f32 %v2789, %v2790
        %v2792 = vrot.slane %v2791, 1
        %v2793 = vadd.f32 %v2791, %v2792
        %v2794 = vrot.slane %v1102, 4
        %v2795 = vadd.f32 %v1102, %v2794
        %v2796 = vrot.slane %v2795, 2
        %v2797 = vadd.f32 %v2795, %v2796
        %v2798 = vrot.slane %v2797, 1
        %v2799 = vadd.f32 %v2797, %v2798
        %v2800 = vrot.slane %v1151, 4
        %v2801 = vadd.f32 %v1151, %v2800
        %v2802 = vrot.slane %v2801, 2
        %v2803 = vadd.f32 %v2801, %v2802
        %v2804 = vrot.slane %v2803, 1
        %v2805 = vadd.f32 %v2803, %v2804
        %v2806 = vmul.f32 %v2331, %v1513
        %v2807 = vmul.f32 %v2337, %v1513
        %v2808 = vmul.f32 %v2343, %v1513
        %v2809 = vmul.f32 %v2349, %v1513
        %v2810 = vmul.f32 %v2355, %v1513
        %v2811 = vmul.f32 %v2361, %v1513
        %v2812 = vmul.f32 %v2367, %v1513
        %v2813 = vmul.f32 %v2373, %v1513
        %v2814 = vmul.f32 %v2379, %v1513
        %v2815 = vmul.f32 %v2385, %v1513
        %v2816 = vmul.f32 %v2391, %v1513
        %v2817 = vmul.f32 %v2397, %v1513
        %v2818 = vmul.f32 %v2403, %v1513
        %v2819 = vmul.f32 %v2409, %v1513
        %v2820 = vmul.f32 %v2415, %v1513
        %v2821 = vmul.f32 %v2421, %v1513
        %v2822 = vmul.f32 %v2427, %v1513
        %v2823 = vmul.f32 %v2433, %v1513
        %v2824 = vmul.f32 %v2439, %v1513
        %v2825 = vmul.f32 %v2445, %v1513
        %v2826 = vmul.f32 %v2451, %v1513
        %v2827 = vmul.f32 %v2457, %v1513
        %v2828 = vmul.f32 %v2463, %v1513
        %v2829 = vmul.f32 %v2469, %v1513
        %v2830 = vmul.f32 %v2475, %v1513
        %v2831 = vmul.f32 %v2481, %v1513
        %v2832 = vmul.f32 %v2487, %v1513
        %v2833 = vmul.f32 %v2493, %v1513
        %v2834 = vmul.f32 %v2499, %v1513
        %v2835 = vmul.f32 %v2505, %v1513
        %v2836 = vmul.f32 %v2511, %v1513
        %v2837 = vmul.f32 %v2517, %v1513
        %v2838 = vmul.f32 %v2523, %v1513
        %v2839 = vmul.f32 %v2529, %v1513
        %v2840 = vmul.f32 %v2535, %v1513
        %v2841 = vmul.f32 %v2541, %v1513
        %v2842 = vmul.f32 %v2547, %v1513
        %v2843 = vmul.f32 %v2553, %v1513
        %v2844 = vmul.f32 %v2559, %v1513
        %v2845 = vmul.f32 %v2565, %v1513
        %v2846 = vmul.f32 %v2571, %v1513
        %v2847 = vmul.f32 %v2577, %v1513
        %v2848 = vmul.f32 %v2583, %v1513
        %v2849 = vmul.f32 %v2589, %v1513
        %v2850 = vmul.f32 %v2595, %v1513
        %v2851 = vmul.f32 %v2601, %v1513
        %v2852 = vmul.f32 %v2607, %v1513
        %v2853 = vmul.f32 %v2613, %v1513
        %v2854 = vmul.f32 %v2619, %v1513
        %v2855 = vmul.f32 %v2625, %v1513
        %v2856 = vmul.f32 %v2631, %v1513
        %v2857 = vmul.f32 %v2637, %v1513
        %v2858 = vmul.f32 %v2643, %v1513
        %v2859 = vmul.f32 %v2649, %v1513
        %v2860 = vmul.f32 %v2655, %v1513
        %v2861 = vmul.f32 %v2661, %v1513
        %v2862 = vmul.f32 %v2667, %v1513
        %v2863 = vmul.f32 %v2673, %v1513
        %v2864 = vmul.f32 %v2679, %v1513
        %v2865 = vmul.f32 %v2685, %v1513
        %v2866 = vmul.f32 %v2691, %v1513
        %v2867 = vmul.f32 %v2697, %v1513
        %v2868 = vmul.f32 %v2703, %v1513
        %v2869 = vmul.f32 %v2709, %v1513
        %v2870 = vmul.f32 %v2715, %v1513
        %v2871 = vmul.f32 %v2721, %v1513
        %v2872 = vmul.f32 %v2727, %v1513
        %v2873 = vmul.f32 %v2733, %v1513
        %v2874 = vmul.f32 %v2739, %v1513
        %v2875 = vmul.f32 %v2745, %v1513
        %v2876 = vmul.f32 %v2751, %v1513
        %v2877 = vmul.f32 %v2757, %v1513
        %v2878 = vmul.f32 %v2763, %v1513
        %v2879 = vmul.f32 %v2769, %v1513
        %v2880 = vmul.f32 %v2775, %v1513
        %v2881 = vmul.f32 %v2781, %v1513
        %v2882 = vmul.f32 %v2787, %v1513
        %v2883 = vmul.f32 %v2793, %v1513
        %v2884 = vmul.f32 %v2799, %v1513
        %v2885 = vmul.f32 %v2805, %v1513
        %v2886 = vsub.f32 %v918, %v2806
        %v2887 = vsub.f32 %v967, %v2807
        %v2888 = vsub.f32 %v1016, %v2808
        %v2889 = vsub.f32 %v1065, %v2809
        %v2890 = vsub.f32 %v1114, %v2810
        %v2891 = vsub.f32 %v920, %v2811
        %v2892 = vsub.f32 %v969, %v2812
        %v2893 = vsub.f32 %v1018, %v2813
        %v2894 = vsub.f32 %v1067, %v2814
        %v2895 = vsub.f32 %v1116, %v2815
        %v2896 = vsub.f32 %v923, %v2816
        %v2897 = vsub.f32 %v972, %v2817
        %v2898 = vsub.f32 %v1021, %v2818
        %v2899 = vsub.f32 %v1070, %v2819
        %v2900 = vsub.f32 %v1119, %v2820
        %v2901 = vsub.f32 %v925, %v2821
        %v2902 = vsub.f32 %v974, %v2822
        %v2903 = vsub.f32 %v1023, %v2823
        %v2904 = vsub.f32 %v1072, %v2824
        %v2905 = vsub.f32 %v1121, %v2825
        %v2906 = vsub.f32 %v928, %v2826
        %v2907 = vsub.f32 %v977, %v2827
        %v2908 = vsub.f32 %v1026, %v2828
        %v2909 = vsub.f32 %v1075, %v2829
        %v2910 = vsub.f32 %v1124, %v2830
        %v2911 = vsub.f32 %v930, %v2831
        %v2912 = vsub.f32 %v979, %v2832
        %v2913 = vsub.f32 %v1028, %v2833
        %v2914 = vsub.f32 %v1077, %v2834
        %v2915 = vsub.f32 %v1126, %v2835
        %v2916 = vsub.f32 %v933, %v2836
        %v2917 = vsub.f32 %v982, %v2837
        %v2918 = vsub.f32 %v1031, %v2838
        %v2919 = vsub.f32 %v1080, %v2839
        %v2920 = vsub.f32 %v1129, %v2840
        %v2921 = vsub.f32 %v935, %v2841
        %v2922 = vsub.f32 %v984, %v2842
        %v2923 = vsub.f32 %v1033, %v2843
        %v2924 = vsub.f32 %v1082, %v2844
        %v2925 = vsub.f32 %v1131, %v2845
        %v2926 = vsub.f32 %v938, %v2846
        %v2927 = vsub.f32 %v987, %v2847
        %v2928 = vsub.f32 %v1036, %v2848
        %v2929 = vsub.f32 %v1085, %v2849
        %v2930 = vsub.f32 %v1134, %v2850
        %v2931 = vsub.f32 %v940, %v2851
        %v2932 = vsub.f32 %v989, %v2852
        %v2933 = vsub.f32 %v1038, %v2853
        %v2934 = vsub.f32 %v1087, %v2854
        %v2935 = vsub.f32 %v1136, %v2855
        %v2936 = vsub.f32 %v943, %v2856
        %v2937 = vsub.f32 %v992, %v2857
        %v2938 = vsub.f32 %v1041, %v2858
        %v2939 = vsub.f32 %v1090, %v2859
        %v2940 = vsub.f32 %v1139, %v2860
        %v2941 = vsub.f32 %v945, %v2861
        %v2942 = vsub.f32 %v994, %v2862
        %v2943 = vsub.f32 %v1043, %v2863
        %v2944 = vsub.f32 %v1092, %v2864
        %v2945 = vsub.f32 %v1141, %v2865
        %v2946 = vsub.f32 %v948, %v2866
        %v2947 = vsub.f32 %v997, %v2867
        %v2948 = vsub.f32 %v1046, %v2868
        %v2949 = vsub.f32 %v1095, %v2869
        %v2950 = vsub.f32 %v1144, %v2870
        %v2951 = vsub.f32 %v950, %v2871
        %v2952 = vsub.f32 %v999, %v2872
        %v2953 = vsub.f32 %v1048, %v2873
        %v2954 = vsub.f32 %v1097, %v2874
        %v2955 = vsub.f32 %v1146, %v2875
        %v2956 = vsub.f32 %v953, %v2876
        %v2957 = vsub.f32 %v1002, %v2877
        %v2958 = vsub.f32 %v1051, %v2878
        %v2959 = vsub.f32 %v1100, %v2879
        %v2960 = vsub.f32 %v1149, %v2880
        %v2961 = vsub.f32 %v955, %v2881
        %v2962 = vsub.f32 %v1004, %v2882
        %v2963 = vsub.f32 %v1053, %v2883
        %v2964 = vsub.f32 %v1102, %v2884
        %v2965 = vsub.f32 %v1151, %v2885
        %v2966 = vmul.f32 %v2886, %v2886
        %v2967 = vmul.f32 %v2887, %v2887
        %v2968 = vmul.f32 %v2888, %v2888
        %v2969 = vmul.f32 %v2889, %v2889
        %v2970 = vmul.f32 %v2890, %v2890
        %v2971 = vmul.f32 %v2891, %v2891
        %v2972 = vmul.f32 %v2892, %v2892
        %v2973 = vmul.f32 %v2893, %v2893
        %v2974 = vmul.f32 %v2894, %v2894
        %v2975 = vmul.f32 %v2895, %v2895
        %v2976 = vmul.f32 %v2896, %v2896
        %v2977 = vmul.f32 %v2897, %v2897
        %v2978 = vmul.f32 %v2898, %v2898
        %v2979 = vmul.f32 %v2899, %v2899
        %v2980 = vmul.f32 %v2900, %v2900
        %v2981 = vmul.f32 %v2901, %v2901
        %v2982 = vmul.f32 %v2902, %v2902
        %v2983 = vmul.f32 %v2903, %v2903
        %v2984 = vmul.f32 %v2904, %v2904
        %v2985 = vmul.f32 %v2905, %v2905
        %v2986 = vmul.f32 %v2906, %v2906
        %v2987 = vmul.f32 %v2907, %v2907
        %v2988 = vmul.f32 %v2908, %v2908
        %v2989 = vmul.f32 %v2909, %v2909
        %v2990 = vmul.f32 %v2910, %v2910
        %v2991 = vmul.f32 %v2911, %v2911
        %v2992 = vmul.f32 %v2912, %v2912
        %v2993 = vmul.f32 %v2913, %v2913
        %v2994 = vmul.f32 %v2914, %v2914
        %v2995 = vmul.f32 %v2915, %v2915
        %v2996 = vmul.f32 %v2916, %v2916
        %v2997 = vmul.f32 %v2917, %v2917
        %v2998 = vmul.f32 %v2918, %v2918
        %v2999 = vmul.f32 %v2919, %v2919
        %v3000 = vmul.f32 %v2920, %v2920
        %v3001 = vmul.f32 %v2921, %v2921
        %v3002 = vmul.f32 %v2922, %v2922
        %v3003 = vmul.f32 %v2923, %v2923
        %v3004 = vmul.f32 %v2924, %v2924
        %v3005 = vmul.f32 %v2925, %v2925
        %v3006 = vmul.f32 %v2926, %v2926
        %v3007 = vmul.f32 %v2927, %v2927
        %v3008 = vmul.f32 %v2928, %v2928
        %v3009 = vmul.f32 %v2929, %v2929
        %v3010 = vmul.f32 %v2930, %v2930
        %v3011 = vmul.f32 %v2931, %v2931
        %v3012 = vmul.f32 %v2932, %v2932
        %v3013 = vmul.f32 %v2933, %v2933
        %v3014 = vmul.f32 %v2934, %v2934
        %v3015 = vmul.f32 %v2935, %v2935
        %v3016 = vmul.f32 %v2936, %v2936
        %v3017 = vmul.f32 %v2937, %v2937
        %v3018 = vmul.f32 %v2938, %v2938
        %v3019 = vmul.f32 %v2939, %v2939
        %v3020 = vmul.f32 %v2940, %v2940
        %v3021 = vmul.f32 %v2941, %v2941
        %v3022 = vmul.f32 %v2942, %v2942
        %v3023 = vmul.f32 %v2943, %v2943
        %v3024 = vmul.f32 %v2944, %v2944
        %v3025 = vmul.f32 %v2945, %v2945
        %v3026 = vmul.f32 %v2946, %v2946
        %v3027 = vmul.f32 %v2947, %v2947
        %v3028 = vmul.f32 %v2948, %v2948
        %v3029 = vmul.f32 %v2949, %v2949
        %v3030 = vmul.f32 %v2950, %v2950
        %v3031 = vmul.f32 %v2951, %v2951
        %v3032 = vmul.f32 %v2952, %v2952
        %v3033 = vmul.f32 %v2953, %v2953
        %v3034 = vmul.f32 %v2954, %v2954
        %v3035 = vmul.f32 %v2955, %v2955
        %v3036 = vmul.f32 %v2956, %v2956
        %v3037 = vmul.f32 %v2957, %v2957
        %v3038 = vmul.f32 %v2958, %v2958
        %v3039 = vmul.f32 %v2959, %v2959
        %v3040 = vmul.f32 %v2960, %v2960
        %v3041 = vmul.f32 %v2961, %v2961
        %v3042 = vmul.f32 %v2962, %v2962
        %v3043 = vmul.f32 %v2963, %v2963
        %v3044 = vmul.f32 %v2964, %v2964
        %v3045 = vmul.f32 %v2965, %v2965
        %v3046 = vrot.slane %v2966, 4
        %v3047 = vadd.f32 %v2966, %v3046
        %v3048 = vrot.slane %v3047, 2
        %v3049 = vadd.f32 %v3047, %v3048
        %v3050 = vrot.slane %v3049, 1
        %v3051 = vadd.f32 %v3049, %v3050
        %v3052 = vrot.slane %v2967, 4
        %v3053 = vadd.f32 %v2967, %v3052
        %v3054 = vrot.slane %v3053, 2
        %v3055 = vadd.f32 %v3053, %v3054
        %v3056 = vrot.slane %v3055, 1
        %v3057 = vadd.f32 %v3055, %v3056
        %v3058 = vrot.slane %v2968, 4
        %v3059 = vadd.f32 %v2968, %v3058
        %v3060 = vrot.slane %v3059, 2
        %v3061 = vadd.f32 %v3059, %v3060
        %v3062 = vrot.slane %v3061, 1
        %v3063 = vadd.f32 %v3061, %v3062
        %v3064 = vrot.slane %v2969, 4
        %v3065 = vadd.f32 %v2969, %v3064
        %v3066 = vrot.slane %v3065, 2
        %v3067 = vadd.f32 %v3065, %v3066
        %v3068 = vrot.slane %v3067, 1
        %v3069 = vadd.f32 %v3067, %v3068
        %v3070 = vrot.slane %v2970, 4
        %v3071 = vadd.f32 %v2970, %v3070
        %v3072 = vrot.slane %v3071, 2
        %v3073 = vadd.f32 %v3071, %v3072
        %v3074 = vrot.slane %v3073, 1
        %v3075 = vadd.f32 %v3073, %v3074
        %v3076 = vrot.slane %v2971, 4
        %v3077 = vadd.f32 %v2971, %v3076
        %v3078 = vrot.slane %v3077, 2
        %v3079 = vadd.f32 %v3077, %v3078
        %v3080 = vrot.slane %v3079, 1
        %v3081 = vadd.f32 %v3079, %v3080
        %v3082 = vrot.slane %v2972, 4
        %v3083 = vadd.f32 %v2972, %v3082
        %v3084 = vrot.slane %v3083, 2
        %v3085 = vadd.f32 %v3083, %v3084
        %v3086 = vrot.slane %v3085, 1
        %v3087 = vadd.f32 %v3085, %v3086
        %v3088 = vrot.slane %v2973, 4
        %v3089 = vadd.f32 %v2973, %v3088
        %v3090 = vrot.slane %v3089, 2
        %v3091 = vadd.f32 %v3089, %v3090
        %v3092 = vrot.slane %v3091, 1
        %v3093 = vadd.f32 %v3091, %v3092
        %v3094 = vrot.slane %v2974, 4
        %v3095 = vadd.f32 %v2974, %v3094
        %v3096 = vrot.slane %v3095, 2
        %v3097 = vadd.f32 %v3095, %v3096
        %v3098 = vrot.slane %v3097, 1
        %v3099 = vadd.f32 %v3097, %v3098
        %v3100 = vrot.slane %v2975, 4
        %v3101 = vadd.f32 %v2975, %v3100
        %v3102 = vrot.slane %v3101, 2
        %v3103 = vadd.f32 %v3101, %v3102
        %v3104 = vrot.slane %v3103, 1
        %v3105 = vadd.f32 %v3103, %v3104
        %v3106 = vrot.slane %v2976, 4
        %v3107 = vadd.f32 %v2976, %v3106
        %v3108 = vrot.slane %v3107, 2
        %v3109 = vadd.f32 %v3107, %v3108
        %v3110 = vrot.slane %v3109, 1
        %v3111 = vadd.f32 %v3109, %v3110
        %v3112 = vrot.slane %v2977, 4
        %v3113 = vadd.f32 %v2977, %v3112
        %v3114 = vrot.slane %v3113, 2
        %v3115 = vadd.f32 %v3113, %v3114
        %v3116 = vrot.slane %v3115, 1
        %v3117 = vadd.f32 %v3115, %v3116
        %v3118 = vrot.slane %v2978, 4
        %v3119 = vadd.f32 %v2978, %v3118
        %v3120 = vrot.slane %v3119, 2
        %v3121 = vadd.f32 %v3119, %v3120
        %v3122 = vrot.slane %v3121, 1
        %v3123 = vadd.f32 %v3121, %v3122
        %v3124 = vrot.slane %v2979, 4
        %v3125 = vadd.f32 %v2979, %v3124
        %v3126 = vrot.slane %v3125, 2
        %v3127 = vadd.f32 %v3125, %v3126
        %v3128 = vrot.slane %v3127, 1
        %v3129 = vadd.f32 %v3127, %v3128
        %v3130 = vrot.slane %v2980, 4
        %v3131 = vadd.f32 %v2980, %v3130
        %v3132 = vrot.slane %v3131, 2
        %v3133 = vadd.f32 %v3131, %v3132
        %v3134 = vrot.slane %v3133, 1
        %v3135 = vadd.f32 %v3133, %v3134
        %v3136 = vrot.slane %v2981, 4
        %v3137 = vadd.f32 %v2981, %v3136
        %v3138 = vrot.slane %v3137, 2
        %v3139 = vadd.f32 %v3137, %v3138
        %v3140 = vrot.slane %v3139, 1
        %v3141 = vadd.f32 %v3139, %v3140
        %v3142 = vrot.slane %v2982, 4
        %v3143 = vadd.f32 %v2982, %v3142
        %v3144 = vrot.slane %v3143, 2
        %v3145 = vadd.f32 %v3143, %v3144
        %v3146 = vrot.slane %v3145, 1
        %v3147 = vadd.f32 %v3145, %v3146
        %v3148 = vrot.slane %v2983, 4
        %v3149 = vadd.f32 %v2983, %v3148
        %v3150 = vrot.slane %v3149, 2
        %v3151 = vadd.f32 %v3149, %v3150
        %v3152 = vrot.slane %v3151, 1
        %v3153 = vadd.f32 %v3151, %v3152
        %v3154 = vrot.slane %v2984, 4
        %v3155 = vadd.f32 %v2984, %v3154
        %v3156 = vrot.slane %v3155, 2
        %v3157 = vadd.f32 %v3155, %v3156
        %v3158 = vrot.slane %v3157, 1
        %v3159 = vadd.f32 %v3157, %v3158
        %v3160 = vrot.slane %v2985, 4
        %v3161 = vadd.f32 %v2985, %v3160
        %v3162 = vrot.slane %v3161, 2
        %v3163 = vadd.f32 %v3161, %v3162
        %v3164 = vrot.slane %v3163, 1
        %v3165 = vadd.f32 %v3163, %v3164
        %v3166 = vrot.slane %v2986, 4
        %v3167 = vadd.f32 %v2986, %v3166
        %v3168 = vrot.slane %v3167, 2
        %v3169 = vadd.f32 %v3167, %v3168
        %v3170 = vrot.slane %v3169, 1
        %v3171 = vadd.f32 %v3169, %v3170
        %v3172 = vrot.slane %v2987, 4
        %v3173 = vadd.f32 %v2987, %v3172
        %v3174 = vrot.slane %v3173, 2
        %v3175 = vadd.f32 %v3173, %v3174
        %v3176 = vrot.slane %v3175, 1
        %v3177 = vadd.f32 %v3175, %v3176
        %v3178 = vrot.slane %v2988, 4
        %v3179 = vadd.f32 %v2988, %v3178
        %v3180 = vrot.slane %v3179, 2
        %v3181 = vadd.f32 %v3179, %v3180
        %v3182 = vrot.slane %v3181, 1
        %v3183 = vadd.f32 %v3181, %v3182
        %v3184 = vrot.slane %v2989, 4
        %v3185 = vadd.f32 %v2989, %v3184
        %v3186 = vrot.slane %v3185, 2
        %v3187 = vadd.f32 %v3185, %v3186
        %v3188 = vrot.slane %v3187, 1
        %v3189 = vadd.f32 %v3187, %v3188
        %v3190 = vrot.slane %v2990, 4
        %v3191 = vadd.f32 %v2990, %v3190
        %v3192 = vrot.slane %v3191, 2
        %v3193 = vadd.f32 %v3191, %v3192
        %v3194 = vrot.slane %v3193, 1
        %v3195 = vadd.f32 %v3193, %v3194
        %v3196 = vrot.slane %v2991, 4
        %v3197 = vadd.f32 %v2991, %v3196
        %v3198 = vrot.slane %v3197, 2
        %v3199 = vadd.f32 %v3197, %v3198
        %v3200 = vrot.slane %v3199, 1
        %v3201 = vadd.f32 %v3199, %v3200
        %v3202 = vrot.slane %v2992, 4
        %v3203 = vadd.f32 %v2992, %v3202
        %v3204 = vrot.slane %v3203, 2
        %v3205 = vadd.f32 %v3203, %v3204
        %v3206 = vrot.slane %v3205, 1
        %v3207 = vadd.f32 %v3205, %v3206
        %v3208 = vrot.slane %v2993, 4
        %v3209 = vadd.f32 %v2993, %v3208
        %v3210 = vrot.slane %v3209, 2
        %v3211 = vadd.f32 %v3209, %v3210
        %v3212 = vrot.slane %v3211, 1
        %v3213 = vadd.f32 %v3211, %v3212
        %v3214 = vrot.slane %v2994, 4
        %v3215 = vadd.f32 %v2994, %v3214
        %v3216 = vrot.slane %v3215, 2
        %v3217 = vadd.f32 %v3215, %v3216
        %v3218 = vrot.slane %v3217, 1
        %v3219 = vadd.f32 %v3217, %v3218
        %v3220 = vrot.slane %v2995, 4
        %v3221 = vadd.f32 %v2995, %v3220
        %v3222 = vrot.slane %v3221, 2
        %v3223 = vadd.f32 %v3221, %v3222
        %v3224 = vrot.slane %v3223, 1
        %v3225 = vadd.f32 %v3223, %v3224
        %v3226 = vrot.slane %v2996, 4
        %v3227 = vadd.f32 %v2996, %v3226
        %v3228 = vrot.slane %v3227, 2
        %v3229 = vadd.f32 %v3227, %v3228
        %v3230 = vrot.slane %v3229, 1
        %v3231 = vadd.f32 %v3229, %v3230
        %v3232 = vrot.slane %v2997, 4
        %v3233 = vadd.f32 %v2997, %v3232
        %v3234 = vrot.slane %v3233, 2
        %v3235 = vadd.f32 %v3233, %v3234
        %v3236 = vrot.slane %v3235, 1
        %v3237 = vadd.f32 %v3235, %v3236
        %v3238 = vrot.slane %v2998, 4
        %v3239 = vadd.f32 %v2998, %v3238
        %v3240 = vrot.slane %v3239, 2
        %v3241 = vadd.f32 %v3239, %v3240
        %v3242 = vrot.slane %v3241, 1
        %v3243 = vadd.f32 %v3241, %v3242
        %v3244 = vrot.slane %v2999, 4
        %v3245 = vadd.f32 %v2999, %v3244
        %v3246 = vrot.slane %v3245, 2
        %v3247 = vadd.f32 %v3245, %v3246
        %v3248 = vrot.slane %v3247, 1
        %v3249 = vadd.f32 %v3247, %v3248
        %v3250 = vrot.slane %v3000, 4
        %v3251 = vadd.f32 %v3000, %v3250
        %v3252 = vrot.slane %v3251, 2
        %v3253 = vadd.f32 %v3251, %v3252
        %v3254 = vrot.slane %v3253, 1
        %v3255 = vadd.f32 %v3253, %v3254
        %v3256 = vrot.slane %v3001, 4
        %v3257 = vadd.f32 %v3001, %v3256
        %v3258 = vrot.slane %v3257, 2
        %v3259 = vadd.f32 %v3257, %v3258
        %v3260 = vrot.slane %v3259, 1
        %v3261 = vadd.f32 %v3259, %v3260
        %v3262 = vrot.slane %v3002, 4
        %v3263 = vadd.f32 %v3002, %v3262
        %v3264 = vrot.slane %v3263, 2
        %v3265 = vadd.f32 %v3263, %v3264
        %v3266 = vrot.slane %v3265, 1
        %v3267 = vadd.f32 %v3265, %v3266
        %v3268 = vrot.slane %v3003, 4
        %v3269 = vadd.f32 %v3003, %v3268
        %v3270 = vrot.slane %v3269, 2
        %v3271 = vadd.f32 %v3269, %v3270
        %v3272 = vrot.slane %v3271, 1
        %v3273 = vadd.f32 %v3271, %v3272
        %v3274 = vrot.slane %v3004, 4
        %v3275 = vadd.f32 %v3004, %v3274
        %v3276 = vrot.slane %v3275, 2
        %v3277 = vadd.f32 %v3275, %v3276
        %v3278 = vrot.slane %v3277, 1
        %v3279 = vadd.f32 %v3277, %v3278
        %v3280 = vrot.slane %v3005, 4
        %v3281 = vadd.f32 %v3005, %v3280
        %v3282 = vrot.slane %v3281, 2
        %v3283 = vadd.f32 %v3281, %v3282
        %v3284 = vrot.slane %v3283, 1
        %v3285 = vadd.f32 %v3283, %v3284
        %v3286 = vrot.slane %v3006, 4
        %v3287 = vadd.f32 %v3006, %v3286
        %v3288 = vrot.slane %v3287, 2
        %v3289 = vadd.f32 %v3287, %v3288
        %v3290 = vrot.slane %v3289, 1
        %v3291 = vadd.f32 %v3289, %v3290
        %v3292 = vrot.slane %v3007, 4
        %v3293 = vadd.f32 %v3007, %v3292
        %v3294 = vrot.slane %v3293, 2
        %v3295 = vadd.f32 %v3293, %v3294
        %v3296 = vrot.slane %v3295, 1
        %v3297 = vadd.f32 %v3295, %v3296
        %v3298 = vrot.slane %v3008, 4
        %v3299 = vadd.f32 %v3008, %v3298
        %v3300 = vrot.slane %v3299, 2
        %v3301 = vadd.f32 %v3299, %v3300
        %v3302 = vrot.slane %v3301, 1
        %v3303 = vadd.f32 %v3301, %v3302
        %v3304 = vrot.slane %v3009, 4
        %v3305 = vadd.f32 %v3009, %v3304
        %v3306 = vrot.slane %v3305, 2
        %v3307 = vadd.f32 %v3305, %v3306
        %v3308 = vrot.slane %v3307, 1
        %v3309 = vadd.f32 %v3307, %v3308
        %v3310 = vrot.slane %v3010, 4
        %v3311 = vadd.f32 %v3010, %v3310
        %v3312 = vrot.slane %v3311, 2
        %v3313 = vadd.f32 %v3311, %v3312
        %v3314 = vrot.slane %v3313, 1
        %v3315 = vadd.f32 %v3313, %v3314
        %v3316 = vrot.slane %v3011, 4
        %v3317 = vadd.f32 %v3011, %v3316
        %v3318 = vrot.slane %v3317, 2
        %v3319 = vadd.f32 %v3317, %v3318
        %v3320 = vrot.slane %v3319, 1
        %v3321 = vadd.f32 %v3319, %v3320
        %v3322 = vrot.slane %v3012, 4
        %v3323 = vadd.f32 %v3012, %v3322
        %v3324 = vrot.slane %v3323, 2
        %v3325 = vadd.f32 %v3323, %v3324
        %v3326 = vrot.slane %v3325, 1
        %v3327 = vadd.f32 %v3325, %v3326
        %v3328 = vrot.slane %v3013, 4
        %v3329 = vadd.f32 %v3013, %v3328
        %v3330 = vrot.slane %v3329, 2
        %v3331 = vadd.f32 %v3329, %v3330
        %v3332 = vrot.slane %v3331, 1
        %v3333 = vadd.f32 %v3331, %v3332
        %v3334 = vrot.slane %v3014, 4
        %v3335 = vadd.f32 %v3014, %v3334
        %v3336 = vrot.slane %v3335, 2
        %v3337 = vadd.f32 %v3335, %v3336
        %v3338 = vrot.slane %v3337, 1
        %v3339 = vadd.f32 %v3337, %v3338
        %v3340 = vrot.slane %v3015, 4
        %v3341 = vadd.f32 %v3015, %v3340
        %v3342 = vrot.slane %v3341, 2
        %v3343 = vadd.f32 %v3341, %v3342
        %v3344 = vrot.slane %v3343, 1
        %v3345 = vadd.f32 %v3343, %v3344
        %v3346 = vrot.slane %v3016, 4
        %v3347 = vadd.f32 %v3016, %v3346
        %v3348 = vrot.slane %v3347, 2
        %v3349 = vadd.f32 %v3347, %v3348
        %v3350 = vrot.slane %v3349, 1
        %v3351 = vadd.f32 %v3349, %v3350
        %v3352 = vrot.slane %v3017, 4
        %v3353 = vadd.f32 %v3017, %v3352
        %v3354 = vrot.slane %v3353, 2
        %v3355 = vadd.f32 %v3353, %v3354
        %v3356 = vrot.slane %v3355, 1
        %v3357 = vadd.f32 %v3355, %v3356
        %v3358 = vrot.slane %v3018, 4
        %v3359 = vadd.f32 %v3018, %v3358
        %v3360 = vrot.slane %v3359, 2
        %v3361 = vadd.f32 %v3359, %v3360
        %v3362 = vrot.slane %v3361, 1
        %v3363 = vadd.f32 %v3361, %v3362
        %v3364 = vrot.slane %v3019, 4
        %v3365 = vadd.f32 %v3019, %v3364
        %v3366 = vrot.slane %v3365, 2
        %v3367 = vadd.f32 %v3365, %v3366
        %v3368 = vrot.slane %v3367, 1
        %v3369 = vadd.f32 %v3367, %v3368
        %v3370 = vrot.slane %v3020, 4
        %v3371 = vadd.f32 %v3020, %v3370
        %v3372 = vrot.slane %v3371, 2
        %v3373 = vadd.f32 %v3371, %v3372
        %v3374 = vrot.slane %v3373, 1
        %v3375 = vadd.f32 %v3373, %v3374
        %v3376 = vrot.slane %v3021, 4
        %v3377 = vadd.f32 %v3021, %v3376
        %v3378 = vrot.slane %v3377, 2
        %v3379 = vadd.f32 %v3377, %v3378
        %v3380 = vrot.slane %v3379, 1
        %v3381 = vadd.f32 %v3379, %v3380
        %v3382 = vrot.slane %v3022, 4
        %v3383 = vadd.f32 %v3022, %v3382
        %v3384 = vrot.slane %v3383, 2
        %v3385 = vadd.f32 %v3383, %v3384
        %v3386 = vrot.slane %v3385, 1
        %v3387 = vadd.f32 %v3385, %v3386
        %v3388 = vrot.slane %v3023, 4
        %v3389 = vadd.f32 %v3023, %v3388
        %v3390 = vrot.slane %v3389, 2
        %v3391 = vadd.f32 %v3389, %v3390
        %v3392 = vrot.slane %v3391, 1
        %v3393 = vadd.f32 %v3391, %v3392
        %v3394 = vrot.slane %v3024, 4
        %v3395 = vadd.f32 %v3024, %v3394
        %v3396 = vrot.slane %v3395, 2
        %v3397 = vadd.f32 %v3395, %v3396
        %v3398 = vrot.slane %v3397, 1
        %v3399 = vadd.f32 %v3397, %v3398
        %v3400 = vrot.slane %v3025, 4
        %v3401 = vadd.f32 %v3025, %v3400
        %v3402 = vrot.slane %v3401, 2
        %v3403 = vadd.f32 %v3401, %v3402
        %v3404 = vrot.slane %v3403, 1
        %v3405 = vadd.f32 %v3403, %v3404
        %v3406 = vrot.slane %v3026, 4
        %v3407 = vadd.f32 %v3026, %v3406
        %v3408 = vrot.slane %v3407, 2
        %v3409 = vadd.f32 %v3407, %v3408
        %v3410 = vrot.slane %v3409, 1
        %v3411 = vadd.f32 %v3409, %v3410
        %v3412 = vrot.slane %v3027, 4
        %v3413 = vadd.f32 %v3027, %v3412
        %v3414 = vrot.slane %v3413, 2
        %v3415 = vadd.f32 %v3413, %v3414
        %v3416 = vrot.slane %v3415, 1
        %v3417 = vadd.f32 %v3415, %v3416
        %v3418 = vrot.slane %v3028, 4
        %v3419 = vadd.f32 %v3028, %v3418
        %v3420 = vrot.slane %v3419, 2
        %v3421 = vadd.f32 %v3419, %v3420
        %v3422 = vrot.slane %v3421, 1
        %v3423 = vadd.f32 %v3421, %v3422
        %v3424 = vrot.slane %v3029, 4
        %v3425 = vadd.f32 %v3029, %v3424
        %v3426 = vrot.slane %v3425, 2
        %v3427 = vadd.f32 %v3425, %v3426
        %v3428 = vrot.slane %v3427, 1
        %v3429 = vadd.f32 %v3427, %v3428
        %v3430 = vrot.slane %v3030, 4
        %v3431 = vadd.f32 %v3030, %v3430
        %v3432 = vrot.slane %v3431, 2
        %v3433 = vadd.f32 %v3431, %v3432
        %v3434 = vrot.slane %v3433, 1
        %v3435 = vadd.f32 %v3433, %v3434
        %v3436 = vrot.slane %v3031, 4
        %v3437 = vadd.f32 %v3031, %v3436
        %v3438 = vrot.slane %v3437, 2
        %v3439 = vadd.f32 %v3437, %v3438
        %v3440 = vrot.slane %v3439, 1
        %v3441 = vadd.f32 %v3439, %v3440
        %v3442 = vrot.slane %v3032, 4
        %v3443 = vadd.f32 %v3032, %v3442
        %v3444 = vrot.slane %v3443, 2
        %v3445 = vadd.f32 %v3443, %v3444
        %v3446 = vrot.slane %v3445, 1
        %v3447 = vadd.f32 %v3445, %v3446
        %v3448 = vrot.slane %v3033, 4
        %v3449 = vadd.f32 %v3033, %v3448
        %v3450 = vrot.slane %v3449, 2
        %v3451 = vadd.f32 %v3449, %v3450
        %v3452 = vrot.slane %v3451, 1
        %v3453 = vadd.f32 %v3451, %v3452
        %v3454 = vrot.slane %v3034, 4
        %v3455 = vadd.f32 %v3034, %v3454
        %v3456 = vrot.slane %v3455, 2
        %v3457 = vadd.f32 %v3455, %v3456
        %v3458 = vrot.slane %v3457, 1
        %v3459 = vadd.f32 %v3457, %v3458
        %v3460 = vrot.slane %v3035, 4
        %v3461 = vadd.f32 %v3035, %v3460
        %v3462 = vrot.slane %v3461, 2
        %v3463 = vadd.f32 %v3461, %v3462
        %v3464 = vrot.slane %v3463, 1
        %v3465 = vadd.f32 %v3463, %v3464
        %v3466 = vrot.slane %v3036, 4
        %v3467 = vadd.f32 %v3036, %v3466
        %v3468 = vrot.slane %v3467, 2
        %v3469 = vadd.f32 %v3467, %v3468
        %v3470 = vrot.slane %v3469, 1
        %v3471 = vadd.f32 %v3469, %v3470
        %v3472 = vrot.slane %v3037, 4
        %v3473 = vadd.f32 %v3037, %v3472
        %v3474 = vrot.slane %v3473, 2
        %v3475 = vadd.f32 %v3473, %v3474
        %v3476 = vrot.slane %v3475, 1
        %v3477 = vadd.f32 %v3475, %v3476
        %v3478 = vrot.slane %v3038, 4
        %v3479 = vadd.f32 %v3038, %v3478
        %v3480 = vrot.slane %v3479, 2
        %v3481 = vadd.f32 %v3479, %v3480
        %v3482 = vrot.slane %v3481, 1
        %v3483 = vadd.f32 %v3481, %v3482
        %v3484 = vrot.slane %v3039, 4
        %v3485 = vadd.f32 %v3039, %v3484
        %v3486 = vrot.slane %v3485, 2
        %v3487 = vadd.f32 %v3485, %v3486
        %v3488 = vrot.slane %v3487, 1
        %v3489 = vadd.f32 %v3487, %v3488
        %v3490 = vrot.slane %v3040, 4
        %v3491 = vadd.f32 %v3040, %v3490
        %v3492 = vrot.slane %v3491, 2
        %v3493 = vadd.f32 %v3491, %v3492
        %v3494 = vrot.slane %v3493, 1
        %v3495 = vadd.f32 %v3493, %v3494
        %v3496 = vrot.slane %v3041, 4
        %v3497 = vadd.f32 %v3041, %v3496
        %v3498 = vrot.slane %v3497, 2
        %v3499 = vadd.f32 %v3497, %v3498
        %v3500 = vrot.slane %v3499, 1
        %v3501 = vadd.f32 %v3499, %v3500
        %v3502 = vrot.slane %v3042, 4
        %v3503 = vadd.f32 %v3042, %v3502
        %v3504 = vrot.slane %v3503, 2
        %v3505 = vadd.f32 %v3503, %v3504
        %v3506 = vrot.slane %v3505, 1
        %v3507 = vadd.f32 %v3505, %v3506
        %v3508 = vrot.slane %v3043, 4
        %v3509 = vadd.f32 %v3043, %v3508
        %v3510 = vrot.slane %v3509, 2
        %v3511 = vadd.f32 %v3509, %v3510
        %v3512 = vrot.slane %v3511, 1
        %v3513 = vadd.f32 %v3511, %v3512
        %v3514 = vrot.slane %v3044, 4
        %v3515 = vadd.f32 %v3044, %v3514
        %v3516 = vrot.slane %v3515, 2
        %v3517 = vadd.f32 %v3515, %v3516
        %v3518 = vrot.slane %v3517, 1
        %v3519 = vadd.f32 %v3517, %v3518
        %v3520 = vrot.slane %v3045, 4
        %v3521 = vadd.f32 %v3045, %v3520
        %v3522 = vrot.slane %v3521, 2
        %v3523 = vadd.f32 %v3521, %v3522
        %v3524 = vrot.slane %v3523, 1
        %v3525 = vadd.f32 %v3523, %v3524
        %v3526 = vmul.f32 %v3051, %v1513
        %v3527 = vmul.f32 %v3057, %v1513
        %v3528 = vmul.f32 %v3063, %v1513
        %v3529 = vmul.f32 %v3069, %v1513
        %v3530 = vmul.f32 %v3075, %v1513
        %v3531 = vmul.f32 %v3081, %v1513
        %v3532 = vmul.f32 %v3087, %v1513
        %v3533 = vmul.f32 %v3093, %v1513
        %v3534 = vmul.f32 %v3099, %v1513
        %v3535 = vmul.f32 %v3105, %v1513
        %v3536 = vmul.f32 %v3111, %v1513
        %v3537 = vmul.f32 %v3117, %v1513
        %v3538 = vmul.f32 %v3123, %v1513
        %v3539 = vmul.f32 %v3129, %v1513
        %v3540 = vmul.f32 %v3135, %v1513
        %v3541 = vmul.f32 %v3141, %v1513
        %v3542 = vmul.f32 %v3147, %v1513
        %v3543 = vmul.f32 %v3153, %v1513
        %v3544 = vmul.f32 %v3159, %v1513
        %v3545 = vmul.f32 %v3165, %v1513
        %v3546 = vmul.f32 %v3171, %v1513
        %v3547 = vmul.f32 %v3177, %v1513
        %v3548 = vmul.f32 %v3183, %v1513
        %v3549 = vmul.f32 %v3189, %v1513
        %v3550 = vmul.f32 %v3195, %v1513
        %v3551 = vmul.f32 %v3201, %v1513
        %v3552 = vmul.f32 %v3207, %v1513
        %v3553 = vmul.f32 %v3213, %v1513
        %v3554 = vmul.f32 %v3219, %v1513
        %v3555 = vmul.f32 %v3225, %v1513
        %v3556 = vmul.f32 %v3231, %v1513
        %v3557 = vmul.f32 %v3237, %v1513
        %v3558 = vmul.f32 %v3243, %v1513
        %v3559 = vmul.f32 %v3249, %v1513
        %v3560 = vmul.f32 %v3255, %v1513
        %v3561 = vmul.f32 %v3261, %v1513
        %v3562 = vmul.f32 %v3267, %v1513
        %v3563 = vmul.f32 %v3273, %v1513
        %v3564 = vmul.f32 %v3279, %v1513
        %v3565 = vmul.f32 %v3285, %v1513
        %v3566 = vmul.f32 %v3291, %v1513
        %v3567 = vmul.f32 %v3297, %v1513
        %v3568 = vmul.f32 %v3303, %v1513
        %v3569 = vmul.f32 %v3309, %v1513
        %v3570 = vmul.f32 %v3315, %v1513
        %v3571 = vmul.f32 %v3321, %v1513
        %v3572 = vmul.f32 %v3327, %v1513
        %v3573 = vmul.f32 %v3333, %v1513
        %v3574 = vmul.f32 %v3339, %v1513
        %v3575 = vmul.f32 %v3345, %v1513
        %v3576 = vmul.f32 %v3351, %v1513
        %v3577 = vmul.f32 %v3357, %v1513
        %v3578 = vmul.f32 %v3363, %v1513
        %v3579 = vmul.f32 %v3369, %v1513
        %v3580 = vmul.f32 %v3375, %v1513
        %v3581 = vmul.f32 %v3381, %v1513
        %v3582 = vmul.f32 %v3387, %v1513
        %v3583 = vmul.f32 %v3393, %v1513
        %v3584 = vmul.f32 %v3399, %v1513
        %v3585 = vmul.f32 %v3405, %v1513
        %v3586 = vmul.f32 %v3411, %v1513
        %v3587 = vmul.f32 %v3417, %v1513
        %v3588 = vmul.f32 %v3423, %v1513
        %v3589 = vmul.f32 %v3429, %v1513
        %v3590 = vmul.f32 %v3435, %v1513
        %v3591 = vmul.f32 %v3441, %v1513
        %v3592 = vmul.f32 %v3447, %v1513
        %v3593 = vmul.f32 %v3453, %v1513
        %v3594 = vmul.f32 %v3459, %v1513
        %v3595 = vmul.f32 %v3465, %v1513
        %v3596 = vmul.f32 %v3471, %v1513
        %v3597 = vmul.f32 %v3477, %v1513
        %v3598 = vmul.f32 %v3483, %v1513
        %v3599 = vmul.f32 %v3489, %v1513
        %v3600 = vmul.f32 %v3495, %v1513
        %v3601 = vmul.f32 %v3501, %v1513
        %v3602 = vmul.f32 %v3507, %v1513
        %v3603 = vmul.f32 %v3513, %v1513
        %v3604 = vmul.f32 %v3519, %v1513
        %v3605 = vmul.f32 %v3525, %v1513
        %v3606 = vadd.f32 %v3526, 1e-05
        %v3607 = vadd.f32 %v3527, 1e-05
        %v3608 = vadd.f32 %v3528, 1e-05
        %v3609 = vadd.f32 %v3529, 1e-05
        %v3610 = vadd.f32 %v3530, 1e-05
        %v3611 = vadd.f32 %v3531, 1e-05
        %v3612 = vadd.f32 %v3532, 1e-05
        %v3613 = vadd.f32 %v3533, 1e-05
        %v3614 = vadd.f32 %v3534, 1e-05
        %v3615 = vadd.f32 %v3535, 1e-05
        %v3616 = vadd.f32 %v3536, 1e-05
        %v3617 = vadd.f32 %v3537, 1e-05
        %v3618 = vadd.f32 %v3538, 1e-05
        %v3619 = vadd.f32 %v3539, 1e-05
        %v3620 = vadd.f32 %v3540, 1e-05
        %v3621 = vadd.f32 %v3541, 1e-05
        %v3622 = vadd.f32 %v3542, 1e-05
        %v3623 = vadd.f32 %v3543, 1e-05
        %v3624 = vadd.f32 %v3544, 1e-05
        %v3625 = vadd.f32 %v3545, 1e-05
        %v3626 = vadd.f32 %v3546, 1e-05
        %v3627 = vadd.f32 %v3547, 1e-05
        %v3628 = vadd.f32 %v3548, 1e-05
        %v3629 = vadd.f32 %v3549, 1e-05
        %v3630 = vadd.f32 %v3550, 1e-05
        %v3631 = vadd.f32 %v3551, 1e-05
        %v3632 = vadd.f32 %v3552, 1e-05
        %v3633 = vadd.f32 %v3553, 1e-05
        %v3634 = vadd.f32 %v3554, 1e-05
        %v3635 = vadd.f32 %v3555, 1e-05
        %v3636 = vadd.f32 %v3556, 1e-05
        %v3637 = vadd.f32 %v3557, 1e-05
        %v3638 = vadd.f32 %v3558, 1e-05
        %v3639 = vadd.f32 %v3559, 1e-05
        %v3640 = vadd.f32 %v3560, 1e-05
        %v3641 = vadd.f32 %v3561, 1e-05
        %v3642 = vadd.f32 %v3562, 1e-05
        %v3643 = vadd.f32 %v3563, 1e-05
        %v3644 = vadd.f32 %v3564, 1e-05
        %v3645 = vadd.f32 %v3565, 1e-05
        %v3646 = vadd.f32 %v3566, 1e-05
        %v3647 = vadd.f32 %v3567, 1e-05
        %v3648 = vadd.f32 %v3568, 1e-05
        %v3649 = vadd.f32 %v3569, 1e-05
        %v3650 = vadd.f32 %v3570, 1e-05
        %v3651 = vadd.f32 %v3571, 1e-05
        %v3652 = vadd.f32 %v3572, 1e-05
        %v3653 = vadd.f32 %v3573, 1e-05
        %v3654 = vadd.f32 %v3574, 1e-05
        %v3655 = vadd.f32 %v3575, 1e-05
        %v3656 = vadd.f32 %v3576, 1e-05
        %v3657 = vadd.f32 %v3577, 1e-05
        %v3658 = vadd.f32 %v3578, 1e-05
        %v3659 = vadd.f32 %v3579, 1e-05
        %v3660 = vadd.f32 %v3580, 1e-05
        %v3661 = vadd.f32 %v3581, 1e-05
        %v3662 = vadd.f32 %v3582, 1e-05
        %v3663 = vadd.f32 %v3583, 1e-05
        %v3664 = vadd.f32 %v3584, 1e-05
        %v3665 = vadd.f32 %v3585, 1e-05
        %v3666 = vadd.f32 %v3586, 1e-05
        %v3667 = vadd.f32 %v3587, 1e-05
        %v3668 = vadd.f32 %v3588, 1e-05
        %v3669 = vadd.f32 %v3589, 1e-05
        %v3670 = vadd.f32 %v3590, 1e-05
        %v3671 = vadd.f32 %v3591, 1e-05
        %v3672 = vadd.f32 %v3592, 1e-05
        %v3673 = vadd.f32 %v3593, 1e-05
        %v3674 = vadd.f32 %v3594, 1e-05
        %v3675 = vadd.f32 %v3595, 1e-05
        %v3676 = vadd.f32 %v3596, 1e-05
        %v3677 = vadd.f32 %v3597, 1e-05
        %v3678 = vadd.f32 %v3598, 1e-05
        %v3679 = vadd.f32 %v3599, 1e-05
        %v3680 = vadd.f32 %v3600, 1e-05
        %v3681 = vadd.f32 %v3601, 1e-05
        %v3682 = vadd.f32 %v3602, 1e-05
        %v3683 = vadd.f32 %v3603, 1e-05
        %v3684 = vadd.f32 %v3604, 1e-05
        %v3685 = vadd.f32 %v3605, 1e-05
        %v3686 = vrsqrt.pop %v3606
        %v3687 = vmul.f32 %v3686, %v3606
        %v3688 = vmul.f32 %v3687, %v3686
        %v3689 = vmul.f32 0.5, %v3688
        %v3690 = vsub.f32 1.5, %v3689
        %v3691 = vmul.f32 %v3686, %v3690
        %vm3692 = vweird.f32 %v3606
        %vm3693 = vweird.f32 %v3686
        %vm3694 = vmor %vm3692, %vm3693
        %v3695 = vsel %vm3694, %v3686, %v3691
        %v3696 = vrsqrt.pop %v3607
        %v3697 = vmul.f32 %v3696, %v3607
        %v3698 = vmul.f32 %v3697, %v3696
        %v3699 = vmul.f32 0.5, %v3698
        %v3700 = vsub.f32 1.5, %v3699
        %v3701 = vmul.f32 %v3696, %v3700
        %vm3702 = vweird.f32 %v3607
        %vm3703 = vweird.f32 %v3696
        %vm3704 = vmor %vm3702, %vm3703
        %v3705 = vsel %vm3704, %v3696, %v3701
        %v3706 = vrsqrt.pop %v3608
        %v3707 = vmul.f32 %v3706, %v3608
        %v3708 = vmul.f32 %v3707, %v3706
        %v3709 = vmul.f32 0.5, %v3708
        %v3710 = vsub.f32 1.5, %v3709
        %v3711 = vmul.f32 %v3706, %v3710
        %vm3712 = vweird.f32 %v3608
        %vm3713 = vweird.f32 %v3706
        %vm3714 = vmor %vm3712, %vm3713
        %v3715 = vsel %vm3714, %v3706, %v3711
        %v3716 = vrsqrt.pop %v3609
        %v3717 = vmul.f32 %v3716, %v3609
        %v3718 = vmul.f32 %v3717, %v3716
        %v3719 = vmul.f32 0.5, %v3718
        %v3720 = vsub.f32 1.5, %v3719
        %v3721 = vmul.f32 %v3716, %v3720
        %vm3722 = vweird.f32 %v3609
        %vm3723 = vweird.f32 %v3716
        %vm3724 = vmor %vm3722, %vm3723
        %v3725 = vsel %vm3724, %v3716, %v3721
        %v3726 = vrsqrt.pop %v3610
        %v3727 = vmul.f32 %v3726, %v3610
        %v3728 = vmul.f32 %v3727, %v3726
        %v3729 = vmul.f32 0.5, %v3728
        %v3730 = vsub.f32 1.5, %v3729
        %v3731 = vmul.f32 %v3726, %v3730
        %vm3732 = vweird.f32 %v3610
        %vm3733 = vweird.f32 %v3726
        %vm3734 = vmor %vm3732, %vm3733
        %v3735 = vsel %vm3734, %v3726, %v3731
        %v3736 = vrsqrt.pop %v3611
        %v3737 = vmul.f32 %v3736, %v3611
        %v3738 = vmul.f32 %v3737, %v3736
        %v3739 = vmul.f32 0.5, %v3738
        %v3740 = vsub.f32 1.5, %v3739
        %v3741 = vmul.f32 %v3736, %v3740
        %vm3742 = vweird.f32 %v3611
        %vm3743 = vweird.f32 %v3736
        %vm3744 = vmor %vm3742, %vm3743
        %v3745 = vsel %vm3744, %v3736, %v3741
        %v3746 = vrsqrt.pop %v3612
        %v3747 = vmul.f32 %v3746, %v3612
        %v3748 = vmul.f32 %v3747, %v3746
        %v3749 = vmul.f32 0.5, %v3748
        %v3750 = vsub.f32 1.5, %v3749
        %v3751 = vmul.f32 %v3746, %v3750
        %vm3752 = vweird.f32 %v3612
        %vm3753 = vweird.f32 %v3746
        %vm3754 = vmor %vm3752, %vm3753
        %v3755 = vsel %vm3754, %v3746, %v3751
        %v3756 = vrsqrt.pop %v3613
        %v3757 = vmul.f32 %v3756, %v3613
        %v3758 = vmul.f32 %v3757, %v3756
        %v3759 = vmul.f32 0.5, %v3758
        %v3760 = vsub.f32 1.5, %v3759
        %v3761 = vmul.f32 %v3756, %v3760
        %vm3762 = vweird.f32 %v3613
        %vm3763 = vweird.f32 %v3756
        %vm3764 = vmor %vm3762, %vm3763
        %v3765 = vsel %vm3764, %v3756, %v3761
        %v3766 = vrsqrt.pop %v3614
        %v3767 = vmul.f32 %v3766, %v3614
        %v3768 = vmul.f32 %v3767, %v3766
        %v3769 = vmul.f32 0.5, %v3768
        %v3770 = vsub.f32 1.5, %v3769
        %v3771 = vmul.f32 %v3766, %v3770
        %vm3772 = vweird.f32 %v3614
        %vm3773 = vweird.f32 %v3766
        %vm3774 = vmor %vm3772, %vm3773
        %v3775 = vsel %vm3774, %v3766, %v3771
        %v3776 = vrsqrt.pop %v3615
        %v3777 = vmul.f32 %v3776, %v3615
        %v3778 = vmul.f32 %v3777, %v3776
        %v3779 = vmul.f32 0.5, %v3778
        %v3780 = vsub.f32 1.5, %v3779
        %v3781 = vmul.f32 %v3776, %v3780
        %vm3782 = vweird.f32 %v3615
        %vm3783 = vweird.f32 %v3776
        %vm3784 = vmor %vm3782, %vm3783
        %v3785 = vsel %vm3784, %v3776, %v3781
        %v3786 = vrsqrt.pop %v3616
        %v3787 = vmul.f32 %v3786, %v3616
        %v3788 = vmul.f32 %v3787, %v3786
        %v3789 = vmul.f32 0.5, %v3788
        %v3790 = vsub.f32 1.5, %v3789
        %v3791 = vmul.f32 %v3786, %v3790
        %vm3792 = vweird.f32 %v3616
        %vm3793 = vweird.f32 %v3786
        %vm3794 = vmor %vm3792, %vm3793
        %v3795 = vsel %vm3794, %v3786, %v3791
        %v3796 = vrsqrt.pop %v3617
        %v3797 = vmul.f32 %v3796, %v3617
        %v3798 = vmul.f32 %v3797, %v3796
        %v3799 = vmul.f32 0.5, %v3798
        %v3800 = vsub.f32 1.5, %v3799
        %v3801 = vmul.f32 %v3796, %v3800
        %vm3802 = vweird.f32 %v3617
        %vm3803 = vweird.f32 %v3796
        %vm3804 = vmor %vm3802, %vm3803
        %v3805 = vsel %vm3804, %v3796, %v3801
        %v3806 = vrsqrt.pop %v3618
        %v3807 = vmul.f32 %v3806, %v3618
        %v3808 = vmul.f32 %v3807, %v3806
        %v3809 = vmul.f32 0.5, %v3808
        %v3810 = vsub.f32 1.5, %v3809
        %v3811 = vmul.f32 %v3806, %v3810
        %vm3812 = vweird.f32 %v3618
        %vm3813 = vweird.f32 %v3806
        %vm3814 = vmor %vm3812, %vm3813
        %v3815 = vsel %vm3814, %v3806, %v3811
        %v3816 = vrsqrt.pop %v3619
        %v3817 = vmul.f32 %v3816, %v3619
        %v3818 = vmul.f32 %v3817, %v3816
        %v3819 = vmul.f32 0.5, %v3818
        %v3820 = vsub.f32 1.5, %v3819
        %v3821 = vmul.f32 %v3816, %v3820
        %vm3822 = vweird.f32 %v3619
        %vm3823 = vweird.f32 %v3816
        %vm3824 = vmor %vm3822, %vm3823
        %v3825 = vsel %vm3824, %v3816, %v3821
        %v3826 = vrsqrt.pop %v3620
        %v3827 = vmul.f32 %v3826, %v3620
        %v3828 = vmul.f32 %v3827, %v3826
        %v3829 = vmul.f32 0.5, %v3828
        %v3830 = vsub.f32 1.5, %v3829
        %v3831 = vmul.f32 %v3826, %v3830
        %vm3832 = vweird.f32 %v3620
        %vm3833 = vweird.f32 %v3826
        %vm3834 = vmor %vm3832, %vm3833
        %v3835 = vsel %vm3834, %v3826, %v3831
        %v3836 = vrsqrt.pop %v3621
        %v3837 = vmul.f32 %v3836, %v3621
        %v3838 = vmul.f32 %v3837, %v3836
        %v3839 = vmul.f32 0.5, %v3838
        %v3840 = vsub.f32 1.5, %v3839
        %v3841 = vmul.f32 %v3836, %v3840
        %vm3842 = vweird.f32 %v3621
        %vm3843 = vweird.f32 %v3836
        %vm3844 = vmor %vm3842, %vm3843
        %v3845 = vsel %vm3844, %v3836, %v3841
        %v3846 = vrsqrt.pop %v3622
        %v3847 = vmul.f32 %v3846, %v3622
        %v3848 = vmul.f32 %v3847, %v3846
        %v3849 = vmul.f32 0.5, %v3848
        %v3850 = vsub.f32 1.5, %v3849
        %v3851 = vmul.f32 %v3846, %v3850
        %vm3852 = vweird.f32 %v3622
        %vm3853 = vweird.f32 %v3846
        %vm3854 = vmor %vm3852, %vm3853
        %v3855 = vsel %vm3854, %v3846, %v3851
        %v3856 = vrsqrt.pop %v3623
        %v3857 = vmul.f32 %v3856, %v3623
        %v3858 = vmul.f32 %v3857, %v3856
        %v3859 = vmul.f32 0.5, %v3858
        %v3860 = vsub.f32 1.5, %v3859
        %v3861 = vmul.f32 %v3856, %v3860
        %vm3862 = vweird.f32 %v3623
        %vm3863 = vweird.f32 %v3856
        %vm3864 = vmor %vm3862, %vm3863
        %v3865 = vsel %vm3864, %v3856, %v3861
        %v3866 = vrsqrt.pop %v3624
        %v3867 = vmul.f32 %v3866, %v3624
        %v3868 = vmul.f32 %v3867, %v3866
        %v3869 = vmul.f32 0.5, %v3868
        %v3870 = vsub.f32 1.5, %v3869
        %v3871 = vmul.f32 %v3866, %v3870
        %vm3872 = vweird.f32 %v3624
        %vm3873 = vweird.f32 %v3866
        %vm3874 = vmor %vm3872, %vm3873
        %v3875 = vsel %vm3874, %v3866, %v3871
        %v3876 = vrsqrt.pop %v3625
        %v3877 = vmul.f32 %v3876, %v3625
        %v3878 = vmul.f32 %v3877, %v3876
        %v3879 = vmul.f32 0.5, %v3878
        %v3880 = vsub.f32 1.5, %v3879
        %v3881 = vmul.f32 %v3876, %v3880
        %vm3882 = vweird.f32 %v3625
        %vm3883 = vweird.f32 %v3876
        %vm3884 = vmor %vm3882, %vm3883
        %v3885 = vsel %vm3884, %v3876, %v3881
        %v3886 = vrsqrt.pop %v3626
        %v3887 = vmul.f32 %v3886, %v3626
        %v3888 = vmul.f32 %v3887, %v3886
        %v3889 = vmul.f32 0.5, %v3888
        %v3890 = vsub.f32 1.5, %v3889
        %v3891 = vmul.f32 %v3886, %v3890
        %vm3892 = vweird.f32 %v3626
        %vm3893 = vweird.f32 %v3886
        %vm3894 = vmor %vm3892, %vm3893
        %v3895 = vsel %vm3894, %v3886, %v3891
        %v3896 = vrsqrt.pop %v3627
        %v3897 = vmul.f32 %v3896, %v3627
        %v3898 = vmul.f32 %v3897, %v3896
        %v3899 = vmul.f32 0.5, %v3898
        %v3900 = vsub.f32 1.5, %v3899
        %v3901 = vmul.f32 %v3896, %v3900
        %vm3902 = vweird.f32 %v3627
        %vm3903 = vweird.f32 %v3896
        %vm3904 = vmor %vm3902, %vm3903
        %v3905 = vsel %vm3904, %v3896, %v3901
        %v3906 = vrsqrt.pop %v3628
        %v3907 = vmul.f32 %v3906, %v3628
        %v3908 = vmul.f32 %v3907, %v3906
        %v3909 = vmul.f32 0.5, %v3908
        %v3910 = vsub.f32 1.5, %v3909
        %v3911 = vmul.f32 %v3906, %v3910
        %vm3912 = vweird.f32 %v3628
        %vm3913 = vweird.f32 %v3906
        %vm3914 = vmor %vm3912, %vm3913
        %v3915 = vsel %vm3914, %v3906, %v3911
        %v3916 = vrsqrt.pop %v3629
        %v3917 = vmul.f32 %v3916, %v3629
        %v3918 = vmul.f32 %v3917, %v3916
        %v3919 = vmul.f32 0.5, %v3918
        %v3920 = vsub.f32 1.5, %v3919
        %v3921 = vmul.f32 %v3916, %v3920
        %vm3922 = vweird.f32 %v3629
        %vm3923 = vweird.f32 %v3916
        %vm3924 = vmor %vm3922, %vm3923
        %v3925 = vsel %vm3924, %v3916, %v3921
        %v3926 = vrsqrt.pop %v3630
        %v3927 = vmul.f32 %v3926, %v3630
        %v3928 = vmul.f32 %v3927, %v3926
        %v3929 = vmul.f32 0.5, %v3928
        %v3930 = vsub.f32 1.5, %v3929
        %v3931 = vmul.f32 %v3926, %v3930
        %vm3932 = vweird.f32 %v3630
        %vm3933 = vweird.f32 %v3926
        %vm3934 = vmor %vm3932, %vm3933
        %v3935 = vsel %vm3934, %v3926, %v3931
        %v3936 = vrsqrt.pop %v3631
        %v3937 = vmul.f32 %v3936, %v3631
        %v3938 = vmul.f32 %v3937, %v3936
        %v3939 = vmul.f32 0.5, %v3938
        %v3940 = vsub.f32 1.5, %v3939
        %v3941 = vmul.f32 %v3936, %v3940
        %vm3942 = vweird.f32 %v3631
        %vm3943 = vweird.f32 %v3936
        %vm3944 = vmor %vm3942, %vm3943
        %v3945 = vsel %vm3944, %v3936, %v3941
        %v3946 = vrsqrt.pop %v3632
        %v3947 = vmul.f32 %v3946, %v3632
        %v3948 = vmul.f32 %v3947, %v3946
        %v3949 = vmul.f32 0.5, %v3948
        %v3950 = vsub.f32 1.5, %v3949
        %v3951 = vmul.f32 %v3946, %v3950
        %vm3952 = vweird.f32 %v3632
        %vm3953 = vweird.f32 %v3946
        %vm3954 = vmor %vm3952, %vm3953
        %v3955 = vsel %vm3954, %v3946, %v3951
        %v3956 = vrsqrt.pop %v3633
        %v3957 = vmul.f32 %v3956, %v3633
        %v3958 = vmul.f32 %v3957, %v3956
        %v3959 = vmul.f32 0.5, %v3958
        %v3960 = vsub.f32 1.5, %v3959
        %v3961 = vmul.f32 %v3956, %v3960
        %vm3962 = vweird.f32 %v3633
        %vm3963 = vweird.f32 %v3956
        %vm3964 = vmor %vm3962, %vm3963
        %v3965 = vsel %vm3964, %v3956, %v3961
        %v3966 = vrsqrt.pop %v3634
        %v3967 = vmul.f32 %v3966, %v3634
        %v3968 = vmul.f32 %v3967, %v3966
        %v3969 = vmul.f32 0.5, %v3968
        %v3970 = vsub.f32 1.5, %v3969
        %v3971 = vmul.f32 %v3966, %v3970
        %vm3972 = vweird.f32 %v3634
        %vm3973 = vweird.f32 %v3966
        %vm3974 = vmor %vm3972, %vm3973
        %v3975 = vsel %vm3974, %v3966, %v3971
        %v3976 = vrsqrt.pop %v3635
        %v3977 = vmul.f32 %v3976, %v3635
        %v3978 = vmul.f32 %v3977, %v3976
        %v3979 = vmul.f32 0.5, %v3978
        %v3980 = vsub.f32 1.5, %v3979
        %v3981 = vmul.f32 %v3976, %v3980
        %vm3982 = vweird.f32 %v3635
        %vm3983 = vweird.f32 %v3976
        %vm3984 = vmor %vm3982, %vm3983
        %v3985 = vsel %vm3984, %v3976, %v3981
        %v3986 = vrsqrt.pop %v3636
        %v3987 = vmul.f32 %v3986, %v3636
        %v3988 = vmul.f32 %v3987, %v3986
        %v3989 = vmul.f32 0.5, %v3988
        %v3990 = vsub.f32 1.5, %v3989
        %v3991 = vmul.f32 %v3986, %v3990
        %vm3992 = vweird.f32 %v3636
        %vm3993 = vweird.f32 %v3986
        %vm3994 = vmor %vm3992, %vm3993
        %v3995 = vsel %vm3994, %v3986, %v3991
        %v3996 = vrsqrt.pop %v3637
        %v3997 = vmul.f32 %v3996, %v3637
        %v3998 = vmul.f32 %v3997, %v3996
        %v3999 = vmul.f32 0.5, %v3998
        %v4000 = vsub.f32 1.5, %v3999
        %v4001 = vmul.f32 %v3996, %v4000
        %vm4002 = vweird.f32 %v3637
        %vm4003 = vweird.f32 %v3996
        %vm4004 = vmor %vm4002, %vm4003
        %v4005 = vsel %vm4004, %v3996, %v4001
        %v4006 = vrsqrt.pop %v3638
        %v4007 = vmul.f32 %v4006, %v3638
        %v4008 = vmul.f32 %v4007, %v4006
        %v4009 = vmul.f32 0.5, %v4008
        %v4010 = vsub.f32 1.5, %v4009
        %v4011 = vmul.f32 %v4006, %v4010
        %vm4012 = vweird.f32 %v3638
        %vm4013 = vweird.f32 %v4006
        %vm4014 = vmor %vm4012, %vm4013
        %v4015 = vsel %vm4014, %v4006, %v4011
        %v4016 = vrsqrt.pop %v3639
        %v4017 = vmul.f32 %v4016, %v3639
        %v4018 = vmul.f32 %v4017, %v4016
        %v4019 = vmul.f32 0.5, %v4018
        %v4020 = vsub.f32 1.5, %v4019
        %v4021 = vmul.f32 %v4016, %v4020
        %vm4022 = vweird.f32 %v3639
        %vm4023 = vweird.f32 %v4016
        %vm4024 = vmor %vm4022, %vm4023
        %v4025 = vsel %vm4024, %v4016, %v4021
        %v4026 = vrsqrt.pop %v3640
        %v4027 = vmul.f32 %v4026, %v3640
        %v4028 = vmul.f32 %v4027, %v4026
        %v4029 = vmul.f32 0.5, %v4028
        %v4030 = vsub.f32 1.5, %v4029
        %v4031 = vmul.f32 %v4026, %v4030
        %vm4032 = vweird.f32 %v3640
        %vm4033 = vweird.f32 %v4026
        %vm4034 = vmor %vm4032, %vm4033
        %v4035 = vsel %vm4034, %v4026, %v4031
        %v4036 = vrsqrt.pop %v3641
        %v4037 = vmul.f32 %v4036, %v3641
        %v4038 = vmul.f32 %v4037, %v4036
        %v4039 = vmul.f32 0.5, %v4038
        %v4040 = vsub.f32 1.5, %v4039
        %v4041 = vmul.f32 %v4036, %v4040
        %vm4042 = vweird.f32 %v3641
        %vm4043 = vweird.f32 %v4036
        %vm4044 = vmor %vm4042, %vm4043
        %v4045 = vsel %vm4044, %v4036, %v4041
        %v4046 = vrsqrt.pop %v3642
        %v4047 = vmul.f32 %v4046, %v3642
        %v4048 = vmul.f32 %v4047, %v4046
        %v4049 = vmul.f32 0.5, %v4048
        %v4050 = vsub.f32 1.5, %v4049
        %v4051 = vmul.f32 %v4046, %v4050
        %vm4052 = vweird.f32 %v3642
        %vm4053 = vweird.f32 %v4046
        %vm4054 = vmor %vm4052, %vm4053
        %v4055 = vsel %vm4054, %v4046, %v4051
        %v4056 = vrsqrt.pop %v3643
        %v4057 = vmul.f32 %v4056, %v3643
        %v4058 = vmul.f32 %v4057, %v4056
        %v4059 = vmul.f32 0.5, %v4058
        %v4060 = vsub.f32 1.5, %v4059
        %v4061 = vmul.f32 %v4056, %v4060
        %vm4062 = vweird.f32 %v3643
        %vm4063 = vweird.f32 %v4056
        %vm4064 = vmor %vm4062, %vm4063
        %v4065 = vsel %vm4064, %v4056, %v4061
        %v4066 = vrsqrt.pop %v3644
        %v4067 = vmul.f32 %v4066, %v3644
        %v4068 = vmul.f32 %v4067, %v4066
        %v4069 = vmul.f32 0.5, %v4068
        %v4070 = vsub.f32 1.5, %v4069
        %v4071 = vmul.f32 %v4066, %v4070
        %vm4072 = vweird.f32 %v3644
        %vm4073 = vweird.f32 %v4066
        %vm4074 = vmor %vm4072, %vm4073
        %v4075 = vsel %vm4074, %v4066, %v4071
        %v4076 = vrsqrt.pop %v3645
        %v4077 = vmul.f32 %v4076, %v3645
        %v4078 = vmul.f32 %v4077, %v4076
        %v4079 = vmul.f32 0.5, %v4078
        %v4080 = vsub.f32 1.5, %v4079
        %v4081 = vmul.f32 %v4076, %v4080
        %vm4082 = vweird.f32 %v3645
        %vm4083 = vweird.f32 %v4076
        %vm4084 = vmor %vm4082, %vm4083
        %v4085 = vsel %vm4084, %v4076, %v4081
        %v4086 = vrsqrt.pop %v3646
        %v4087 = vmul.f32 %v4086, %v3646
        %v4088 = vmul.f32 %v4087, %v4086
        %v4089 = vmul.f32 0.5, %v4088
        %v4090 = vsub.f32 1.5, %v4089
        %v4091 = vmul.f32 %v4086, %v4090
        %vm4092 = vweird.f32 %v3646
        %vm4093 = vweird.f32 %v4086
        %vm4094 = vmor %vm4092, %vm4093
        %v4095 = vsel %vm4094, %v4086, %v4091
        %v4096 = vrsqrt.pop %v3647
        %v4097 = vmul.f32 %v4096, %v3647
        %v4098 = vmul.f32 %v4097, %v4096
        %v4099 = vmul.f32 0.5, %v4098
        %v4100 = vsub.f32 1.5, %v4099
        %v4101 = vmul.f32 %v4096, %v4100
        %vm4102 = vweird.f32 %v3647
        %vm4103 = vweird.f32 %v4096
        %vm4104 = vmor %vm4102, %vm4103
        %v4105 = vsel %vm4104, %v4096, %v4101
        %v4106 = vrsqrt.pop %v3648
        %v4107 = vmul.f32 %v4106, %v3648
        %v4108 = vmul.f32 %v4107, %v4106
        %v4109 = vmul.f32 0.5, %v4108
        %v4110 = vsub.f32 1.5, %v4109
        %v4111 = vmul.f32 %v4106, %v4110
        %vm4112 = vweird.f32 %v3648
        %vm4113 = vweird.f32 %v4106
        %vm4114 = vmor %vm4112, %vm4113
        %v4115 = vsel %vm4114, %v4106, %v4111
        %v4116 = vrsqrt.pop %v3649
        %v4117 = vmul.f32 %v4116, %v3649
        %v4118 = vmul.f32 %v4117, %v4116
        %v4119 = vmul.f32 0.5, %v4118
        %v4120 = vsub.f32 1.5, %v4119
        %v4121 = vmul.f32 %v4116, %v4120
        %vm4122 = vweird.f32 %v3649
        %vm4123 = vweird.f32 %v4116
        %vm4124 = vmor %vm4122, %vm4123
        %v4125 = vsel %vm4124, %v4116, %v4121
        %v4126 = vrsqrt.pop %v3650
        %v4127 = vmul.f32 %v4126, %v3650
        %v4128 = vmul.f32 %v4127, %v4126
        %v4129 = vmul.f32 0.5, %v4128
        %v4130 = vsub.f32 1.5, %v4129
        %v4131 = vmul.f32 %v4126, %v4130
        %vm4132 = vweird.f32 %v3650
        %vm4133 = vweird.f32 %v4126
        %vm4134 = vmor %vm4132, %vm4133
        %v4135 = vsel %vm4134, %v4126, %v4131
        %v4136 = vrsqrt.pop %v3651
        %v4137 = vmul.f32 %v4136, %v3651
        %v4138 = vmul.f32 %v4137, %v4136
        %v4139 = vmul.f32 0.5, %v4138
        %v4140 = vsub.f32 1.5, %v4139
        %v4141 = vmul.f32 %v4136, %v4140
        %vm4142 = vweird.f32 %v3651
        %vm4143 = vweird.f32 %v4136
        %vm4144 = vmor %vm4142, %vm4143
        %v4145 = vsel %vm4144, %v4136, %v4141
        %v4146 = vrsqrt.pop %v3652
        %v4147 = vmul.f32 %v4146, %v3652
        %v4148 = vmul.f32 %v4147, %v4146
        %v4149 = vmul.f32 0.5, %v4148
        %v4150 = vsub.f32 1.5, %v4149
        %v4151 = vmul.f32 %v4146, %v4150
        %vm4152 = vweird.f32 %v3652
        %vm4153 = vweird.f32 %v4146
        %vm4154 = vmor %vm4152, %vm4153
        %v4155 = vsel %vm4154, %v4146, %v4151
        %v4156 = vrsqrt.pop %v3653
        %v4157 = vmul.f32 %v4156, %v3653
        %v4158 = vmul.f32 %v4157, %v4156
        %v4159 = vmul.f32 0.5, %v4158
        %v4160 = vsub.f32 1.5, %v4159
        %v4161 = vmul.f32 %v4156, %v4160
        %vm4162 = vweird.f32 %v3653
        %vm4163 = vweird.f32 %v4156
        %vm4164 = vmor %vm4162, %vm4163
        %v4165 = vsel %vm4164, %v4156, %v4161
        %v4166 = vrsqrt.pop %v3654
        %v4167 = vmul.f32 %v4166, %v3654
        %v4168 = vmul.f32 %v4167, %v4166
        %v4169 = vmul.f32 0.5, %v4168
        %v4170 = vsub.f32 1.5, %v4169
        %v4171 = vmul.f32 %v4166, %v4170
        %vm4172 = vweird.f32 %v3654
        %vm4173 = vweird.f32 %v4166
        %vm4174 = vmor %vm4172, %vm4173
        %v4175 = vsel %vm4174, %v4166, %v4171
        %v4176 = vrsqrt.pop %v3655
        %v4177 = vmul.f32 %v4176, %v3655
        %v4178 = vmul.f32 %v4177, %v4176
        %v4179 = vmul.f32 0.5, %v4178
        %v4180 = vsub.f32 1.5, %v4179
        %v4181 = vmul.f32 %v4176, %v4180
        %vm4182 = vweird.f32 %v3655
        %vm4183 = vweird.f32 %v4176
        %vm4184 = vmor %vm4182, %vm4183
        %v4185 = vsel %vm4184, %v4176, %v4181
        %v4186 = vrsqrt.pop %v3656
        %v4187 = vmul.f32 %v4186, %v3656
        %v4188 = vmul.f32 %v4187, %v4186
        %v4189 = vmul.f32 0.5, %v4188
        %v4190 = vsub.f32 1.5, %v4189
        %v4191 = vmul.f32 %v4186, %v4190
        %vm4192 = vweird.f32 %v3656
        %vm4193 = vweird.f32 %v4186
        %vm4194 = vmor %vm4192, %vm4193
        %v4195 = vsel %vm4194, %v4186, %v4191
        %v4196 = vrsqrt.pop %v3657
        %v4197 = vmul.f32 %v4196, %v3657
        %v4198 = vmul.f32 %v4197, %v4196
        %v4199 = vmul.f32 0.5, %v4198
        %v4200 = vsub.f32 1.5, %v4199
        %v4201 = vmul.f32 %v4196, %v4200
        %vm4202 = vweird.f32 %v3657
        %vm4203 = vweird.f32 %v4196
        %vm4204 = vmor %vm4202, %vm4203
        %v4205 = vsel %vm4204, %v4196, %v4201
        %v4206 = vrsqrt.pop %v3658
        %v4207 = vmul.f32 %v4206, %v3658
        %v4208 = vmul.f32 %v4207, %v4206
        %v4209 = vmul.f32 0.5, %v4208
        %v4210 = vsub.f32 1.5, %v4209
        %v4211 = vmul.f32 %v4206, %v4210
        %vm4212 = vweird.f32 %v3658
        %vm4213 = vweird.f32 %v4206
        %vm4214 = vmor %vm4212, %vm4213
        %v4215 = vsel %vm4214, %v4206, %v4211
        %v4216 = vrsqrt.pop %v3659
        %v4217 = vmul.f32 %v4216, %v3659
        %v4218 = vmul.f32 %v4217, %v4216
        %v4219 = vmul.f32 0.5, %v4218
        %v4220 = vsub.f32 1.5, %v4219
        %v4221 = vmul.f32 %v4216, %v4220
        %vm4222 = vweird.f32 %v3659
        %vm4223 = vweird.f32 %v4216
        %vm4224 = vmor %vm4222, %vm4223
        %v4225 = vsel %vm4224, %v4216, %v4221
        %v4226 = vrsqrt.pop %v3660
        %v4227 = vmul.f32 %v4226, %v3660
        %v4228 = vmul.f32 %v4227, %v4226
        %v4229 = vmul.f32 0.5, %v4228
        %v4230 = vsub.f32 1.5, %v4229
        %v4231 = vmul.f32 %v4226, %v4230
        %vm4232 = vweird.f32 %v3660
        %vm4233 = vweird.f32 %v4226
        %vm4234 = vmor %vm4232, %vm4233
        %v4235 = vsel %vm4234, %v4226, %v4231
        %v4236 = vrsqrt.pop %v3661
        %v4237 = vmul.f32 %v4236, %v3661
        %v4238 = vmul.f32 %v4237, %v4236
        %v4239 = vmul.f32 0.5, %v4238
        %v4240 = vsub.f32 1.5, %v4239
        %v4241 = vmul.f32 %v4236, %v4240
        %vm4242 = vweird.f32 %v3661
        %vm4243 = vweird.f32 %v4236
        %vm4244 = vmor %vm4242, %vm4243
        %v4245 = vsel %vm4244, %v4236, %v4241
        %v4246 = vrsqrt.pop %v3662
        %v4247 = vmul.f32 %v4246, %v3662
        %v4248 = vmul.f32 %v4247, %v4246
        %v4249 = vmul.f32 0.5, %v4248
        %v4250 = vsub.f32 1.5, %v4249
        %v4251 = vmul.f32 %v4246, %v4250
        %vm4252 = vweird.f32 %v3662
        %vm4253 = vweird.f32 %v4246
        %vm4254 = vmor %vm4252, %vm4253
        %v4255 = vsel %vm4254, %v4246, %v4251
        %v4256 = vrsqrt.pop %v3663
        %v4257 = vmul.f32 %v4256, %v3663
        %v4258 = vmul.f32 %v4257, %v4256
        %v4259 = vmul.f32 0.5, %v4258
        %v4260 = vsub.f32 1.5, %v4259
        %v4261 = vmul.f32 %v4256, %v4260
        %vm4262 = vweird.f32 %v3663
        %vm4263 = vweird.f32 %v4256
        %vm4264 = vmor %vm4262, %vm4263
        %v4265 = vsel %vm4264, %v4256, %v4261
        %v4266 = vrsqrt.pop %v3664
        %v4267 = vmul.f32 %v4266, %v3664
        %v4268 = vmul.f32 %v4267, %v4266
        %v4269 = vmul.f32 0.5, %v4268
        %v4270 = vsub.f32 1.5, %v4269
        %v4271 = vmul.f32 %v4266, %v4270
        %vm4272 = vweird.f32 %v3664
        %vm4273 = vweird.f32 %v4266
        %vm4274 = vmor %vm4272, %vm4273
        %v4275 = vsel %vm4274, %v4266, %v4271
        %v4276 = vrsqrt.pop %v3665
        %v4277 = vmul.f32 %v4276, %v3665
        %v4278 = vmul.f32 %v4277, %v4276
        %v4279 = vmul.f32 0.5, %v4278
        %v4280 = vsub.f32 1.5, %v4279
        %v4281 = vmul.f32 %v4276, %v4280
        %vm4282 = vweird.f32 %v3665
        %vm4283 = vweird.f32 %v4276
        %vm4284 = vmor %vm4282, %vm4283
        %v4285 = vsel %vm4284, %v4276, %v4281
        %v4286 = vrsqrt.pop %v3666
        %v4287 = vmul.f32 %v4286, %v3666
        %v4288 = vmul.f32 %v4287, %v4286
        %v4289 = vmul.f32 0.5, %v4288
        %v4290 = vsub.f32 1.5, %v4289
        %v4291 = vmul.f32 %v4286, %v4290
        %vm4292 = vweird.f32 %v3666
        %vm4293 = vweird.f32 %v4286
        %vm4294 = vmor %vm4292, %vm4293
        %v4295 = vsel %vm4294, %v4286, %v4291
        %v4296 = vrsqrt.pop %v3667
        %v4297 = vmul.f32 %v4296, %v3667
        %v4298 = vmul.f32 %v4297, %v4296
        %v4299 = vmul.f32 0.5, %v4298
        %v4300 = vsub.f32 1.5, %v4299
        %v4301 = vmul.f32 %v4296, %v4300
        %vm4302 = vweird.f32 %v3667
        %vm4303 = vweird.f32 %v4296
        %vm4304 = vmor %vm4302, %vm4303
        %v4305 = vsel %vm4304, %v4296, %v4301
        %v4306 = vrsqrt.pop %v3668
        %v4307 = vmul.f32 %v4306, %v3668
        %v4308 = vmul.f32 %v4307, %v4306
        %v4309 = vmul.f32 0.5, %v4308
        %v4310 = vsub.f32 1.5, %v4309
        %v4311 = vmul.f32 %v4306, %v4310
        %vm4312 = vweird.f32 %v3668
        %vm4313 = vweird.f32 %v4306
        %vm4314 = vmor %vm4312, %vm4313
        %v4315 = vsel %vm4314, %v4306, %v4311
        %v4316 = vrsqrt.pop %v3669
        %v4317 = vmul.f32 %v4316, %v3669
        %v4318 = vmul.f32 %v4317, %v4316
        %v4319 = vmul.f32 0.5, %v4318
        %v4320 = vsub.f32 1.5, %v4319
        %v4321 = vmul.f32 %v4316, %v4320
        %vm4322 = vweird.f32 %v3669
        %vm4323 = vweird.f32 %v4316
        %vm4324 = vmor %vm4322, %vm4323
        %v4325 = vsel %vm4324, %v4316, %v4321
        %v4326 = vrsqrt.pop %v3670
        %v4327 = vmul.f32 %v4326, %v3670
        %v4328 = vmul.f32 %v4327, %v4326
        %v4329 = vmul.f32 0.5, %v4328
        %v4330 = vsub.f32 1.5, %v4329
        %v4331 = vmul.f32 %v4326, %v4330
        %vm4332 = vweird.f32 %v3670
        %vm4333 = vweird.f32 %v4326
        %vm4334 = vmor %vm4332, %vm4333
        %v4335 = vsel %vm4334, %v4326, %v4331
        %v4336 = vrsqrt.pop %v3671
        %v4337 = vmul.f32 %v4336, %v3671
        %v4338 = vmul.f32 %v4337, %v4336
        %v4339 = vmul.f32 0.5, %v4338
        %v4340 = vsub.f32 1.5, %v4339
        %v4341 = vmul.f32 %v4336, %v4340
        %vm4342 = vweird.f32 %v3671
        %vm4343 = vweird.f32 %v4336
        %vm4344 = vmor %vm4342, %vm4343
        %v4345 = vsel %vm4344, %v4336, %v4341
        %v4346 = vrsqrt.pop %v3672
        %v4347 = vmul.f32 %v4346, %v3672
        %v4348 = vmul.f32 %v4347, %v4346
        %v4349 = vmul.f32 0.5, %v4348
        %v4350 = vsub.f32 1.5, %v4349
        %v4351 = vmul.f32 %v4346, %v4350
        %vm4352 = vweird.f32 %v3672
        %vm4353 = vweird.f32 %v4346
        %vm4354 = vmor %vm4352, %vm4353
        %v4355 = vsel %vm4354, %v4346, %v4351
        %v4356 = vrsqrt.pop %v3673
        %v4357 = vmul.f32 %v4356, %v3673
        %v4358 = vmul.f32 %v4357, %v4356
        %v4359 = vmul.f32 0.5, %v4358
        %v4360 = vsub.f32 1.5, %v4359
        %v4361 = vmul.f32 %v4356, %v4360
        %vm4362 = vweird.f32 %v3673
        %vm4363 = vweird.f32 %v4356
        %vm4364 = vmor %vm4362, %vm4363
        %v4365 = vsel %vm4364, %v4356, %v4361
        %v4366 = vrsqrt.pop %v3674
        %v4367 = vmul.f32 %v4366, %v3674
        %v4368 = vmul.f32 %v4367, %v4366
        %v4369 = vmul.f32 0.5, %v4368
        %v4370 = vsub.f32 1.5, %v4369
        %v4371 = vmul.f32 %v4366, %v4370
        %vm4372 = vweird.f32 %v3674
        %vm4373 = vweird.f32 %v4366
        %vm4374 = vmor %vm4372, %vm4373
        %v4375 = vsel %vm4374, %v4366, %v4371
        %v4376 = vrsqrt.pop %v3675
        %v4377 = vmul.f32 %v4376, %v3675
        %v4378 = vmul.f32 %v4377, %v4376
        %v4379 = vmul.f32 0.5, %v4378
        %v4380 = vsub.f32 1.5, %v4379
        %v4381 = vmul.f32 %v4376, %v4380
        %vm4382 = vweird.f32 %v3675
        %vm4383 = vweird.f32 %v4376
        %vm4384 = vmor %vm4382, %vm4383
        %v4385 = vsel %vm4384, %v4376, %v4381
        %v4386 = vrsqrt.pop %v3676
        %v4387 = vmul.f32 %v4386, %v3676
        %v4388 = vmul.f32 %v4387, %v4386
        %v4389 = vmul.f32 0.5, %v4388
        %v4390 = vsub.f32 1.5, %v4389
        %v4391 = vmul.f32 %v4386, %v4390
        %vm4392 = vweird.f32 %v3676
        %vm4393 = vweird.f32 %v4386
        %vm4394 = vmor %vm4392, %vm4393
        %v4395 = vsel %vm4394, %v4386, %v4391
        %v4396 = vrsqrt.pop %v3677
        %v4397 = vmul.f32 %v4396, %v3677
        %v4398 = vmul.f32 %v4397, %v4396
        %v4399 = vmul.f32 0.5, %v4398
        %v4400 = vsub.f32 1.5, %v4399
        %v4401 = vmul.f32 %v4396, %v4400
        %vm4402 = vweird.f32 %v3677
        %vm4403 = vweird.f32 %v4396
        %vm4404 = vmor %vm4402, %vm4403
        %v4405 = vsel %vm4404, %v4396, %v4401
        %v4406 = vrsqrt.pop %v3678
        %v4407 = vmul.f32 %v4406, %v3678
        %v4408 = vmul.f32 %v4407, %v4406
        %v4409 = vmul.f32 0.5, %v4408
        %v4410 = vsub.f32 1.5, %v4409
        %v4411 = vmul.f32 %v4406, %v4410
        %vm4412 = vweird.f32 %v3678
        %vm4413 = vweird.f32 %v4406
        %vm4414 = vmor %vm4412, %vm4413
        %v4415 = vsel %vm4414, %v4406, %v4411
        %v4416 = vrsqrt.pop %v3679
        %v4417 = vmul.f32 %v4416, %v3679
        %v4418 = vmul.f32 %v4417, %v4416
        %v4419 = vmul.f32 0.5, %v4418
        %v4420 = vsub.f32 1.5, %v4419
        %v4421 = vmul.f32 %v4416, %v4420
        %vm4422 = vweird.f32 %v3679
        %vm4423 = vweird.f32 %v4416
        %vm4424 = vmor %vm4422, %vm4423
        %v4425 = vsel %vm4424, %v4416, %v4421
        %v4426 = vrsqrt.pop %v3680
        %v4427 = vmul.f32 %v4426, %v3680
        %v4428 = vmul.f32 %v4427, %v4426
        %v4429 = vmul.f32 0.5, %v4428
        %v4430 = vsub.f32 1.5, %v4429
        %v4431 = vmul.f32 %v4426, %v4430
        %vm4432 = vweird.f32 %v3680
        %vm4433 = vweird.f32 %v4426
        %vm4434 = vmor %vm4432, %vm4433
        %v4435 = vsel %vm4434, %v4426, %v4431
        %v4436 = vrsqrt.pop %v3681
        %v4437 = vmul.f32 %v4436, %v3681
        %v4438 = vmul.f32 %v4437, %v4436
        %v4439 = vmul.f32 0.5, %v4438
        %v4440 = vsub.f32 1.5, %v4439
        %v4441 = vmul.f32 %v4436, %v4440
        %vm4442 = vweird.f32 %v3681
        %vm4443 = vweird.f32 %v4436
        %vm4444 = vmor %vm4442, %vm4443
        %v4445 = vsel %vm4444, %v4436, %v4441
        %v4446 = vrsqrt.pop %v3682
        %v4447 = vmul.f32 %v4446, %v3682
        %v4448 = vmul.f32 %v4447, %v4446
        %v4449 = vmul.f32 0.5, %v4448
        %v4450 = vsub.f32 1.5, %v4449
        %v4451 = vmul.f32 %v4446, %v4450
        %vm4452 = vweird.f32 %v3682
        %vm4453 = vweird.f32 %v4446
        %vm4454 = vmor %vm4452, %vm4453
        %v4455 = vsel %vm4454, %v4446, %v4451
        %v4456 = vrsqrt.pop %v3683
        %v4457 = vmul.f32 %v4456, %v3683
        %v4458 = vmul.f32 %v4457, %v4456
        %v4459 = vmul.f32 0.5, %v4458
        %v4460 = vsub.f32 1.5, %v4459
        %v4461 = vmul.f32 %v4456, %v4460
        %vm4462 = vweird.f32 %v3683
        %vm4463 = vweird.f32 %v4456
        %vm4464 = vmor %vm4462, %vm4463
        %v4465 = vsel %vm4464, %v4456, %v4461
        %v4466 = vrsqrt.pop %v3684
        %v4467 = vmul.f32 %v4466, %v3684
        %v4468 = vmul.f32 %v4467, %v4466
        %v4469 = vmul.f32 0.5, %v4468
        %v4470 = vsub.f32 1.5, %v4469
        %v4471 = vmul.f32 %v4466, %v4470
        %vm4472 = vweird.f32 %v3684
        %vm4473 = vweird.f32 %v4466
        %vm4474 = vmor %vm4472, %vm4473
        %v4475 = vsel %vm4474, %v4466, %v4471
        %v4476 = vrsqrt.pop %v3685
        %v4477 = vmul.f32 %v4476, %v3685
        %v4478 = vmul.f32 %v4477, %v4476
        %v4479 = vmul.f32 0.5, %v4478
        %v4480 = vsub.f32 1.5, %v4479
        %v4481 = vmul.f32 %v4476, %v4480
        %vm4482 = vweird.f32 %v3685
        %vm4483 = vweird.f32 %v4476
        %vm4484 = vmor %vm4482, %vm4483
        %v4485 = vsel %vm4484, %v4476, %v4481
        %v4486 = vmul.f32 %v2886, %v3695
        %v4487 = vmul.f32 %v2887, %v3705
        %v4488 = vmul.f32 %v2888, %v3715
        %v4489 = vmul.f32 %v2889, %v3725
        %v4490 = vmul.f32 %v2890, %v3735
        %v4491 = vmul.f32 %v2891, %v3745
        %v4492 = vmul.f32 %v2892, %v3755
        %v4493 = vmul.f32 %v2893, %v3765
        %v4494 = vmul.f32 %v2894, %v3775
        %v4495 = vmul.f32 %v2895, %v3785
        %v4496 = vmul.f32 %v2896, %v3795
        %v4497 = vmul.f32 %v2897, %v3805
        %v4498 = vmul.f32 %v2898, %v3815
        %v4499 = vmul.f32 %v2899, %v3825
        %v4500 = vmul.f32 %v2900, %v3835
        %v4501 = vmul.f32 %v2901, %v3845
        %v4502 = vmul.f32 %v2902, %v3855
        %v4503 = vmul.f32 %v2903, %v3865
        %v4504 = vmul.f32 %v2904, %v3875
        %v4505 = vmul.f32 %v2905, %v3885
        %v4506 = vmul.f32 %v2906, %v3895
        %v4507 = vmul.f32 %v2907, %v3905
        %v4508 = vmul.f32 %v2908, %v3915
        %v4509 = vmul.f32 %v2909, %v3925
        %v4510 = vmul.f32 %v2910, %v3935
        %v4511 = vmul.f32 %v2911, %v3945
        %v4512 = vmul.f32 %v2912, %v3955
        %v4513 = vmul.f32 %v2913, %v3965
        %v4514 = vmul.f32 %v2914, %v3975
        %v4515 = vmul.f32 %v2915, %v3985
        %v4516 = vmul.f32 %v2916, %v3995
        %v4517 = vmul.f32 %v2917, %v4005
        %v4518 = vmul.f32 %v2918, %v4015
        %v4519 = vmul.f32 %v2919, %v4025
        %v4520 = vmul.f32 %v2920, %v4035
        %v4521 = vmul.f32 %v2921, %v4045
        %v4522 = vmul.f32 %v2922, %v4055
        %v4523 = vmul.f32 %v2923, %v4065
        %v4524 = vmul.f32 %v2924, %v4075
        %v4525 = vmul.f32 %v2925, %v4085
        %v4526 = vmul.f32 %v2926, %v4095
        %v4527 = vmul.f32 %v2927, %v4105
        %v4528 = vmul.f32 %v2928, %v4115
        %v4529 = vmul.f32 %v2929, %v4125
        %v4530 = vmul.f32 %v2930, %v4135
        %v4531 = vmul.f32 %v2931, %v4145
        %v4532 = vmul.f32 %v2932, %v4155
        %v4533 = vmul.f32 %v2933, %v4165
        %v4534 = vmul.f32 %v2934, %v4175
        %v4535 = vmul.f32 %v2935, %v4185
        %v4536 = vmul.f32 %v2936, %v4195
        %v4537 = vmul.f32 %v2937, %v4205
        %v4538 = vmul.f32 %v2938, %v4215
        %v4539 = vmul.f32 %v2939, %v4225
        %v4540 = vmul.f32 %v2940, %v4235
        %v4541 = vmul.f32 %v2941, %v4245
        %v4542 = vmul.f32 %v2942, %v4255
        %v4543 = vmul.f32 %v2943, %v4265
        %v4544 = vmul.f32 %v2944, %v4275
        %v4545 = vmul.f32 %v2945, %v4285
        %v4546 = vmul.f32 %v2946, %v4295
        %v4547 = vmul.f32 %v2947, %v4305
        %v4548 = vmul.f32 %v2948, %v4315
        %v4549 = vmul.f32 %v2949, %v4325
        %v4550 = vmul.f32 %v2950, %v4335
        %v4551 = vmul.f32 %v2951, %v4345
        %v4552 = vmul.f32 %v2952, %v4355
        %v4553 = vmul.f32 %v2953, %v4365
        %v4554 = vmul.f32 %v2954, %v4375
        %v4555 = vmul.f32 %v2955, %v4385
        %v4556 = vmul.f32 %v2956, %v4395
        %v4557 = vmul.f32 %v2957, %v4405
        %v4558 = vmul.f32 %v2958, %v4415
        %v4559 = vmul.f32 %v2959, %v4425
        %v4560 = vmul.f32 %v2960, %v4435
        %v4561 = vmul.f32 %v2961, %v4445
        %v4562 = vmul.f32 %v2962, %v4455
        %v4563 = vmul.f32 %v2963, %v4465
        %v4564 = vmul.f32 %v2964, %v4475
        %v4565 = vmul.f32 %v2965, %v4485
        %v4566 = vld [vmem:[#allocation10 + $0x2] sm:$0x1f]
        %v4568 = vperm.slane %v4566, 0
        %v4569 = vperm.slane %v4566, 1
        %v4570 = vperm.slane %v4566, 2
        %v4571 = vperm.slane %v4566, 3
        %v4572 = vperm.slane %v4566, 4
        %v4578 = vmul.f32 %v4486, %v4568
        %v4579 = vmul.f32 %v4487, %v4569
        %v4580 = vmul.f32 %v4488, %v4570
        %v4581 = vmul.f32 %v4489, %v4571
        %v4582 = vmul.f32 %v4490, %v4572
        %v4583 = vmul.f32 %v4491, %v4568
        %v4584 = vmul.f32 %v4492, %v4569
        %v4585 = vmul.f32 %v4493, %v4570
        %v4586 = vmul.f32 %v4494, %v4571
        %v4587 = vmul.f32 %v4495, %v4572
        %v4588 = vmul.f32 %v4496, %v4568
        %v4589 = vmul.f32 %v4497, %v4569
        %v4590 = vmul.f32 %v4498, %v4570
        %v4591 = vmul.f32 %v4499, %v4571
        %v4592 = vmul.f32 %v4500, %v4572
        %v4593 = vmul.f32 %v4501, %v4568
        %v4594 = vmul.f32 %v4502, %v4569
        %v4595 = vmul.f32 %v4503, %v4570
        %v4596 = vmul.f32 %v4504, %v4571
        %v4597 = vmul.f32 %v4505, %v4572
        %v4598 = vmul.f32 %v4506, %v4568
        %v4599 = vmul.f32 %v4507, %v4569
        %v4600 = vmul.f32 %v4508, %v4570
        %v4601 = vmul.f32 %v4509, %v4571
        %v4602 = vmul.f32 %v4510, %v4572
        %v4603 = vmul.f32 %v4511, %v4568
        %v4604 = vmul.f32 %v4512, %v4569
        %v4605 = vmul.f32 %v4513, %v4570
        %v4606 = vmul.f32 %v4514, %v4571
        %v4607 = vmul.f32 %v4515, %v4572
        %v4608 = vmul.f32 %v4516, %v4568
        %v4609 = vmul.f32 %v4517, %v4569
        %v4610 = vmul.f32 %v4518, %v4570
        %v4611 = vmul.f32 %v4519, %v4571
        %v4612 = vmul.f32 %v4520, %v4572
        %v4613 = vmul.f32 %v4521, %v4568
        %v4614 = vmul.f32 %v4522, %v4569
        %v4615 = vmul.f32 %v4523, %v4570
        %v4616 = vmul.f32 %v4524, %v4571
        %v4617 = vmul.f32 %v4525, %v4572
        %v4618 = vmul.f32 %v4526, %v4568
        %v4619 = vmul.f32 %v4527, %v4569
        %v4620 = vmul.f32 %v4528, %v4570
        %v4621 = vmul.f32 %v4529, %v4571
        %v4622 = vmul.f32 %v4530, %v4572
        %v4623 = vmul.f32 %v4531, %v4568
        %v4624 = vmul.f32 %v4532, %v4569
        %v4625 = vmul.f32 %v4533, %v4570
        %v4626 = vmul.f32 %v4534, %v4571
        %v4627 = vmul.f32 %v4535, %v4572
        %v4628 = vmul.f32 %v4536, %v4568
        %v4629 = vmul.f32 %v4537, %v4569
        %v4630 = vmul.f32 %v4538, %v4570
        %v4631 = vmul.f32 %v4539, %v4571
        %v4632 = vmul.f32 %v4540, %v4572
        %v4633 = vmul.f32 %v4541, %v4568
        %v4634 = vmul.f32 %v4542, %v4569
        %v4635 = vmul.f32 %v4543, %v4570
        %v4636 = vmul.f32 %v4544, %v4571
        %v4637 = vmul.f32 %v4545, %v4572
        %v4638 = vmul.f32 %v4546, %v4568
        %v4639 = vmul.f32 %v4547, %v4569
        %v4640 = vmul.f32 %v4548, %v4570
        %v4641 = vmul.f32 %v4549, %v4571
        %v4642 = vmul.f32 %v4550, %v4572
        %v4643 = vmul.f32 %v4551, %v4568
        %v4644 = vmul.f32 %v4552, %v4569
        %v4645 = vmul.f32 %v4553, %v4570
        %v4646 = vmul.f32 %v4554, %v4571
        %v4647 = vmul.f32 %v4555, %v4572
        %v4648 = vmul.f32 %v4556, %v4568
        %v4649 = vmul.f32 %v4557, %v4569
        %v4650 = vmul.f32 %v4558, %v4570
        %v4651 = vmul.f32 %v4559, %v4571
        %v4652 = vmul.f32 %v4560, %v4572
        %v4653 = vmul.f32 %v4561, %v4568
        %v4654 = vmul.f32 %v4562, %v4569
        %v4655 = vmul.f32 %v4563, %v4570
        %v4656 = vmul.f32 %v4564, %v4571
        %v4657 = vmul.f32 %v4565, %v4572
        %v4658 = vld [vmem:[#allocation11 + $0x2] sm:$0x1f]
        %v4660 = vperm.slane %v4658, 0
        %v4661 = vperm.slane %v4658, 1
        %v4662 = vperm.slane %v4658, 2
        %v4663 = vperm.slane %v4658, 3
        %v4664 = vperm.slane %v4658, 4
        %v4670 = vadd.f32 %v4578, %v4660
        %v4671 = vadd.f32 %v4579, %v4661
        %v4672 = vadd.f32 %v4580, %v4662
        %v4673 = vadd.f32 %v4581, %v4663
        %v4674 = vadd.f32 %v4582, %v4664
        %v4675 = vadd.f32 %v4583, %v4660
        %v4676 = vadd.f32 %v4584, %v4661
        %v4677 = vadd.f32 %v4585, %v4662
        %v4678 = vadd.f32 %v4586, %v4663
        %v4679 = vadd.f32 %v4587, %v4664
        %v4680 = vadd.f32 %v4588, %v4660
        %v4681 = vadd.f32 %v4589, %v4661
        %v4682 = vadd.f32 %v4590, %v4662
        %v4683 = vadd.f32 %v4591, %v4663
        %v4684 = vadd.f32 %v4592, %v4664
        %v4685 = vadd.f32 %v4593, %v4660
        %v4686 = vadd.f32 %v4594, %v4661
        %v4687 = vadd.f32 %v4595, %v4662
        %v4688 = vadd.f32 %v4596, %v4663
        %v4689 = vadd.f32 %v4597, %v4664
        %v4690 = vadd.f32 %v4598, %v4660
        %v4691 = vadd.f32 %v4599, %v4661
        %v4692 = vadd.f32 %v4600, %v4662
        %v4693 = vadd.f32 %v4601, %v4663
        %v4694 = vadd.f32 %v4602, %v4664
        %v4695 = vadd.f32 %v4603, %v4660
        %v4696 = vadd.f32 %v4604, %v4661
        %v4697 = vadd.f32 %v4605, %v4662
        %v4698 = vadd.f32 %v4606, %v4663
        %v4699 = vadd.f32 %v4607, %v4664
        %v4700 = vadd.f32 %v4608, %v4660
        %v4701 = vadd.f32 %v4609, %v4661
        %v4702 = vadd.f32 %v4610, %v4662
        %v4703 = vadd.f32 %v4611, %v4663
        %v4704 = vadd.f32 %v4612, %v4664
        %v4705 = vadd.f32 %v4613, %v4660
        %v4706 = vadd.f32 %v4614, %v4661
        %v4707 = vadd.f32 %v4615, %v4662
        %v4708 = vadd.f32 %v4616, %v4663
        %v4709 = vadd.f32 %v4617, %v4664
        %v4710 = vadd.f32 %v4618, %v4660
        %v4711 = vadd.f32 %v4619, %v4661
        %v4712 = vadd.f32 %v4620, %v4662
        %v4713 = vadd.f32 %v4621, %v4663
        %v4714 = vadd.f32 %v4622, %v4664
        %v4715 = vadd.f32 %v4623, %v4660
        %v4716 = vadd.f32 %v4624, %v4661
        %v4717 = vadd.f32 %v4625, %v4662
        %v4718 = vadd.f32 %v4626, %v4663
        %v4719 = vadd.f32 %v4627, %v4664
        %v4720 = vadd.f32 %v4628, %v4660
        %v4721 = vadd.f32 %v4629, %v4661
        %v4722 = vadd.f32 %v4630, %v4662
        %v4723 = vadd.f32 %v4631, %v4663
        %v4724 = vadd.f32 %v4632, %v4664
        %v4725 = vadd.f32 %v4633, %v4660
        %v4726 = vadd.f32 %v4634, %v4661
        %v4727 = vadd.f32 %v4635, %v4662
        %v4728 = vadd.f32 %v4636, %v4663
        %v4729 = vadd.f32 %v4637, %v4664
        %v4730 = vadd.f32 %v4638, %v4660
        %v4731 = vadd.f32 %v4639, %v4661
        %v4732 = vadd.f32 %v4640, %v4662
        %v4733 = vadd.f32 %v4641, %v4663
        %v4734 = vadd.f32 %v4642, %v4664
        %v4735 = vadd.f32 %v4643, %v4660
        %v4736 = vadd.f32 %v4644, %v4661
        %v4737 = vadd.f32 %v4645, %v4662
        %v4738 = vadd.f32 %v4646, %v4663
        %v4739 = vadd.f32 %v4647, %v4664
        %v4740 = vadd.f32 %v4648, %v4660
        %v4741 = vadd.f32 %v4649, %v4661
        %v4742 = vadd.f32 %v4650, %v4662
        %v4743 = vadd.f32 %v4651, %v4663
        %v4744 = vadd.f32 %v4652, %v4664
        %v4745 = vadd.f32 %v4653, %v4660
        %v4746 = vadd.f32 %v4654, %v4661
        %v4747 = vadd.f32 %v4655, %v4662
        %v4748 = vadd.f32 %v4656, %v4663
        %v4749 = vadd.f32 %v4657, %v4664
        %v4750 = vmax.f32 %v4670, 0.0
        %v4751 = vmax.f32 %v4671, 0.0
        %v4752 = vmax.f32 %v4672, 0.0
        %v4753 = vmax.f32 %v4673, 0.0
        %v4754 = vmax.f32 %v4674, 0.0
        %v4755 = vmax.f32 %v4675, 0.0
        %v4756 = vmax.f32 %v4676, 0.0
        %v4757 = vmax.f32 %v4677, 0.0
        %v4758 = vmax.f32 %v4678, 0.0
        %v4759 = vmax.f32 %v4679, 0.0
        %v4760 = vmax.f32 %v4680, 0.0
        %v4761 = vmax.f32 %v4681, 0.0
        %v4762 = vmax.f32 %v4682, 0.0
        %v4763 = vmax.f32 %v4683, 0.0
        %v4764 = vmax.f32 %v4684, 0.0
        %v4765 = vmax.f32 %v4685, 0.0
        %v4766 = vmax.f32 %v4686, 0.0
        %v4767 = vmax.f32 %v4687, 0.0
        %v4768 = vmax.f32 %v4688, 0.0
        %v4769 = vmax.f32 %v4689, 0.0
        %v4770 = vmax.f32 %v4690, 0.0
        %v4771 = vmax.f32 %v4691, 0.0
        %v4772 = vmax.f32 %v4692, 0.0
        %v4773 = vmax.f32 %v4693, 0.0
        %v4774 = vmax.f32 %v4694, 0.0
        %v4775 = vmax.f32 %v4695, 0.0
        %v4776 = vmax.f32 %v4696, 0.0
        %v4777 = vmax.f32 %v4697, 0.0
        %v4778 = vmax.f32 %v4698, 0.0
        %v4779 = vmax.f32 %v4699, 0.0
        %v4780 = vmax.f32 %v4700, 0.0
        %v4781 = vmax.f32 %v4701, 0.0
        %v4782 = vmax.f32 %v4702, 0.0
        %v4783 = vmax.f32 %v4703, 0.0
        %v4784 = vmax.f32 %v4704, 0.0
        %v4785 = vmax.f32 %v4705, 0.0
        %v4786 = vmax.f32 %v4706, 0.0
        %v4787 = vmax.f32 %v4707, 0.0
        %v4788 = vmax.f32 %v4708, 0.0
        %v4789 = vmax.f32 %v4709, 0.0
        %v4790 = vmax.f32 %v4710, 0.0
        %v4791 = vmax.f32 %v4711, 0.0
        %v4792 = vmax.f32 %v4712, 0.0
        %v4793 = vmax.f32 %v4713, 0.0
        %v4794 = vmax.f32 %v4714, 0.0
        %v4795 = vmax.f32 %v4715, 0.0
        %v4796 = vmax.f32 %v4716, 0.0
        %v4797 = vmax.f32 %v4717, 0.0
        %v4798 = vmax.f32 %v4718, 0.0
        %v4799 = vmax.f32 %v4719, 0.0
        %v4800 = vmax.f32 %v4720, 0.0
        %v4801 = vmax.f32 %v4721, 0.0
        %v4802 = vmax.f32 %v4722, 0.0
        %v4803 = vmax.f32 %v4723, 0.0
        %v4804 = vmax.f32 %v4724, 0.0
        %v4805 = vmax.f32 %v4725, 0.0
        %v4806 = vmax.f32 %v4726, 0.0
        %v4807 = vmax.f32 %v4727, 0.0
        %v4808 = vmax.f32 %v4728, 0.0
        %v4809 = vmax.f32 %v4729, 0.0
        %v4810 = vmax.f32 %v4730, 0.0
        %v4811 = vmax.f32 %v4731, 0.0
        %v4812 = vmax.f32 %v4732, 0.0
        %v4813 = vmax.f32 %v4733, 0.0
        %v4814 = vmax.f32 %v4734, 0.0
        %v4815 = vmax.f32 %v4735, 0.0
        %v4816 = vmax.f32 %v4736, 0.0
        %v4817 = vmax.f32 %v4737, 0.0
        %v4818 = vmax.f32 %v4738, 0.0
        %v4819 = vmax.f32 %v4739, 0.0
        %v4820 = vmax.f32 %v4740, 0.0
        %v4821 = vmax.f32 %v4741, 0.0
        %v4822 = vmax.f32 %v4742, 0.0
        %v4823 = vmax.f32 %v4743, 0.0
        %v4824 = vmax.f32 %v4744, 0.0
        %v4825 = vmax.f32 %v4745, 0.0
        %v4826 = vmax.f32 %v4746, 0.0
        %v4827 = vmax.f32 %v4747, 0.0
        %v4828 = vmax.f32 %v4748, 0.0
        %v4829 = vmax.f32 %v4749, 0.0
        %v4830 = vadd.f32 %v2294, %v4750
        %v4831 = vadd.f32 %v2296, %v4755
        %v4832 = vadd.f32 %v2298, %v4760
        %v4833 = vadd.f32 %v2300, %v4765
        %v4834 = vadd.f32 %v2302, %v4770
        %v4835 = vadd.f32 %v2304, %v4775
        %v4836 = vadd.f32 %v2306, %v4780
        %v4837 = vadd.f32 %v2308, %v4785
        %v4838 = vadd.f32 %v2310, %v4790
        %v4839 = vadd.f32 %v2312, %v4795
        %v4840 = vadd.f32 %v2314, %v4800
        %v4841 = vadd.f32 %v2316, %v4805
        %v4842 = vadd.f32 %v2318, %v4810
        %v4843 = vadd.f32 %v2320, %v4815
        %v4844 = vadd.f32 %v2322, %v4820
        %v4845 = vadd.f32 %v2324, %v4825
        %v4846 = vadd.f32 %v4830, %v4751
        %v4847 = vadd.f32 %v4831, %v4756
        %v4848 = vadd.f32 %v4832, %v4761
        %v4849 = vadd.f32 %v4833, %v4766
        %v4850 = vadd.f32 %v4834, %v4771
        %v4851 = vadd.f32 %v4835, %v4776
        %v4852 = vadd.f32 %v4836, %v4781
        %v4853 = vadd.f32 %v4837, %v4786
        %v4854 = vadd.f32 %v4838, %v4791
        %v4855 = vadd.f32 %v4839, %v4796
        %v4856 = vadd.f32 %v4840, %v4801
        %v4857 = vadd.f32 %v4841, %v4806
        %v4858 = vadd.f32 %v4842, %v4811
        %v4859 = vadd.f32 %v4843, %v4816
        %v4860 = vadd.f32 %v4844, %v4821
        %v4861 = vadd.f32 %v4845, %v4826
        %4862 = vst [vmem:[%s375] sm:$0xff] %v4846
        %4863 = vst [vmem:[%s375 + $0x8] sm:$0xff] %v4847
        %4864 = vst [vmem:[%s375 + $0x10] sm:$0xff] %v4848
        %4865 = vst [vmem:[%s375 + $0x18] sm:$0xff] %v4849
        %4866 = vst [vmem:[%s375 + $0x20] sm:$0xff] %v4850
        %4867 = vst [vmem:[%s375 + $0x28] sm:$0xff] %v4851
        %4868 = vst [vmem:[%s375 + $0x30] sm:$0xff] %v4852
        %4869 = vst [vmem:[%s375 + $0x38] sm:$0xff] %v4853
        %4870 = vst [vmem:[%s375 + $0x40] sm:$0xff] %v4854
        %4871 = vst [vmem:[%s375 + $0x48] sm:$0xff] %v4855
        %4872 = vst [vmem:[%s375 + $0x50] sm:$0xff] %v4856
        %4873 = vst [vmem:[%s375 + $0x58] sm:$0xff] %v4857
        %4874 = vst [vmem:[%s375 + $0x60] sm:$0xff] %v4858
        %4875 = vst [vmem:[%s375 + $0x68] sm:$0xff] %v4859
        %4876 = vst [vmem:[%s375 + $0x70] sm:$0xff] %v4860
        %4877 = vst [vmem:[%s375 + $0x78] sm:$0xff] %v4861
        %v4878 = vpack.c.bf16 %v4847, %v4846
        %v4879 = vpack.c.bf16 %v4849, %v4848
        %v4880 = vpack.c.bf16 %v4851, %v4850
        %v4881 = vpack.c.bf16 %v4853, %v4852
        %v4882 = vpack.c.bf16 %v4855, %v4854
        %v4883 = vpack.c.bf16 %v4857, %v4856
        %v4884 = vpack.c.bf16 %v4859, %v4858
        %v4885 = vpack.c.bf16 %v4861, %v4860
        %v4886 = vld [vmem:[#allocation8] sm:$0xff]
        %v4887 = vld [vmem:[#allocation8 + $0x8] sm:$0xff]
        %v4888 = vld [vmem:[#allocation8 + $0x10] sm:$0xff]
        %v4889 = vld [vmem:[#allocation8 + $0x18] sm:$0xff]
        %v4890 = vld [vmem:[#allocation8 + $0x20] sm:$0xff]
        %v4891 = vld [vmem:[#allocation8 + $0x28] sm:$0xff]
        %v4892 = vld [vmem:[#allocation8 + $0x30] sm:$0xff]
        %v4893 = vld [vmem:[#allocation8 + $0x38] sm:$0xff]
        %v4894 = vld [vmem:[#allocation8 + $0x40] sm:$0xff]
        %v4895 = vld [vmem:[#allocation8 + $0x48] sm:$0xff]
        %v4896 = vld [vmem:[#allocation8 + $0x50] sm:$0xff]
        %v4897 = vld [vmem:[#allocation8 + $0x58] sm:$0xff]
        %v4898 = vld [vmem:[#allocation8 + $0x60] sm:$0xff]
        %v4899 = vld [vmem:[#allocation8 + $0x68] sm:$0xff]
        %v4900 = vld [vmem:[#allocation8 + $0x70] sm:$0xff]
        %v4901 = vld [vmem:[#allocation8 + $0x78] sm:$0xff]
        %v4918 = vunpack.c.l.b16 %v4886
        %v4919 = vunpack.c.h.b16 %v4886
        %v4920 = vunpack.c.l.b16 %v4887
        %v4921 = vunpack.c.h.b16 %v4887
        %v4922 = vunpack.c.l.b16 %v4888
        %v4923 = vunpack.c.h.b16 %v4888
        %v4924 = vunpack.c.l.b16 %v4889
        %v4925 = vunpack.c.h.b16 %v4889
        %v4926 = vunpack.c.l.b16 %v4890
        %v4927 = vunpack.c.h.b16 %v4890
        %v4928 = vunpack.c.l.b16 %v4891
        %v4929 = vunpack.c.h.b16 %v4891
        %v4930 = vunpack.c.l.b16 %v4892
        %v4931 = vunpack.c.h.b16 %v4892
        %v4932 = vunpack.c.l.b16 %v4893
        %v4933 = vunpack.c.h.b16 %v4893
        %v4934 = vunpack.c.l.b16 %v4894
        %v4935 = vunpack.c.h.b16 %v4894
        %v4936 = vunpack.c.l.b16 %v4895
        %v4937 = vunpack.c.h.b16 %v4895
        %v4938 = vunpack.c.l.b16 %v4896
        %v4939 = vunpack.c.h.b16 %v4896
        %v4940 = vunpack.c.l.b16 %v4897
        %v4941 = vunpack.c.h.b16 %v4897
        %v4942 = vunpack.c.l.b16 %v4898
        %v4943 = vunpack.c.h.b16 %v4898
        %v4944 = vunpack.c.l.b16 %v4899
        %v4945 = vunpack.c.h.b16 %v4899
        %v4946 = vunpack.c.l.b16 %v4900
        %v4947 = vunpack.c.h.b16 %v4900
        %v4948 = vunpack.c.l.b16 %v4901
        %v4949 = vunpack.c.h.b16 %v4901
        %v4950 = vpack.c.b16 %v4920, %v4918
        %v4951 = vpack.c.b16 %v4921, %v4919
        %v4952 = vpack.c.b16 %v4924, %v4922
        %v4953 = vpack.c.b16 %v4925, %v4923
        %v4954 = vpack.c.b16 %v4928, %v4926
        %v4955 = vpack.c.b16 %v4929, %v4927
        %v4956 = vpack.c.b16 %v4932, %v4930
        %v4957 = vpack.c.b16 %v4933, %v4931
        %v4958 = vpack.c.b16 %v4936, %v4934
        %v4959 = vpack.c.b16 %v4937, %v4935
        %v4960 = vpack.c.b16 %v4940, %v4938
        %v4961 = vpack.c.b16 %v4941, %v4939
        %v4962 = vpack.c.b16 %v4944, %v4942
        %v4963 = vpack.c.b16 %v4945, %v4943
        %v4964 = vpack.c.b16 %v4948, %v4946
        %v4965 = vpack.c.b16 %v4949, %v4947
        %4982 = vmatpush.bf16.msra.mxu0 %v4964
        %4983 = vmatpush.bf16.msra.mxu0 %v4962
        %4984 = vmatpush.bf16.msra.mxu0 %v4960
        %4985 = vmatpush.bf16.msra.mxu0 %v4958
        %4986 = vmatpush.bf16.msra.mxu0 %v4956
        %4987 = vmatpush.bf16.msra.mxu0 %v4954
        %4988 = vmatpush.bf16.msra.mxu0 %v4952
        %4989 = vmatpush.bf16.msra.mxu0 %v4950
        %4990 = vmatmul.bf16.gmra.mxu0 %v4878
        %v4991 = vpop.f32.mrf.mxu0
        %v4992 = vadd.f32 0.0, %v4991
        %v4993 = vpop.f32.mrf.mxu0
        %v4994 = vadd.f32 0.0, %v4993
        %4995 = vmatmul.bf16.gmra.mxu0 %v4879
        %v4996 = vpop.f32.mrf.mxu0
        %v4997 = vadd.f32 0.0, %v4996
        %v4998 = vpop.f32.mrf.mxu0
        %v4999 = vadd.f32 0.0, %v4998
        %5000 = vmatmul.bf16.gmra.mxu0 %v4880
        %v5001 = vpop.f32.mrf.mxu0
        %v5002 = vadd.f32 0.0, %v5001
        %v5003 = vpop.f32.mrf.mxu0
        %v5004 = vadd.f32 0.0, %v5003
        %5005 = vmatmul.bf16.gmra.mxu0 %v4881
        %v5006 = vpop.f32.mrf.mxu0
        %v5007 = vadd.f32 0.0, %v5006
        %v5008 = vpop.f32.mrf.mxu0
        %v5009 = vadd.f32 0.0, %v5008
        %5010 = vmatmul.bf16.gmra.mxu0 %v4882
        %v5011 = vpop.f32.mrf.mxu0
        %v5012 = vadd.f32 0.0, %v5011
        %v5013 = vpop.f32.mrf.mxu0
        %v5014 = vadd.f32 0.0, %v5013
        %5015 = vmatmul.bf16.gmra.mxu0 %v4883
        %v5016 = vpop.f32.mrf.mxu0
        %v5017 = vadd.f32 0.0, %v5016
        %v5018 = vpop.f32.mrf.mxu0
        %v5019 = vadd.f32 0.0, %v5018
        %5020 = vmatmul.bf16.gmra.mxu0 %v4884
        %v5021 = vpop.f32.mrf.mxu0
        %v5022 = vadd.f32 0.0, %v5021
        %v5023 = vpop.f32.mrf.mxu0
        %v5024 = vadd.f32 0.0, %v5023
        %5025 = vmatmul.bf16.gmra.mxu0 %v4885
        %v5026 = vpop.f32.mrf.mxu0
        %v5027 = vadd.f32 0.0, %v5026
        %v5028 = vpop.f32.mrf.mxu0
        %v5029 = vadd.f32 0.0, %v5028
        %5030 = vdwg.mxu0
        %5031 = vmatpush.bf16.msra.mxu0 %v4965
        %5032 = vmatpush.bf16.msra.mxu0 %v4963
        %5033 = vmatpush.bf16.msra.mxu0 %v4961
        %5034 = vmatpush.bf16.msra.mxu0 %v4959
        %5035 = vmatpush.bf16.msra.mxu0 %v4957
        %5036 = vmatpush.bf16.msra.mxu0 %v4955
        %5037 = vmatpush.bf16.msra.mxu0 %v4953
        %5038 = vmatpush.bf16.msra.mxu0 %v4951
        %5039 = vmatmul.bf16.gmra.mxu0 %v4878
        %v5040 = vpop.f32.mrf.mxu0
        %v5041 = vadd.f32 0.0, %v5040
        %v5042 = vpop.f32.mrf.mxu0
        %v5043 = vadd.f32 0.0, %v5042
        %5044 = vmatmul.bf16.gmra.mxu0 %v4879
        %v5045 = vpop.f32.mrf.mxu0
        %v5046 = vadd.f32 0.0, %v5045
        %v5047 = vpop.f32.mrf.mxu0
        %v5048 = vadd.f32 0.0, %v5047
        %5049 = vmatmul.bf16.gmra.mxu0 %v4880
        %v5050 = vpop.f32.mrf.mxu0
        %v5051 = vadd.f32 0.0, %v5050
        %v5052 = vpop.f32.mrf.mxu0
        %v5053 = vadd.f32 0.0, %v5052
        %5054 = vmatmul.bf16.gmra.mxu0 %v4881
        %v5055 = vpop.f32.mrf.mxu0
        %v5056 = vadd.f32 0.0, %v5055
        %v5057 = vpop.f32.mrf.mxu0
        %v5058 = vadd.f32 0.0, %v5057
        %5059 = vmatmul.bf16.gmra.mxu0 %v4882
        %v5060 = vpop.f32.mrf.mxu0
        %v5061 = vadd.f32 0.0, %v5060
        %v5062 = vpop.f32.mrf.mxu0
        %v5063 = vadd.f32 0.0, %v5062
        %5064 = vmatmul.bf16.gmra.mxu0 %v4883
        %v5065 = vpop.f32.mrf.mxu0
        %v5066 = vadd.f32 0.0, %v5065
        %v5067 = vpop.f32.mrf.mxu0
        %v5068 = vadd.f32 0.0, %v5067
        %5069 = vmatmul.bf16.gmra.mxu0 %v4884
        %v5070 = vpop.f32.mrf.mxu0
        %v5071 = vadd.f32 0.0, %v5070
        %v5072 = vpop.f32.mrf.mxu0
        %v5073 = vadd.f32 0.0, %v5072
        %5074 = vmatmul.bf16.gmra.mxu0 %v4885
        %v5075 = vpop.f32.mrf.mxu0
        %v5076 = vadd.f32 0.0, %v5075
        %v5077 = vpop.f32.mrf.mxu0
        %v5078 = vadd.f32 0.0, %v5077
        %5079 = vdwg.mxu0
        %v5080 = vpack.c.bf16 %v4994, %v4992
        %v5081 = vpack.c.bf16 %v4999, %v4997
        %v5082 = vpack.c.bf16 %v5004, %v5002
        %v5083 = vpack.c.bf16 %v5009, %v5007
        %v5084 = vpack.c.bf16 %v5014, %v5012
        %v5085 = vpack.c.bf16 %v5019, %v5017
        %v5086 = vpack.c.bf16 %v5024, %v5022
        %v5087 = vpack.c.bf16 %v5029, %v5027
        %5088 = vmatpush.bf16.msra.mxu0 %v5087
        %5089 = vmatpush.bf16.msra.mxu0 %v5086
        %5090 = vmatpush.bf16.msra.mxu0 %v5085
        %5091 = vmatpush.bf16.msra.mxu0 %v5084
        %5092 = vmatpush.bf16.msra.mxu0 %v5083
        %5093 = vmatpush.bf16.msra.mxu0 %v5082
        %5094 = vmatpush.bf16.msra.mxu0 %v5081
        %5095 = vmatpush.bf16.msra.mxu0 %v5080
        %5096 = vmatmul.bf16.gmra.mxu0 %v1201
        %v5097 = vpop.f32.mrf.mxu0
        %v5098 = vadd.f32 0.0, %v5097
        %v5099 = vpop.f32.mrf.mxu0
        %v5100 = vadd.f32 0.0, %v5099
        %5101 = vmatmul.bf16.gmra.mxu0 %v1202
        %v5102 = vpop.f32.mrf.mxu0
        %v5103 = vadd.f32 0.0, %v5102
        %v5104 = vpop.f32.mrf.mxu0
        %v5105 = vadd.f32 0.0, %v5104
        %5106 = vmatmul.bf16.gmra.mxu0 %v1203
        %v5107 = vpop.f32.mrf.mxu0
        %v5108 = vadd.f32 0.0, %v5107
        %v5109 = vpop.f32.mrf.mxu0
        %v5110 = vadd.f32 0.0, %v5109
        %5111 = vmatmul.bf16.gmra.mxu0 %v1204
        %v5112 = vpop.f32.mrf.mxu0
        %v5113 = vadd.f32 0.0, %v5112
        %v5114 = vpop.f32.mrf.mxu0
        %v5115 = vadd.f32 0.0, %v5114
        %5116 = vmatmul.bf16.gmra.mxu0 %v1205
        %v5117 = vpop.f32.mrf.mxu0
        %v5118 = vadd.f32 0.0, %v5117
        %v5119 = vpop.f32.mrf.mxu0
        %v5120 = vadd.f32 0.0, %v5119
        %5121 = vmatmul.bf16.gmra.mxu0 %v1206
        %v5122 = vpop.f32.mrf.mxu0
        %v5123 = vadd.f32 0.0, %v5122
        %v5124 = vpop.f32.mrf.mxu0
        %v5125 = vadd.f32 0.0, %v5124
        %5126 = vmatmul.bf16.gmra.mxu0 %v1207
        %v5127 = vpop.f32.mrf.mxu0
        %v5128 = vadd.f32 0.0, %v5127
        %v5129 = vpop.f32.mrf.mxu0
        %v5130 = vadd.f32 0.0, %v5129
        %5131 = vmatmul.bf16.gmra.mxu0 %v1208
        %v5132 = vpop.f32.mrf.mxu0
        %v5133 = vadd.f32 0.0, %v5132
        %v5134 = vpop.f32.mrf.mxu0
        %v5135 = vadd.f32 0.0, %v5134
        %5136 = vdwg.mxu0
        %v5137 = vrot.slane %v5098, 4
        %v5138 = vadd.f32 %v5098, %v5137
        %v5139 = vrot.slane %v5138, 2
        %v5140 = vadd.f32 %v5138, %v5139
        %v5141 = vrot.slane %v5140, 1
        %v5142 = vadd.f32 %v5140, %v5141
        %v5143 = vrot.slane %v5100, 4
        %v5144 = vadd.f32 %v5100, %v5143
        %v5145 = vrot.slane %v5144, 2
        %v5146 = vadd.f32 %v5144, %v5145
        %v5147 = vrot.slane %v5146, 1
        %v5148 = vadd.f32 %v5146, %v5147
        %v5149 = vrot.slane %v5103, 4
        %v5150 = vadd.f32 %v5103, %v5149
        %v5151 = vrot.slane %v5150, 2
        %v5152 = vadd.f32 %v5150, %v5151
        %v5153 = vrot.slane %v5152, 1
        %v5154 = vadd.f32 %v5152, %v5153
        %v5155 = vrot.slane %v5105, 4
        %v5156 = vadd.f32 %v5105, %v5155
        %v5157 = vrot.slane %v5156, 2
        %v5158 = vadd.f32 %v5156, %v5157
        %v5159 = vrot.slane %v5158, 1
        %v5160 = vadd.f32 %v5158, %v5159
        %v5161 = vrot.slane %v5108, 4
        %v5162 = vadd.f32 %v5108, %v5161
        %v5163 = vrot.slane %v5162, 2
        %v5164 = vadd.f32 %v5162, %v5163
        %v5165 = vrot.slane %v5164, 1
        %v5166 = vadd.f32 %v5164, %v5165
        %v5167 = vrot.slane %v5110, 4
        %v5168 = vadd.f32 %v5110, %v5167
        %v5169 = vrot.slane %v5168, 2
        %v5170 = vadd.f32 %v5168, %v5169
        %v5171 = vrot.slane %v5170, 1
        %v5172 = vadd.f32 %v5170, %v5171
        %v5173 = vrot.slane %v5113, 4
        %v5174 = vadd.f32 %v5113, %v5173
        %v5175 = vrot.slane %v5174, 2
        %v5176 = vadd.f32 %v5174, %v5175
        %v5177 = vrot.slane %v5176, 1
        %v5178 = vadd.f32 %v5176, %v5177
        %v5179 = vrot.slane %v5115, 4
        %v5180 = vadd.f32 %v5115, %v5179
        %v5181 = vrot.slane %v5180, 2
        %v5182 = vadd.f32 %v5180, %v5181
        %v5183 = vrot.slane %v5182, 1
        %v5184 = vadd.f32 %v5182, %v5183
        %v5185 = vrot.slane %v5118, 4
        %v5186 = vadd.f32 %v5118, %v5185
        %v5187 = vrot.slane %v5186, 2
        %v5188 = vadd.f32 %v5186, %v5187
        %v5189 = vrot.slane %v5188, 1
        %v5190 = vadd.f32 %v5188, %v5189
        %v5191 = vrot.slane %v5120, 4
        %v5192 = vadd.f32 %v5120, %v5191
        %v5193 = vrot.slane %v5192, 2
        %v5194 = vadd.f32 %v5192, %v5193
        %v5195 = vrot.slane %v5194, 1
        %v5196 = vadd.f32 %v5194, %v5195
        %v5197 = vrot.slane %v5123, 4
        %v5198 = vadd.f32 %v5123, %v5197
        %v5199 = vrot.slane %v5198, 2
        %v5200 = vadd.f32 %v5198, %v5199
        %v5201 = vrot.slane %v5200, 1
        %v5202 = vadd.f32 %v5200, %v5201
        %v5203 = vrot.slane %v5125, 4
        %v5204 = vadd.f32 %v5125, %v5203
        %v5205 = vrot.slane %v5204, 2
        %v5206 = vadd.f32 %v5204, %v5205
        %v5207 = vrot.slane %v5206, 1
        %v5208 = vadd.f32 %v5206, %v5207
        %v5209 = vrot.slane %v5128, 4
        %v5210 = vadd.f32 %v5128, %v5209
        %v5211 = vrot.slane %v5210, 2
        %v5212 = vadd.f32 %v5210, %v5211
        %v5213 = vrot.slane %v5212, 1
        %v5214 = vadd.f32 %v5212, %v5213
        %v5215 = vrot.slane %v5130, 4
        %v5216 = vadd.f32 %v5130, %v5215
        %v5217 = vrot.slane %v5216, 2
        %v5218 = vadd.f32 %v5216, %v5217
        %v5219 = vrot.slane %v5218, 1
        %v5220 = vadd.f32 %v5218, %v5219
        %v5221 = vrot.slane %v5133, 4
        %v5222 = vadd.f32 %v5133, %v5221
        %v5223 = vrot.slane %v5222, 2
        %v5224 = vadd.f32 %v5222, %v5223
        %v5225 = vrot.slane %v5224, 1
        %v5226 = vadd.f32 %v5224, %v5225
        %v5227 = vrot.slane %v5135, 4
        %v5228 = vadd.f32 %v5135, %v5227
        %v5229 = vrot.slane %v5228, 2
        %v5230 = vadd.f32 %v5228, %v5229
        %v5231 = vrot.slane %v5230, 1
        %v5232 = vadd.f32 %v5230, %v5231
        %v5233 = vmul.f32 %v5142, %v1513
        %v5234 = vmul.f32 %v5148, %v1513
        %v5235 = vmul.f32 %v5154, %v1513
        %v5236 = vmul.f32 %v5160, %v1513
        %v5237 = vmul.f32 %v5166, %v1513
        %v5238 = vmul.f32 %v5172, %v1513
        %v5239 = vmul.f32 %v5178, %v1513
        %v5240 = vmul.f32 %v5184, %v1513
        %v5241 = vmul.f32 %v5190, %v1513
        %v5242 = vmul.f32 %v5196, %v1513
        %v5243 = vmul.f32 %v5202, %v1513
        %v5244 = vmul.f32 %v5208, %v1513
        %v5245 = vmul.f32 %v5214, %v1513
        %v5246 = vmul.f32 %v5220, %v1513
        %v5247 = vmul.f32 %v5226, %v1513
        %v5248 = vmul.f32 %v5232, %v1513
        %v5249 = vsub.f32 %v5098, %v5233
        %v5250 = vsub.f32 %v5100, %v5234
        %v5251 = vsub.f32 %v5103, %v5235
        %v5252 = vsub.f32 %v5105, %v5236
        %v5253 = vsub.f32 %v5108, %v5237
        %v5254 = vsub.f32 %v5110, %v5238
        %v5255 = vsub.f32 %v5113, %v5239
        %v5256 = vsub.f32 %v5115, %v5240
        %v5257 = vsub.f32 %v5118, %v5241
        %v5258 = vsub.f32 %v5120, %v5242
        %v5259 = vsub.f32 %v5123, %v5243
        %v5260 = vsub.f32 %v5125, %v5244
        %v5261 = vsub.f32 %v5128, %v5245
        %v5262 = vsub.f32 %v5130, %v5246
        %v5263 = vsub.f32 %v5133, %v5247
        %v5264 = vsub.f32 %v5135, %v5248
        %v5265 = vmul.f32 %v5249, %v5249
        %v5266 = vmul.f32 %v5250, %v5250
        %v5267 = vmul.f32 %v5251, %v5251
        %v5268 = vmul.f32 %v5252, %v5252
        %v5269 = vmul.f32 %v5253, %v5253
        %v5270 = vmul.f32 %v5254, %v5254
        %v5271 = vmul.f32 %v5255, %v5255
        %v5272 = vmul.f32 %v5256, %v5256
        %v5273 = vmul.f32 %v5257, %v5257
        %v5274 = vmul.f32 %v5258, %v5258
        %v5275 = vmul.f32 %v5259, %v5259
        %v5276 = vmul.f32 %v5260, %v5260
        %v5277 = vmul.f32 %v5261, %v5261
        %v5278 = vmul.f32 %v5262, %v5262
        %v5279 = vmul.f32 %v5263, %v5263
        %v5280 = vmul.f32 %v5264, %v5264
        %v5281 = vrot.slane %v5265, 4
        %v5282 = vadd.f32 %v5265, %v5281
        %v5283 = vrot.slane %v5282, 2
        %v5284 = vadd.f32 %v5282, %v5283
        %v5285 = vrot.slane %v5284, 1
        %v5286 = vadd.f32 %v5284, %v5285
        %v5287 = vrot.slane %v5266, 4
        %v5288 = vadd.f32 %v5266, %v5287
        %v5289 = vrot.slane %v5288, 2
        %v5290 = vadd.f32 %v5288, %v5289
        %v5291 = vrot.slane %v5290, 1
        %v5292 = vadd.f32 %v5290, %v5291
        %v5293 = vrot.slane %v5267, 4
        %v5294 = vadd.f32 %v5267, %v5293
        %v5295 = vrot.slane %v5294, 2
        %v5296 = vadd.f32 %v5294, %v5295
        %v5297 = vrot.slane %v5296, 1
        %v5298 = vadd.f32 %v5296, %v5297
        %v5299 = vrot.slane %v5268, 4
        %v5300 = vadd.f32 %v5268, %v5299
        %v5301 = vrot.slane %v5300, 2
        %v5302 = vadd.f32 %v5300, %v5301
        %v5303 = vrot.slane %v5302, 1
        %v5304 = vadd.f32 %v5302, %v5303
        %v5305 = vrot.slane %v5269, 4
        %v5306 = vadd.f32 %v5269, %v5305
        %v5307 = vrot.slane %v5306, 2
        %v5308 = vadd.f32 %v5306, %v5307
        %v5309 = vrot.slane %v5308, 1
        %v5310 = vadd.f32 %v5308, %v5309
        %v5311 = vrot.slane %v5270, 4
        %v5312 = vadd.f32 %v5270, %v5311
        %v5313 = vrot.slane %v5312, 2
        %v5314 = vadd.f32 %v5312, %v5313
        %v5315 = vrot.slane %v5314, 1
        %v5316 = vadd.f32 %v5314, %v5315
        %v5317 = vrot.slane %v5271, 4
        %v5318 = vadd.f32 %v5271, %v5317
        %v5319 = vrot.slane %v5318, 2
        %v5320 = vadd.f32 %v5318, %v5319
        %v5321 = vrot.slane %v5320, 1
        %v5322 = vadd.f32 %v5320, %v5321
        %v5323 = vrot.slane %v5272, 4
        %v5324 = vadd.f32 %v5272, %v5323
        %v5325 = vrot.slane %v5324, 2
        %v5326 = vadd.f32 %v5324, %v5325
        %v5327 = vrot.slane %v5326, 1
        %v5328 = vadd.f32 %v5326, %v5327
        %v5329 = vrot.slane %v5273, 4
        %v5330 = vadd.f32 %v5273, %v5329
        %v5331 = vrot.slane %v5330, 2
        %v5332 = vadd.f32 %v5330, %v5331
        %v5333 = vrot.slane %v5332, 1
        %v5334 = vadd.f32 %v5332, %v5333
        %v5335 = vrot.slane %v5274, 4
        %v5336 = vadd.f32 %v5274, %v5335
        %v5337 = vrot.slane %v5336, 2
        %v5338 = vadd.f32 %v5336, %v5337
        %v5339 = vrot.slane %v5338, 1
        %v5340 = vadd.f32 %v5338, %v5339
        %v5341 = vrot.slane %v5275, 4
        %v5342 = vadd.f32 %v5275, %v5341
        %v5343 = vrot.slane %v5342, 2
        %v5344 = vadd.f32 %v5342, %v5343
        %v5345 = vrot.slane %v5344, 1
        %v5346 = vadd.f32 %v5344, %v5345
        %v5347 = vrot.slane %v5276, 4
        %v5348 = vadd.f32 %v5276, %v5347
        %v5349 = vrot.slane %v5348, 2
        %v5350 = vadd.f32 %v5348, %v5349
        %v5351 = vrot.slane %v5350, 1
        %v5352 = vadd.f32 %v5350, %v5351
        %v5353 = vrot.slane %v5277, 4
        %v5354 = vadd.f32 %v5277, %v5353
        %v5355 = vrot.slane %v5354, 2
        %v5356 = vadd.f32 %v5354, %v5355
        %v5357 = vrot.slane %v5356, 1
        %v5358 = vadd.f32 %v5356, %v5357
        %v5359 = vrot.slane %v5278, 4
        %v5360 = vadd.f32 %v5278, %v5359
        %v5361 = vrot.slane %v5360, 2
        %v5362 = vadd.f32 %v5360, %v5361
        %v5363 = vrot.slane %v5362, 1
        %v5364 = vadd.f32 %v5362, %v5363
        %v5365 = vrot.slane %v5279, 4
        %v5366 = vadd.f32 %v5279, %v5365
        %v5367 = vrot.slane %v5366, 2
        %v5368 = vadd.f32 %v5366, %v5367
        %v5369 = vrot.slane %v5368, 1
        %v5370 = vadd.f32 %v5368, %v5369
        %v5371 = vrot.slane %v5280, 4
        %v5372 = vadd.f32 %v5280, %v5371
        %v5373 = vrot.slane %v5372, 2
        %v5374 = vadd.f32 %v5372, %v5373
        %v5375 = vrot.slane %v5374, 1
        %v5376 = vadd.f32 %v5374, %v5375
        %v5377 = vmul.f32 %v5286, %v1513
        %v5378 = vmul.f32 %v5292, %v1513
        %v5379 = vmul.f32 %v5298, %v1513
        %v5380 = vmul.f32 %v5304, %v1513
        %v5381 = vmul.f32 %v5310, %v1513
        %v5382 = vmul.f32 %v5316, %v1513
        %v5383 = vmul.f32 %v5322, %v1513
        %v5384 = vmul.f32 %v5328, %v1513
        %v5385 = vmul.f32 %v5334, %v1513
        %v5386 = vmul.f32 %v5340, %v1513
        %v5387 = vmul.f32 %v5346, %v1513
        %v5388 = vmul.f32 %v5352, %v1513
        %v5389 = vmul.f32 %v5358, %v1513
        %v5390 = vmul.f32 %v5364, %v1513
        %v5391 = vmul.f32 %v5370, %v1513
        %v5392 = vmul.f32 %v5376, %v1513
        %v5393 = vadd.f32 %v5377, 1e-05
        %v5394 = vadd.f32 %v5378, 1e-05
        %v5395 = vadd.f32 %v5379, 1e-05
        %v5396 = vadd.f32 %v5380, 1e-05
        %v5397 = vadd.f32 %v5381, 1e-05
        %v5398 = vadd.f32 %v5382, 1e-05
        %v5399 = vadd.f32 %v5383, 1e-05
        %v5400 = vadd.f32 %v5384, 1e-05
        %v5401 = vadd.f32 %v5385, 1e-05
        %v5402 = vadd.f32 %v5386, 1e-05
        %v5403 = vadd.f32 %v5387, 1e-05
        %v5404 = vadd.f32 %v5388, 1e-05
        %v5405 = vadd.f32 %v5389, 1e-05
        %v5406 = vadd.f32 %v5390, 1e-05
        %v5407 = vadd.f32 %v5391, 1e-05
        %v5408 = vadd.f32 %v5392, 1e-05
        %v5409 = vrsqrt.pop %v5393
        %v5410 = vmul.f32 %v5409, %v5393
        %v5411 = vmul.f32 %v5410, %v5409
        %v5412 = vmul.f32 0.5, %v5411
        %v5413 = vsub.f32 1.5, %v5412
        %v5414 = vmul.f32 %v5409, %v5413
        %vm5415 = vweird.f32 %v5393
        %vm5416 = vweird.f32 %v5409
        %vm5417 = vmor %vm5415, %vm5416
        %v5418 = vsel %vm5417, %v5409, %v5414
        %v5419 = vrsqrt.pop %v5394
        %v5420 = vmul.f32 %v5419, %v5394
        %v5421 = vmul.f32 %v5420, %v5419
        %v5422 = vmul.f32 0.5, %v5421
        %v5423 = vsub.f32 1.5, %v5422
        %v5424 = vmul.f32 %v5419, %v5423
        %vm5425 = vweird.f32 %v5394
        %vm5426 = vweird.f32 %v5419
        %vm5427 = vmor %vm5425, %vm5426
        %v5428 = vsel %vm5427, %v5419, %v5424
        %v5429 = vrsqrt.pop %v5395
        %v5430 = vmul.f32 %v5429, %v5395
        %v5431 = vmul.f32 %v5430, %v5429
        %v5432 = vmul.f32 0.5, %v5431
        %v5433 = vsub.f32 1.5, %v5432
        %v5434 = vmul.f32 %v5429, %v5433
        %vm5435 = vweird.f32 %v5395
        %vm5436 = vweird.f32 %v5429
        %vm5437 = vmor %vm5435, %vm5436
        %v5438 = vsel %vm5437, %v5429, %v5434
        %v5439 = vrsqrt.pop %v5396
        %v5440 = vmul.f32 %v5439, %v5396
        %v5441 = vmul.f32 %v5440, %v5439
        %v5442 = vmul.f32 0.5, %v5441
        %v5443 = vsub.f32 1.5, %v5442
        %v5444 = vmul.f32 %v5439, %v5443
        %vm5445 = vweird.f32 %v5396
        %vm5446 = vweird.f32 %v5439
        %vm5447 = vmor %vm5445, %vm5446
        %v5448 = vsel %vm5447, %v5439, %v5444
        %v5449 = vrsqrt.pop %v5397
        %v5450 = vmul.f32 %v5449, %v5397
        %v5451 = vmul.f32 %v5450, %v5449
        %v5452 = vmul.f32 0.5, %v5451
        %v5453 = vsub.f32 1.5, %v5452
        %v5454 = vmul.f32 %v5449, %v5453
        %vm5455 = vweird.f32 %v5397
        %vm5456 = vweird.f32 %v5449
        %vm5457 = vmor %vm5455, %vm5456
        %v5458 = vsel %vm5457, %v5449, %v5454
        %v5459 = vrsqrt.pop %v5398
        %v5460 = vmul.f32 %v5459, %v5398
        %v5461 = vmul.f32 %v5460, %v5459
        %v5462 = vmul.f32 0.5, %v5461
        %v5463 = vsub.f32 1.5, %v5462
        %v5464 = vmul.f32 %v5459, %v5463
        %vm5465 = vweird.f32 %v5398
        %vm5466 = vweird.f32 %v5459
        %vm5467 = vmor %vm5465, %vm5466
        %v5468 = vsel %vm5467, %v5459, %v5464
        %v5469 = vrsqrt.pop %v5399
        %v5470 = vmul.f32 %v5469, %v5399
        %v5471 = vmul.f32 %v5470, %v5469
        %v5472 = vmul.f32 0.5, %v5471
        %v5473 = vsub.f32 1.5, %v5472
        %v5474 = vmul.f32 %v5469, %v5473
        %vm5475 = vweird.f32 %v5399
        %vm5476 = vweird.f32 %v5469
        %vm5477 = vmor %vm5475, %vm5476
        %v5478 = vsel %vm5477, %v5469, %v5474
        %v5479 = vrsqrt.pop %v5400
        %v5480 = vmul.f32 %v5479, %v5400
        %v5481 = vmul.f32 %v5480, %v5479
        %v5482 = vmul.f32 0.5, %v5481
        %v5483 = vsub.f32 1.5, %v5482
        %v5484 = vmul.f32 %v5479, %v5483
        %vm5485 = vweird.f32 %v5400
        %vm5486 = vweird.f32 %v5479
        %vm5487 = vmor %vm5485, %vm5486
        %v5488 = vsel %vm5487, %v5479, %v5484
        %v5489 = vrsqrt.pop %v5401
        %v5490 = vmul.f32 %v5489, %v5401
        %v5491 = vmul.f32 %v5490, %v5489
        %v5492 = vmul.f32 0.5, %v5491
        %v5493 = vsub.f32 1.5, %v5492
        %v5494 = vmul.f32 %v5489, %v5493
        %vm5495 = vweird.f32 %v5401
        %vm5496 = vweird.f32 %v5489
        %vm5497 = vmor %vm5495, %vm5496
        %v5498 = vsel %vm5497, %v5489, %v5494
        %v5499 = vrsqrt.pop %v5402
        %v5500 = vmul.f32 %v5499, %v5402
        %v5501 = vmul.f32 %v5500, %v5499
        %v5502 = vmul.f32 0.5, %v5501
        %v5503 = vsub.f32 1.5, %v5502
        %v5504 = vmul.f32 %v5499, %v5503
        %vm5505 = vweird.f32 %v5402
        %vm5506 = vweird.f32 %v5499
        %vm5507 = vmor %vm5505, %vm5506
        %v5508 = vsel %vm5507, %v5499, %v5504
        %v5509 = vrsqrt.pop %v5403
        %v5510 = vmul.f32 %v5509, %v5403
        %v5511 = vmul.f32 %v5510, %v5509
        %v5512 = vmul.f32 0.5, %v5511
        %v5513 = vsub.f32 1.5, %v5512
        %v5514 = vmul.f32 %v5509, %v5513
        %vm5515 = vweird.f32 %v5403
        %vm5516 = vweird.f32 %v5509
        %vm5517 = vmor %vm5515, %vm5516
        %v5518 = vsel %vm5517, %v5509, %v5514
        %v5519 = vrsqrt.pop %v5404
        %v5520 = vmul.f32 %v5519, %v5404
        %v5521 = vmul.f32 %v5520, %v5519
        %v5522 = vmul.f32 0.5, %v5521
        %v5523 = vsub.f32 1.5, %v5522
        %v5524 = vmul.f32 %v5519, %v5523
        %vm5525 = vweird.f32 %v5404
        %vm5526 = vweird.f32 %v5519
        %vm5527 = vmor %vm5525, %vm5526
        %v5528 = vsel %vm5527, %v5519, %v5524
        %v5529 = vrsqrt.pop %v5405
        %v5530 = vmul.f32 %v5529, %v5405
        %v5531 = vmul.f32 %v5530, %v5529
        %v5532 = vmul.f32 0.5, %v5531
        %v5533 = vsub.f32 1.5, %v5532
        %v5534 = vmul.f32 %v5529, %v5533
        %vm5535 = vweird.f32 %v5405
        %vm5536 = vweird.f32 %v5529
        %vm5537 = vmor %vm5535, %vm5536
        %v5538 = vsel %vm5537, %v5529, %v5534
        %v5539 = vrsqrt.pop %v5406
        %v5540 = vmul.f32 %v5539, %v5406
        %v5541 = vmul.f32 %v5540, %v5539
        %v5542 = vmul.f32 0.5, %v5541
        %v5543 = vsub.f32 1.5, %v5542
        %v5544 = vmul.f32 %v5539, %v5543
        %vm5545 = vweird.f32 %v5406
        %vm5546 = vweird.f32 %v5539
        %vm5547 = vmor %vm5545, %vm5546
        %v5548 = vsel %vm5547, %v5539, %v5544
        %v5549 = vrsqrt.pop %v5407
        %v5550 = vmul.f32 %v5549, %v5407
        %v5551 = vmul.f32 %v5550, %v5549
        %v5552 = vmul.f32 0.5, %v5551
        %v5553 = vsub.f32 1.5, %v5552
        %v5554 = vmul.f32 %v5549, %v5553
        %vm5555 = vweird.f32 %v5407
        %vm5556 = vweird.f32 %v5549
        %vm5557 = vmor %vm5555, %vm5556
        %v5558 = vsel %vm5557, %v5549, %v5554
        %v5559 = vrsqrt.pop %v5408
        %v5560 = vmul.f32 %v5559, %v5408
        %v5561 = vmul.f32 %v5560, %v5559
        %v5562 = vmul.f32 0.5, %v5561
        %v5563 = vsub.f32 1.5, %v5562
        %v5564 = vmul.f32 %v5559, %v5563
        %vm5565 = vweird.f32 %v5408
        %vm5566 = vweird.f32 %v5559
        %vm5567 = vmor %vm5565, %vm5566
        %v5568 = vsel %vm5567, %v5559, %v5564
        %v5569 = vmul.f32 %v5249, %v5418
        %v5570 = vmul.f32 %v5250, %v5428
        %v5571 = vmul.f32 %v5251, %v5438
        %v5572 = vmul.f32 %v5252, %v5448
        %v5573 = vmul.f32 %v5253, %v5458
        %v5574 = vmul.f32 %v5254, %v5468
        %v5575 = vmul.f32 %v5255, %v5478
        %v5576 = vmul.f32 %v5256, %v5488
        %v5577 = vmul.f32 %v5257, %v5498
        %v5578 = vmul.f32 %v5258, %v5508
        %v5579 = vmul.f32 %v5259, %v5518
        %v5580 = vmul.f32 %v5260, %v5528
        %v5581 = vmul.f32 %v5261, %v5538
        %v5582 = vmul.f32 %v5262, %v5548
        %v5583 = vmul.f32 %v5263, %v5558
        %v5584 = vmul.f32 %v5264, %v5568
        %v5585 = vld [vmem:[#allocation10 + $0x7] sm:$0x1]
        %v5587 = vperm.slane %v5585, 0
        %v5589 = vmul.f32 %v5569, %v5587
        %v5590 = vmul.f32 %v5570, %v5587
        %v5591 = vmul.f32 %v5571, %v5587
        %v5592 = vmul.f32 %v5572, %v5587
        %v5593 = vmul.f32 %v5573, %v5587
        %v5594 = vmul.f32 %v5574, %v5587
        %v5595 = vmul.f32 %v5575, %v5587
        %v5596 = vmul.f32 %v5576, %v5587
        %v5597 = vmul.f32 %v5577, %v5587
        %v5598 = vmul.f32 %v5578, %v5587
        %v5599 = vmul.f32 %v5579, %v5587
        %v5600 = vmul.f32 %v5580, %v5587
        %v5601 = vmul.f32 %v5581, %v5587
        %v5602 = vmul.f32 %v5582, %v5587
        %v5603 = vmul.f32 %v5583, %v5587
        %v5604 = vmul.f32 %v5584, %v5587
        %v5605 = vld [vmem:[#allocation11 + $0x7] sm:$0x1]
        %v5607 = vperm.slane %v5605, 0
        %v5609 = vadd.f32 %v5589, %v5607
        %v5610 = vadd.f32 %v5590, %v5607
        %v5611 = vadd.f32 %v5591, %v5607
        %v5612 = vadd.f32 %v5592, %v5607
        %v5613 = vadd.f32 %v5593, %v5607
        %v5614 = vadd.f32 %v5594, %v5607
        %v5615 = vadd.f32 %v5595, %v5607
        %v5616 = vadd.f32 %v5596, %v5607
        %v5617 = vadd.f32 %v5597, %v5607
        %v5618 = vadd.f32 %v5598, %v5607
        %v5619 = vadd.f32 %v5599, %v5607
        %v5620 = vadd.f32 %v5600, %v5607
        %v5621 = vadd.f32 %v5601, %v5607
        %v5622 = vadd.f32 %v5602, %v5607
        %v5623 = vadd.f32 %v5603, %v5607
        %v5624 = vadd.f32 %v5604, %v5607
        %v5625 = vmax.f32 %v5609, 0.0
        %v5626 = vmax.f32 %v5610, 0.0
        %v5627 = vmax.f32 %v5611, 0.0
        %v5628 = vmax.f32 %v5612, 0.0
        %v5629 = vmax.f32 %v5613, 0.0
        %v5630 = vmax.f32 %v5614, 0.0
        %v5631 = vmax.f32 %v5615, 0.0
        %v5632 = vmax.f32 %v5616, 0.0
        %v5633 = vmax.f32 %v5617, 0.0
        %v5634 = vmax.f32 %v5618, 0.0
        %v5635 = vmax.f32 %v5619, 0.0
        %v5636 = vmax.f32 %v5620, 0.0
        %v5637 = vmax.f32 %v5621, 0.0
        %v5638 = vmax.f32 %v5622, 0.0
        %v5639 = vmax.f32 %v5623, 0.0
        %v5640 = vmax.f32 %v5624, 0.0
        %v5641 = vrot.slane %v5041, 4
        %v5642 = vadd.f32 %v5041, %v5641
        %v5643 = vrot.slane %v5642, 2
        %v5644 = vadd.f32 %v5642, %v5643
        %v5645 = vrot.slane %v5644, 1
        %v5646 = vadd.f32 %v5644, %v5645
        %v5647 = vrot.slane %v5043, 4
        %v5648 = vadd.f32 %v5043, %v5647
        %v5649 = vrot.slane %v5648, 2
        %v5650 = vadd.f32 %v5648, %v5649
        %v5651 = vrot.slane %v5650, 1
        %v5652 = vadd.f32 %v5650, %v5651
        %v5653 = vrot.slane %v5046, 4
        %v5654 = vadd.f32 %v5046, %v5653
        %v5655 = vrot.slane %v5654, 2
        %v5656 = vadd.f32 %v5654, %v5655
        %v5657 = vrot.slane %v5656, 1
        %v5658 = vadd.f32 %v5656, %v5657
        %v5659 = vrot.slane %v5048, 4
        %v5660 = vadd.f32 %v5048, %v5659
        %v5661 = vrot.slane %v5660, 2
        %v5662 = vadd.f32 %v5660, %v5661
        %v5663 = vrot.slane %v5662, 1
        %v5664 = vadd.f32 %v5662, %v5663
        %v5665 = vrot.slane %v5051, 4
        %v5666 = vadd.f32 %v5051, %v5665
        %v5667 = vrot.slane %v5666, 2
        %v5668 = vadd.f32 %v5666, %v5667
        %v5669 = vrot.slane %v5668, 1
        %v5670 = vadd.f32 %v5668, %v5669
        %v5671 = vrot.slane %v5053, 4
        %v5672 = vadd.f32 %v5053, %v5671
        %v5673 = vrot.slane %v5672, 2
        %v5674 = vadd.f32 %v5672, %v5673
        %v5675 = vrot.slane %v5674, 1
        %v5676 = vadd.f32 %v5674, %v5675
        %v5677 = vrot.slane %v5056, 4
        %v5678 = vadd.f32 %v5056, %v5677
        %v5679 = vrot.slane %v5678, 2
        %v5680 = vadd.f32 %v5678, %v5679
        %v5681 = vrot.slane %v5680, 1
        %v5682 = vadd.f32 %v5680, %v5681
        %v5683 = vrot.slane %v5058, 4
        %v5684 = vadd.f32 %v5058, %v5683
        %v5685 = vrot.slane %v5684, 2
        %v5686 = vadd.f32 %v5684, %v5685
        %v5687 = vrot.slane %v5686, 1
        %v5688 = vadd.f32 %v5686, %v5687
        %v5689 = vrot.slane %v5061, 4
        %v5690 = vadd.f32 %v5061, %v5689
        %v5691 = vrot.slane %v5690, 2
        %v5692 = vadd.f32 %v5690, %v5691
        %v5693 = vrot.slane %v5692, 1
        %v5694 = vadd.f32 %v5692, %v5693
        %v5695 = vrot.slane %v5063, 4
        %v5696 = vadd.f32 %v5063, %v5695
        %v5697 = vrot.slane %v5696, 2
        %v5698 = vadd.f32 %v5696, %v5697
        %v5699 = vrot.slane %v5698, 1
        %v5700 = vadd.f32 %v5698, %v5699
        %v5701 = vrot.slane %v5066, 4
        %v5702 = vadd.f32 %v5066, %v5701
        %v5703 = vrot.slane %v5702, 2
        %v5704 = vadd.f32 %v5702, %v5703
        %v5705 = vrot.slane %v5704, 1
        %v5706 = vadd.f32 %v5704, %v5705
        %v5707 = vrot.slane %v5068, 4
        %v5708 = vadd.f32 %v5068, %v5707
        %v5709 = vrot.slane %v5708, 2
        %v5710 = vadd.f32 %v5708, %v5709
        %v5711 = vrot.slane %v5710, 1
        %v5712 = vadd.f32 %v5710, %v5711
        %v5713 = vrot.slane %v5071, 4
        %v5714 = vadd.f32 %v5071, %v5713
        %v5715 = vrot.slane %v5714, 2
        %v5716 = vadd.f32 %v5714, %v5715
        %v5717 = vrot.slane %v5716, 1
        %v5718 = vadd.f32 %v5716, %v5717
        %v5719 = vrot.slane %v5073, 4
        %v5720 = vadd.f32 %v5073, %v5719
        %v5721 = vrot.slane %v5720, 2
        %v5722 = vadd.f32 %v5720, %v5721
        %v5723 = vrot.slane %v5722, 1
        %v5724 = vadd.f32 %v5722, %v5723
        %v5725 = vrot.slane %v5076, 4
        %v5726 = vadd.f32 %v5076, %v5725
        %v5727 = vrot.slane %v5726, 2
        %v5728 = vadd.f32 %v5726, %v5727
        %v5729 = vrot.slane %v5728, 1
        %v5730 = vadd.f32 %v5728, %v5729
        %v5731 = vrot.slane %v5078, 4
        %v5732 = vadd.f32 %v5078, %v5731
        %v5733 = vrot.slane %v5732, 2
        %v5734 = vadd.f32 %v5732, %v5733
        %v5735 = vrot.slane %v5734, 1
        %v5736 = vadd.f32 %v5734, %v5735
        %v5737 = vmul.f32 %v5646, %v1513
        %v5738 = vmul.f32 %v5652, %v1513
        %v5739 = vmul.f32 %v5658, %v1513
        %v5740 = vmul.f32 %v5664, %v1513
        %v5741 = vmul.f32 %v5670, %v1513
        %v5742 = vmul.f32 %v5676, %v1513
        %v5743 = vmul.f32 %v5682, %v1513
        %v5744 = vmul.f32 %v5688, %v1513
        %v5745 = vmul.f32 %v5694, %v1513
        %v5746 = vmul.f32 %v5700, %v1513
        %v5747 = vmul.f32 %v5706, %v1513
        %v5748 = vmul.f32 %v5712, %v1513
        %v5749 = vmul.f32 %v5718, %v1513
        %v5750 = vmul.f32 %v5724, %v1513
        %v5751 = vmul.f32 %v5730, %v1513
        %v5752 = vmul.f32 %v5736, %v1513
        %v5753 = vsub.f32 %v5041, %v5737
        %v5754 = vsub.f32 %v5043, %v5738
        %v5755 = vsub.f32 %v5046, %v5739
        %v5756 = vsub.f32 %v5048, %v5740
        %v5757 = vsub.f32 %v5051, %v5741
        %v5758 = vsub.f32 %v5053, %v5742
        %v5759 = vsub.f32 %v5056, %v5743
        %v5760 = vsub.f32 %v5058, %v5744
        %v5761 = vsub.f32 %v5061, %v5745
        %v5762 = vsub.f32 %v5063, %v5746
        %v5763 = vsub.f32 %v5066, %v5747
        %v5764 = vsub.f32 %v5068, %v5748
        %v5765 = vsub.f32 %v5071, %v5749
        %v5766 = vsub.f32 %v5073, %v5750
        %v5767 = vsub.f32 %v5076, %v5751
        %v5768 = vsub.f32 %v5078, %v5752
        %v5769 = vmul.f32 %v5753, %v5753
        %v5770 = vmul.f32 %v5754, %v5754
        %v5771 = vmul.f32 %v5755, %v5755
        %v5772 = vmul.f32 %v5756, %v5756
        %v5773 = vmul.f32 %v5757, %v5757
        %v5774 = vmul.f32 %v5758, %v5758
        %v5775 = vmul.f32 %v5759, %v5759
        %v5776 = vmul.f32 %v5760, %v5760
        %v5777 = vmul.f32 %v5761, %v5761
        %v5778 = vmul.f32 %v5762, %v5762
        %v5779 = vmul.f32 %v5763, %v5763
        %v5780 = vmul.f32 %v5764, %v5764
        %v5781 = vmul.f32 %v5765, %v5765
        %v5782 = vmul.f32 %v5766, %v5766
        %v5783 = vmul.f32 %v5767, %v5767
        %v5784 = vmul.f32 %v5768, %v5768
        %v5785 = vrot.slane %v5769, 4
        %v5786 = vadd.f32 %v5769, %v5785
        %v5787 = vrot.slane %v5786, 2
        %v5788 = vadd.f32 %v5786, %v5787
        %v5789 = vrot.slane %v5788, 1
        %v5790 = vadd.f32 %v5788, %v5789
        %v5791 = vrot.slane %v5770, 4
        %v5792 = vadd.f32 %v5770, %v5791
        %v5793 = vrot.slane %v5792, 2
        %v5794 = vadd.f32 %v5792, %v5793
        %v5795 = vrot.slane %v5794, 1
        %v5796 = vadd.f32 %v5794, %v5795
        %v5797 = vrot.slane %v5771, 4
        %v5798 = vadd.f32 %v5771, %v5797
        %v5799 = vrot.slane %v5798, 2
        %v5800 = vadd.f32 %v5798, %v5799
        %v5801 = vrot.slane %v5800, 1
        %v5802 = vadd.f32 %v5800, %v5801
        %v5803 = vrot.slane %v5772, 4
        %v5804 = vadd.f32 %v5772, %v5803
        %v5805 = vrot.slane %v5804, 2
        %v5806 = vadd.f32 %v5804, %v5805
        %v5807 = vrot.slane %v5806, 1
        %v5808 = vadd.f32 %v5806, %v5807
        %v5809 = vrot.slane %v5773, 4
        %v5810 = vadd.f32 %v5773, %v5809
        %v5811 = vrot.slane %v5810, 2
        %v5812 = vadd.f32 %v5810, %v5811
        %v5813 = vrot.slane %v5812, 1
        %v5814 = vadd.f32 %v5812, %v5813
        %v5815 = vrot.slane %v5774, 4
        %v5816 = vadd.f32 %v5774, %v5815
        %v5817 = vrot.slane %v5816, 2
        %v5818 = vadd.f32 %v5816, %v5817
        %v5819 = vrot.slane %v5818, 1
        %v5820 = vadd.f32 %v5818, %v5819
        %v5821 = vrot.slane %v5775, 4
        %v5822 = vadd.f32 %v5775, %v5821
        %v5823 = vrot.slane %v5822, 2
        %v5824 = vadd.f32 %v5822, %v5823
        %v5825 = vrot.slane %v5824, 1
        %v5826 = vadd.f32 %v5824, %v5825
        %v5827 = vrot.slane %v5776, 4
        %v5828 = vadd.f32 %v5776, %v5827
        %v5829 = vrot.slane %v5828, 2
        %v5830 = vadd.f32 %v5828, %v5829
        %v5831 = vrot.slane %v5830, 1
        %v5832 = vadd.f32 %v5830, %v5831
        %v5833 = vrot.slane %v5777, 4
        %v5834 = vadd.f32 %v5777, %v5833
        %v5835 = vrot.slane %v5834, 2
        %v5836 = vadd.f32 %v5834, %v5835
        %v5837 = vrot.slane %v5836, 1
        %v5838 = vadd.f32 %v5836, %v5837
        %v5839 = vrot.slane %v5778, 4
        %v5840 = vadd.f32 %v5778, %v5839
        %v5841 = vrot.slane %v5840, 2
        %v5842 = vadd.f32 %v5840, %v5841
        %v5843 = vrot.slane %v5842, 1
        %v5844 = vadd.f32 %v5842, %v5843
        %v5845 = vrot.slane %v5779, 4
        %v5846 = vadd.f32 %v5779, %v5845
        %v5847 = vrot.slane %v5846, 2
        %v5848 = vadd.f32 %v5846, %v5847
        %v5849 = vrot.slane %v5848, 1
        %v5850 = vadd.f32 %v5848, %v5849
        %v5851 = vrot.slane %v5780, 4
        %v5852 = vadd.f32 %v5780, %v5851
        %v5853 = vrot.slane %v5852, 2
        %v5854 = vadd.f32 %v5852, %v5853
        %v5855 = vrot.slane %v5854, 1
        %v5856 = vadd.f32 %v5854, %v5855
        %v5857 = vrot.slane %v5781, 4
        %v5858 = vadd.f32 %v5781, %v5857
        %v5859 = vrot.slane %v5858, 2
        %v5860 = vadd.f32 %v5858, %v5859
        %v5861 = vrot.slane %v5860, 1
        %v5862 = vadd.f32 %v5860, %v5861
        %v5863 = vrot.slane %v5782, 4
        %v5864 = vadd.f32 %v5782, %v5863
        %v5865 = vrot.slane %v5864, 2
        %v5866 = vadd.f32 %v5864, %v5865
        %v5867 = vrot.slane %v5866, 1
        %v5868 = vadd.f32 %v5866, %v5867
        %v5869 = vrot.slane %v5783, 4
        %v5870 = vadd.f32 %v5783, %v5869
        %v5871 = vrot.slane %v5870, 2
        %v5872 = vadd.f32 %v5870, %v5871
        %v5873 = vrot.slane %v5872, 1
        %v5874 = vadd.f32 %v5872, %v5873
        %v5875 = vrot.slane %v5784, 4
        %v5876 = vadd.f32 %v5784, %v5875
        %v5877 = vrot.slane %v5876, 2
        %v5878 = vadd.f32 %v5876, %v5877
        %v5879 = vrot.slane %v5878, 1
        %v5880 = vadd.f32 %v5878, %v5879
        %v5881 = vmul.f32 %v5790, %v1513
        %v5882 = vmul.f32 %v5796, %v1513
        %v5883 = vmul.f32 %v5802, %v1513
        %v5884 = vmul.f32 %v5808, %v1513
        %v5885 = vmul.f32 %v5814, %v1513
        %v5886 = vmul.f32 %v5820, %v1513
        %v5887 = vmul.f32 %v5826, %v1513
        %v5888 = vmul.f32 %v5832, %v1513
        %v5889 = vmul.f32 %v5838, %v1513
        %v5890 = vmul.f32 %v5844, %v1513
        %v5891 = vmul.f32 %v5850, %v1513
        %v5892 = vmul.f32 %v5856, %v1513
        %v5893 = vmul.f32 %v5862, %v1513
        %v5894 = vmul.f32 %v5868, %v1513
        %v5895 = vmul.f32 %v5874, %v1513
        %v5896 = vmul.f32 %v5880, %v1513
        %v5897 = vadd.f32 %v5881, 1e-05
        %v5898 = vadd.f32 %v5882, 1e-05
        %v5899 = vadd.f32 %v5883, 1e-05
        %v5900 = vadd.f32 %v5884, 1e-05
        %v5901 = vadd.f32 %v5885, 1e-05
        %v5902 = vadd.f32 %v5886, 1e-05
        %v5903 = vadd.f32 %v5887, 1e-05
        %v5904 = vadd.f32 %v5888, 1e-05
        %v5905 = vadd.f32 %v5889, 1e-05
        %v5906 = vadd.f32 %v5890, 1e-05
        %v5907 = vadd.f32 %v5891, 1e-05
        %v5908 = vadd.f32 %v5892, 1e-05
        %v5909 = vadd.f32 %v5893, 1e-05
        %v5910 = vadd.f32 %v5894, 1e-05
        %v5911 = vadd.f32 %v5895, 1e-05
        %v5912 = vadd.f32 %v5896, 1e-05
        %v5913 = vrsqrt.pop %v5897
        %v5914 = vmul.f32 %v5913, %v5897
        %v5915 = vmul.f32 %v5914, %v5913
        %v5916 = vmul.f32 0.5, %v5915
        %v5917 = vsub.f32 1.5, %v5916
        %v5918 = vmul.f32 %v5913, %v5917
        %vm5919 = vweird.f32 %v5897
        %vm5920 = vweird.f32 %v5913
        %vm5921 = vmor %vm5919, %vm5920
        %v5922 = vsel %vm5921, %v5913, %v5918
        %v5923 = vrsqrt.pop %v5898
        %v5924 = vmul.f32 %v5923, %v5898
        %v5925 = vmul.f32 %v5924, %v5923
        %v5926 = vmul.f32 0.5, %v5925
        %v5927 = vsub.f32 1.5, %v5926
        %v5928 = vmul.f32 %v5923, %v5927
        %vm5929 = vweird.f32 %v5898
        %vm5930 = vweird.f32 %v5923
        %vm5931 = vmor %vm5929, %vm5930
        %v5932 = vsel %vm5931, %v5923, %v5928
        %v5933 = vrsqrt.pop %v5899
        %v5934 = vmul.f32 %v5933, %v5899
        %v5935 = vmul.f32 %v5934, %v5933
        %v5936 = vmul.f32 0.5, %v5935
        %v5937 = vsub.f32 1.5, %v5936
        %v5938 = vmul.f32 %v5933, %v5937
        %vm5939 = vweird.f32 %v5899
        %vm5940 = vweird.f32 %v5933
        %vm5941 = vmor %vm5939, %vm5940
        %v5942 = vsel %vm5941, %v5933, %v5938
        %v5943 = vrsqrt.pop %v5900
        %v5944 = vmul.f32 %v5943, %v5900
        %v5945 = vmul.f32 %v5944, %v5943
        %v5946 = vmul.f32 0.5, %v5945
        %v5947 = vsub.f32 1.5, %v5946
        %v5948 = vmul.f32 %v5943, %v5947
        %vm5949 = vweird.f32 %v5900
        %vm5950 = vweird.f32 %v5943
        %vm5951 = vmor %vm5949, %vm5950
        %v5952 = vsel %vm5951, %v5943, %v5948
        %v5953 = vrsqrt.pop %v5901
        %v5954 = vmul.f32 %v5953, %v5901
        %v5955 = vmul.f32 %v5954, %v5953
        %v5956 = vmul.f32 0.5, %v5955
        %v5957 = vsub.f32 1.5, %v5956
        %v5958 = vmul.f32 %v5953, %v5957
        %vm5959 = vweird.f32 %v5901
        %vm5960 = vweird.f32 %v5953
        %vm5961 = vmor %vm5959, %vm5960
        %v5962 = vsel %vm5961, %v5953, %v5958
        %v5963 = vrsqrt.pop %v5902
        %v5964 = vmul.f32 %v5963, %v5902
        %v5965 = vmul.f32 %v5964, %v5963
        %v5966 = vmul.f32 0.5, %v5965
        %v5967 = vsub.f32 1.5, %v5966
        %v5968 = vmul.f32 %v5963, %v5967
        %vm5969 = vweird.f32 %v5902
        %vm5970 = vweird.f32 %v5963
        %vm5971 = vmor %vm5969, %vm5970
        %v5972 = vsel %vm5971, %v5963, %v5968
        %v5973 = vrsqrt.pop %v5903
        %v5974 = vmul.f32 %v5973, %v5903
        %v5975 = vmul.f32 %v5974, %v5973
        %v5976 = vmul.f32 0.5, %v5975
        %v5977 = vsub.f32 1.5, %v5976
        %v5978 = vmul.f32 %v5973, %v5977
        %vm5979 = vweird.f32 %v5903
        %vm5980 = vweird.f32 %v5973
        %vm5981 = vmor %vm5979, %vm5980
        %v5982 = vsel %vm5981, %v5973, %v5978
        %v5983 = vrsqrt.pop %v5904
        %v5984 = vmul.f32 %v5983, %v5904
        %v5985 = vmul.f32 %v5984, %v5983
        %v5986 = vmul.f32 0.5, %v5985
        %v5987 = vsub.f32 1.5, %v5986
        %v5988 = vmul.f32 %v5983, %v5987
        %vm5989 = vweird.f32 %v5904
        %vm5990 = vweird.f32 %v5983
        %vm5991 = vmor %vm5989, %vm5990
        %v5992 = vsel %vm5991, %v5983, %v5988
        %v5993 = vrsqrt.pop %v5905
        %v5994 = vmul.f32 %v5993, %v5905
        %v5995 = vmul.f32 %v5994, %v5993
        %v5996 = vmul.f32 0.5, %v5995
        %v5997 = vsub.f32 1.5, %v5996
        %v5998 = vmul.f32 %v5993, %v5997
        %vm5999 = vweird.f32 %v5905
        %vm6000 = vweird.f32 %v5993
        %vm6001 = vmor %vm5999, %vm6000
        %v6002 = vsel %vm6001, %v5993, %v5998
        %v6003 = vrsqrt.pop %v5906
        %v6004 = vmul.f32 %v6003, %v5906
        %v6005 = vmul.f32 %v6004, %v6003
        %v6006 = vmul.f32 0.5, %v6005
        %v6007 = vsub.f32 1.5, %v6006
        %v6008 = vmul.f32 %v6003, %v6007
        %vm6009 = vweird.f32 %v5906
        %vm6010 = vweird.f32 %v6003
        %vm6011 = vmor %vm6009, %vm6010
        %v6012 = vsel %vm6011, %v6003, %v6008
        %v6013 = vrsqrt.pop %v5907
        %v6014 = vmul.f32 %v6013, %v5907
        %v6015 = vmul.f32 %v6014, %v6013
        %v6016 = vmul.f32 0.5, %v6015
        %v6017 = vsub.f32 1.5, %v6016
        %v6018 = vmul.f32 %v6013, %v6017
        %vm6019 = vweird.f32 %v5907
        %vm6020 = vweird.f32 %v6013
        %vm6021 = vmor %vm6019, %vm6020
        %v6022 = vsel %vm6021, %v6013, %v6018
        %v6023 = vrsqrt.pop %v5908
        %v6024 = vmul.f32 %v6023, %v5908
        %v6025 = vmul.f32 %v6024, %v6023
        %v6026 = vmul.f32 0.5, %v6025
        %v6027 = vsub.f32 1.5, %v6026
        %v6028 = vmul.f32 %v6023, %v6027
        %vm6029 = vweird.f32 %v5908
        %vm6030 = vweird.f32 %v6023
        %vm6031 = vmor %vm6029, %vm6030
        %v6032 = vsel %vm6031, %v6023, %v6028
        %v6033 = vrsqrt.pop %v5909
        %v6034 = vmul.f32 %v6033, %v5909
        %v6035 = vmul.f32 %v6034, %v6033
        %v6036 = vmul.f32 0.5, %v6035
        %v6037 = vsub.f32 1.5, %v6036
        %v6038 = vmul.f32 %v6033, %v6037
        %vm6039 = vweird.f32 %v5909
        %vm6040 = vweird.f32 %v6033
        %vm6041 = vmor %vm6039, %vm6040
        %v6042 = vsel %vm6041, %v6033, %v6038
        %v6043 = vrsqrt.pop %v5910
        %v6044 = vmul.f32 %v6043, %v5910
        %v6045 = vmul.f32 %v6044, %v6043
        %v6046 = vmul.f32 0.5, %v6045
        %v6047 = vsub.f32 1.5, %v6046
        %v6048 = vmul.f32 %v6043, %v6047
        %vm6049 = vweird.f32 %v5910
        %vm6050 = vweird.f32 %v6043
        %vm6051 = vmor %vm6049, %vm6050
        %v6052 = vsel %vm6051, %v6043, %v6048
        %v6053 = vrsqrt.pop %v5911
        %v6054 = vmul.f32 %v6053, %v5911
        %v6055 = vmul.f32 %v6054, %v6053
        %v6056 = vmul.f32 0.5, %v6055
        %v6057 = vsub.f32 1.5, %v6056
        %v6058 = vmul.f32 %v6053, %v6057
        %vm6059 = vweird.f32 %v5911
        %vm6060 = vweird.f32 %v6053
        %vm6061 = vmor %vm6059, %vm6060
        %v6062 = vsel %vm6061, %v6053, %v6058
        %v6063 = vrsqrt.pop %v5912
        %v6064 = vmul.f32 %v6063, %v5912
        %v6065 = vmul.f32 %v6064, %v6063
        %v6066 = vmul.f32 0.5, %v6065
        %v6067 = vsub.f32 1.5, %v6066
        %v6068 = vmul.f32 %v6063, %v6067
        %vm6069 = vweird.f32 %v5912
        %vm6070 = vweird.f32 %v6063
        %vm6071 = vmor %vm6069, %vm6070
        %v6072 = vsel %vm6071, %v6063, %v6068
        %v6073 = vmul.f32 %v5753, %v5922
        %v6074 = vmul.f32 %v5754, %v5932
        %v6075 = vmul.f32 %v5755, %v5942
        %v6076 = vmul.f32 %v5756, %v5952
        %v6077 = vmul.f32 %v5757, %v5962
        %v6078 = vmul.f32 %v5758, %v5972
        %v6079 = vmul.f32 %v5759, %v5982
        %v6080 = vmul.f32 %v5760, %v5992
        %v6081 = vmul.f32 %v5761, %v6002
        %v6082 = vmul.f32 %v5762, %v6012
        %v6083 = vmul.f32 %v5763, %v6022
        %v6084 = vmul.f32 %v5764, %v6032
        %v6085 = vmul.f32 %v5765, %v6042
        %v6086 = vmul.f32 %v5766, %v6052
        %v6087 = vmul.f32 %v5767, %v6062
        %v6088 = vmul.f32 %v5768, %v6072
        %v6089 = vld [vmem:[#allocation10 + $0x8] sm:$0x1]
        %v6091 = vperm.slane %v6089, 0
        %v6093 = vmul.f32 %v6073, %v6091
        %v6094 = vmul.f32 %v6074, %v6091
        %v6095 = vmul.f32 %v6075, %v6091
        %v6096 = vmul.f32 %v6076, %v6091
        %v6097 = vmul.f32 %v6077, %v6091
        %v6098 = vmul.f32 %v6078, %v6091
        %v6099 = vmul.f32 %v6079, %v6091
        %v6100 = vmul.f32 %v6080, %v6091
        %v6101 = vmul.f32 %v6081, %v6091
        %v6102 = vmul.f32 %v6082, %v6091
        %v6103 = vmul.f32 %v6083, %v6091
        %v6104 = vmul.f32 %v6084, %v6091
        %v6105 = vmul.f32 %v6085, %v6091
        %v6106 = vmul.f32 %v6086, %v6091
        %v6107 = vmul.f32 %v6087, %v6091
        %v6108 = vmul.f32 %v6088, %v6091
        %v6109 = vld [vmem:[#allocation11 + $0x8] sm:$0x1]
        %v6111 = vperm.slane %v6109, 0
        %v6113 = vadd.f32 %v6093, %v6111
        %v6114 = vadd.f32 %v6094, %v6111
        %v6115 = vadd.f32 %v6095, %v6111
        %v6116 = vadd.f32 %v6096, %v6111
        %v6117 = vadd.f32 %v6097, %v6111
        %v6118 = vadd.f32 %v6098, %v6111
        %v6119 = vadd.f32 %v6099, %v6111
        %v6120 = vadd.f32 %v6100, %v6111
        %v6121 = vadd.f32 %v6101, %v6111
        %v6122 = vadd.f32 %v6102, %v6111
        %v6123 = vadd.f32 %v6103, %v6111
        %v6124 = vadd.f32 %v6104, %v6111
        %v6125 = vadd.f32 %v6105, %v6111
        %v6126 = vadd.f32 %v6106, %v6111
        %v6127 = vadd.f32 %v6107, %v6111
        %v6128 = vadd.f32 %v6108, %v6111
        %v6129 = vmax.f32 %v6113, 0.0
        %v6130 = vmax.f32 %v6114, 0.0
        %v6131 = vmax.f32 %v6115, 0.0
        %v6132 = vmax.f32 %v6116, 0.0
        %v6133 = vmax.f32 %v6117, 0.0
        %v6134 = vmax.f32 %v6118, 0.0
        %v6135 = vmax.f32 %v6119, 0.0
        %v6136 = vmax.f32 %v6120, 0.0
        %v6137 = vmax.f32 %v6121, 0.0
        %v6138 = vmax.f32 %v6122, 0.0
        %v6139 = vmax.f32 %v6123, 0.0
        %v6140 = vmax.f32 %v6124, 0.0
        %v6141 = vmax.f32 %v6125, 0.0
        %v6142 = vmax.f32 %v6126, 0.0
        %v6143 = vmax.f32 %v6127, 0.0
        %v6144 = vmax.f32 %v6128, 0.0
        %v6145 = vadd.f32 %v2295, %v4752
        %v6146 = vadd.f32 %v2297, %v4757
        %v6147 = vadd.f32 %v2299, %v4762
        %v6148 = vadd.f32 %v2301, %v4767
        %v6149 = vadd.f32 %v2303, %v4772
        %v6150 = vadd.f32 %v2305, %v4777
        %v6151 = vadd.f32 %v2307, %v4782
        %v6152 = vadd.f32 %v2309, %v4787
        %v6153 = vadd.f32 %v2311, %v4792
        %v6154 = vadd.f32 %v2313, %v4797
        %v6155 = vadd.f32 %v2315, %v4802
        %v6156 = vadd.f32 %v2317, %v4807
        %v6157 = vadd.f32 %v2319, %v4812
        %v6158 = vadd.f32 %v2321, %v4817
        %v6159 = vadd.f32 %v2323, %v4822
        %v6160 = vadd.f32 %v2325, %v4827
        %v6161 = vadd.f32 %v6145, %v4753
        %v6162 = vadd.f32 %v6146, %v4758
        %v6163 = vadd.f32 %v6147, %v4763
        %v6164 = vadd.f32 %v6148, %v4768
        %v6165 = vadd.f32 %v6149, %v4773
        %v6166 = vadd.f32 %v6150, %v4778
        %v6167 = vadd.f32 %v6151, %v4783
        %v6168 = vadd.f32 %v6152, %v4788
        %v6169 = vadd.f32 %v6153, %v4793
        %v6170 = vadd.f32 %v6154, %v4798
        %v6171 = vadd.f32 %v6155, %v4803
        %v6172 = vadd.f32 %v6156, %v4808
        %v6173 = vadd.f32 %v6157, %v4813
        %v6174 = vadd.f32 %v6158, %v4818
        %v6175 = vadd.f32 %v6159, %v4823
        %v6176 = vadd.f32 %v6160, %v4828
        %v6177 = vadd.f32 %v6161, %v5625
        %v6178 = vadd.f32 %v6162, %v5626
        %v6179 = vadd.f32 %v6163, %v5627
        %v6180 = vadd.f32 %v6164, %v5628
        %v6181 = vadd.f32 %v6165, %v5629
        %v6182 = vadd.f32 %v6166, %v5630
        %v6183 = vadd.f32 %v6167, %v5631
        %v6184 = vadd.f32 %v6168, %v5632
        %v6185 = vadd.f32 %v6169, %v5633
        %v6186 = vadd.f32 %v6170, %v5634
        %v6187 = vadd.f32 %v6171, %v5635
        %v6188 = vadd.f32 %v6172, %v5636
        %v6189 = vadd.f32 %v6173, %v5637
        %v6190 = vadd.f32 %v6174, %v5638
        %v6191 = vadd.f32 %v6175, %v5639
        %v6192 = vadd.f32 %v6176, %v5640
        %v6193 = vadd.f32 %v6177, %v6129
        %v6194 = vadd.f32 %v6178, %v6130
        %v6195 = vadd.f32 %v6179, %v6131
        %v6196 = vadd.f32 %v6180, %v6132
        %v6197 = vadd.f32 %v6181, %v6133
        %v6198 = vadd.f32 %v6182, %v6134
        %v6199 = vadd.f32 %v6183, %v6135
        %v6200 = vadd.f32 %v6184, %v6136
        %v6201 = vadd.f32 %v6185, %v6137
        %v6202 = vadd.f32 %v6186, %v6138
        %v6203 = vadd.f32 %v6187, %v6139
        %v6204 = vadd.f32 %v6188, %v6140
        %v6205 = vadd.f32 %v6189, %v6141
        %v6206 = vadd.f32 %v6190, %v6142
        %v6207 = vadd.f32 %v6191, %v6143
        %v6208 = vadd.f32 %v6192, %v6144
        %v6209 = vadd.f32 %v6193, %v4754
        %v6210 = vadd.f32 %v6194, %v4759
        %v6211 = vadd.f32 %v6195, %v4764
        %v6212 = vadd.f32 %v6196, %v4769
        %v6213 = vadd.f32 %v6197, %v4774
        %v6214 = vadd.f32 %v6198, %v4779
        %v6215 = vadd.f32 %v6199, %v4784
        %v6216 = vadd.f32 %v6200, %v4789
        %v6217 = vadd.f32 %v6201, %v4794
        %v6218 = vadd.f32 %v6202, %v4799
        %v6219 = vadd.f32 %v6203, %v4804
        %v6220 = vadd.f32 %v6204, %v4809
        %v6221 = vadd.f32 %v6205, %v4814
        %v6222 = vadd.f32 %v6206, %v4819
        %v6223 = vadd.f32 %v6207, %v4824
        %v6224 = vadd.f32 %v6208, %v4829
        %s6225 = scalar_lea.vmem %s375, 128 [#allocation13]
        %6226 = vst [vmem:[%s6225] sm:$0xff] %v6209
        %6227 = vst [vmem:[%s6225 + $0x8] sm:$0xff] %v6210
        %6228 = vst [vmem:[%s6225 + $0x10] sm:$0xff] %v6211
        %6229 = vst [vmem:[%s6225 + $0x18] sm:$0xff] %v6212
        %6230 = vst [vmem:[%s6225 + $0x20] sm:$0xff] %v6213
        %6231 = vst [vmem:[%s6225 + $0x28] sm:$0xff] %v6214
        %6232 = vst [vmem:[%s6225 + $0x30] sm:$0xff] %v6215
        %6233 = vst [vmem:[%s6225 + $0x38] sm:$0xff] %v6216
        %6234 = vst [vmem:[%s6225 + $0x40] sm:$0xff] %v6217
        %6235 = vst [vmem:[%s6225 + $0x48] sm:$0xff] %v6218
        %6236 = vst [vmem:[%s6225 + $0x50] sm:$0xff] %v6219
        %6237 = vst [vmem:[%s6225 + $0x58] sm:$0xff] %v6220
        %6238 = vst [vmem:[%s6225 + $0x60] sm:$0xff] %v6221
        %6239 = vst [vmem:[%s6225 + $0x68] sm:$0xff] %v6222
        %6240 = vst [vmem:[%s6225 + $0x70] sm:$0xff] %v6223
        %6241 = vst [vmem:[%s6225 + $0x78] sm:$0xff] %v6224
        %s6242 = sand.u32 %s172, 1
        %s6243 = scalar_lea.sflag [#allocation4], %s6242
        %s6244 = sand.u32 %s172, 1
        %s6245 = smul.addr %s6244, 256
        %s6246 = scalar_lea.vmem [#allocation13], %s6245
        // Predicated region
        $region69: #{tpu_custom_call.1} parent=43 // pred_check
          %p6247 = pneg %p182
        $region70: #{tpu_custom_call.1} parent=43 // pred_check_branch
          %6249 = sbr.rel (%p6247) target = $region72
        $region71: #{tpu_custom_call.1} parent=43 // pred_region
          #allocation15 [shape = 'u32[6]{0}', space=smem, size = 0x18, scoped, tag = 'DMA stride descriptor']
          %s6250 = smul.u32 16, %s28
          %6252 = vsyncadd %s6243, 0
          %s6253 = smul.addr %s6250, 8
          %s6254 = scalar_lea.hbm %s6, %s6253
          %s6256 = sshll.u32 1, 14
          %s6257 = sxor.u32 4294967295, %s6256
          %s6260 = sshll.u32 7, 18
          %s6261 = sxor.u32 4294967295, %s6260
          %s6262 = sand.u32 0, %s6261
          %s6264 = sor.u32 %s6262, 0
          %s6265 = sshll.u32 %s6246, 4
          %s6266 = int_to_ptr.vmem [resolvable:$true] %s6265
          %s6267 = sshll.u32 %s6254, 4
          %s6268 = int_to_ptr.hbm [resolvable:$true] %s6267
          %6274 = sst [smem:[#allocation15]] 2048
          %s6275 = scalar_lea.smem [#allocation15], 1
          %6276 = sst [smem:[%s6275]] 4096
          %s6277 = scalar_lea.smem [#allocation15], 2
          %6278 = sst [smem:[%s6277]] 16
          %s6279 = scalar_lea.smem [#allocation15], 3
          %6280 = sst [smem:[%s6279]] 128
          %s6281 = scalar_lea.smem [#allocation15], 4
          %6282 = sst [smem:[%s6281]] 128
          %s6283 = scalar_lea.smem [#allocation15], 5
          %6284 = sst [smem:[%s6283]] 8
          %6286 = dma.general %s6266, 4096, %s6268, %s6243, [#allocation14], [#allocation15], %s6264, 0
        $region72: #{tpu_custom_call.1} parent=43 // pred_fallthru
          _
      $region44: #{tpu_custom_call.1} parent=5 // pred_fallthru
        _
      %p6287 = scmp.le.s32.totalorder 2, %s23
      // Predicated region
      $region73: #{tpu_custom_call.1} parent=5 // pred_check
        %p6288 = pneg %p6287
      $region74: #{tpu_custom_call.1} parent=5 // pred_check_branch
        %6290 = sbr.rel (%p6288) target = $region76
      $region75: #{tpu_custom_call.1} parent=5 // pred_region
        %s6291 = ssub.s32 %s23, 2
        // Predicated region
        $region77: #{tpu_custom_call.1} parent=75 // pred_check
          %p6292 = pneg %p188
        $region78: #{tpu_custom_call.1} parent=75 // pred_check_branch
          %6294 = sbr.rel (%p6292) target = $region80
        $region79: #{tpu_custom_call.1} parent=75 // pred_region
          %s6295 = sand.u32 %s173, 1
          %s6296 = scalar_lea.sflag [#allocation4], %s6295
          %s6297 = sand.u32 %s173, 1
          %s6298 = smul.addr %s6297, 256
          %s6299 = scalar_lea.vmem [#allocation13], %s6298
          %6301 = dma.done %s6296, 4096
        $region80: #{tpu_custom_call.1} parent=75 // pred_fallthru
          _
      $region76: #{tpu_custom_call.1} parent=5 // pred_fallthru
        _
    $region6: #{tpu_custom_call.1} parent=1 // loop_footer
      %s27 = sadd.s32 1, %s23
    $region7: #{tpu_custom_call.1} parent=1 // loop_footer_branch
      %22 = sbr.rel target = $region3
    $region8: #{tpu_custom_call.1} parent=1 // loop_exit
      _
    %6302 = vsyncpa [#allocation3], 1
    %s6303 = scalar_lea.sflag [#allocation3], 1
    %6304 = vsyncpa %s6303, 1
    %6305 = vsyncpa [#allocation6], 1
    %s6306 = scalar_lea.sflag [#allocation6], 1
    %6307 = vsyncpa %s6306, 1
    %6308 = vsyncpa [#allocation9], 1
    %6309 = vsyncpa [#allocation12], 1
    %6310 = vsyncpa [#allocation4], 1
    %s6311 = scalar_lea.sflag [#allocation4], 1
    %6312 = vsyncpa %s6311, 1

</llo_original>
